<compile_context>
chip_gen: v7x
topology: tpu7x:2x2x1
jax: 0.10.0
libtpu: 0.0.40
codegen_flags: <defaults>
</compile_context>

<pallas_src>
import functools
import math

import jax
import jax.numpy as jnp
from jax.experimental import pallas as pl
from jax.experimental.pallas import tpu as pltpu

# --- model hyper-parameters (small, consistent with the module's __init__) ---
LATENT_SIZE = 32        # latent_size
INPUT_SIZE = 16         # input_size
NUM_PERCEPTIONS = 32    # num_perceptions
ATTN_HIDDEN = 16        # attention_hidden_size
NUM_STEPS = 2           # num_steps


# ------------------------------- fused kernel ---------------------------------
def _fused_kernel(x_ref, slab_ref, out_ref, *, meta, B, N, P, H, nsteps):
    """Whole Perceiver forward (all steps + inverse cross-attn), batch folded.

    x_ref:    (B*N, INPUT_SIZE)  batch-stacked input sequence
    slab_ref: (R, 128)           densely packed weight slab (single DMA)
    out_ref:  (B*N, INPUT_SIZE)
    """

    def w(name):
        ro, co, r, c = meta[name]            # static python ints -> zero-cost slicing
        return slab_ref[ro:ro + r, :][:, co:co + c]

    def attend(q, k, v):
        # q already carries the 1/sqrt(H) scale (folded at pack time).
        sc = jax.lax.dot_general(q, k, (((1,), (1,)), ((), ())),
                                 preferred_element_type=jnp.float32)
        sc = sc - jnp.max(sc, axis=-1, keepdims=True)
        p = jnp.exp(sc)
        p = p * pl.reciprocal(jnp.sum(p, axis=-1, keepdims=True), approx=True)
        return jnp.dot(p, v, preferred_element_type=jnp.float32)

    def batched_attend(q, mq, k, v, mkv):
        # q: (B*mq, H) stacked; k, v: (B*mkv, H) stacked -> (B*mq, H) stacked.
        return jnp.concatenate(
            [attend(q[b * mq:(b + 1) * mq],
                    k[b * mkv:(b + 1) * mkv],
                    v[b * mkv:(b + 1) * mkv]) for b in range(B)], axis=0)

    x = x_ref[...]                                               # (B*N, D)

    # Hoisted + fused cross-attention K|V for ALL steps (depends only on x).
    kv_all = jnp.dot(x, w("ca_wkv_all"),
                     preferred_element_type=jnp.float32) + w("ca_bkv_all")

    perc = w("perception")                                       # (P, L)
    lat = jnp.concatenate([perc] * B, axis=0)                    # (B*P, L) batch-stacked

    for step in range(nsteps):                                   # static unroll
        pre = f"s{step}_"
        # ---- cross attention: Q from latents (step 0 precomputed), K/V hoisted ----
        if step == 0:
            q = jnp.concatenate([w("q0")] * B, axis=0)           # precomputed & pre-scaled
        else:
            q = jnp.dot(lat, w(pre + "ca_wq"),
                        preferred_element_type=jnp.float32) + w(pre + "ca_bq")
        k = kv_all[:, 2 * H * step: 2 * H * step + H]
        v = kv_all[:, 2 * H * step + H: 2 * H * (step + 1)]
        a = batched_attend(q, P, k, v, N)
        lat = jnp.dot(a, w(pre + "ca_wo"),
                      preferred_element_type=jnp.float32) + w(pre + "ca_bo") + lat
        # ---- cross projection MLP (+ residual) ----
        h1 = jnp.maximum(
            jnp.dot(lat, w(pre + "cp_w1"),
                    preferred_element_type=jnp.float32) + w(pre + "cp_b1"), 0.0)
        lat = jnp.dot(h1, w(pre + "cp_w2"),
                      preferred_element_type=jnp.float32) + w(pre + "cp_b2") + lat
        # ---- self attention (fused Q|K|V projection, Q pre-scaled) ----
        qkv = jnp.dot(lat, w(pre + "sa_wqkv"),
                      preferred_element_type=jnp.float32) + w(pre + "sa_bqkv")
        a = batched_attend(qkv[:, :H], P, qkv[:, H:2 * H], qkv[:, 2 * H:3 * H], P)
        lat = jnp.dot(a, w(pre + "sa_wo"),
                      preferred_element_type=jnp.float32) + w(pre + "sa_bo") + lat
        # ---- projection MLP (+ residual) ----
        h1 = jnp.maximum(
            jnp.dot(lat, w(pre + "pj_w1"),
                    preferred_element_type=jnp.float32) + w(pre + "pj_b1"), 0.0)
        lat = jnp.dot(h1, w(pre + "pj_w2"),
                      preferred_element_type=jnp.float32) + w(pre + "pj_b2") + lat

    # ---- inverse cross attention: Q from x (pre-scaled), K/V from latents ----
    q = jnp.dot(x, w("iv_wq"), preferred_element_type=jnp.float32) + w("iv_bq")
    kv = jnp.dot(lat, w("iv_wkv"), preferred_element_type=jnp.float32) + w("iv_bkv")
    a = batched_attend(q, N, kv[:, :H], kv[:, H:2 * H], P)
    out_ref[...] = jnp.dot(a, w("iv_wo"),
                           preferred_element_type=jnp.float32) + w("iv_bo") + x


# ----------------------------- pallas wrapper ----------------------------------
def perceiver_forward(x, slab, meta):
    """x: (B, N, INPUT_SIZE) -> (B, N, INPUT_SIZE). Single fused pallas_call,
    batch folded onto the sublane (M) axis of every shared-weight matmul."""
    B, N, D = x.shape
    x2d = x.reshape(B * N, D)
    kernel = functools.partial(
        _fused_kernel, meta=meta, B=B, N=N,
        P=NUM_PERCEPTIONS, H=ATTN_HIDDEN, nsteps=NUM_STEPS)
    out2d = pl.pallas_call(
        kernel,
        out_shape=jax.ShapeDtypeStruct((B * N, D), jnp.float32),
        grid=(1,),
        in_specs=[pl.BlockSpec((B * N, D), lambda i: (0, 0)),   # whole stacked input
                  pl.BlockSpec(slab.shape, lambda i: (0, 0))],  # whole weight slab
        out_specs=pl.BlockSpec((B * N, D), lambda i: (0, 0)),
        compiler_params=pltpu.CompilerParams(
            dimension_semantics=("arbitrary",)),
    )(x2d, slab)
    return out2d.reshape(B, N, D)


# ----------------------------- parameter init ---------------------------------
def _linear(key, din, dout):
    k1, k2 = jax.random.split(key)
    w = jax.random.normal(k1, (din, dout), jnp.float32) * (1.0 / math.sqrt(din))
    b = jax.random.normal(k2, (1, dout), jnp.float32) * 0.01
    return w, b


def _attn_params(key, dq, dkv, h):
    ks = jax.random.split(key, 4)
    wq, bq = _linear(ks[0], dq, h)
    wk, bk = _linear(ks[1], dkv, h)
    wv, bv = _linear(ks[2], dkv, h)
    wo, bo = _linear(ks[3], h, dq)
    return {"wq": wq, "bq": bq, "wk": wk, "bk": bk,
            "wv": wv, "bv": bv, "wo": wo, "bo": bo}


def _proj_params(key, d):
    k1, k2 = jax.random.split(key)
    w1, b1 = _linear(k1, d, d)
    w2, b2 = _linear(k2, d, d)
    return {"w1": w1, "b1": b1, "w2": w2, "b2": b2}


def init_params(key):
    keys = jax.random.split(key, NUM_STEPS * 4 + 2)
    params = {
        "perception": jax.random.normal(
            keys[0], (1, NUM_PERCEPTIONS, LATENT_SIZE), jnp.float32),
        "steps": [],
    }
    idx = 1
    for _ in range(NUM_STEPS):
        ca = _attn_params(keys[idx], LATENT_SIZE, INPUT_SIZE, ATTN_HIDDEN); idx += 1
        cp = _proj_params(keys[idx], LATENT_SIZE); idx += 1
        sa = _attn_params(keys[idx], LATENT_SIZE, LATENT_SIZE, ATTN_HIDDEN); idx += 1
        pj = _proj_params(keys[idx], LATENT_SIZE); idx += 1
        params["steps"].append({"ca": ca, "cp": cp, "sa": sa, "pj": pj})
    params["inverse"] = _attn_params(keys[idx], INPUT_SIZE, LATENT_SIZE, ATTN_HIDDEN)
    return params


def pack_params(params):
    """Pack all weights/biases into one dense (rows, 128) slab.

    Folds: step-0 Q projection precomputed from the constant perception array,
    cross-attn K|V of all steps fused into one weight, 1/sqrt(H) score scale folded
    into every Q projection. Packed as two 64-lane column tracks (weights 8-row
    aligned, 1-row biases dense)."""
    scale = 1.0 / math.sqrt(ATTN_HIDDEN)
    perc = params["perception"][0]                               # (P, L)
    weights, biases = [], []
    weights.append(("perception", perc))

    # Step-0 cross-attn Q precomputed offline (perception is a constant).
    ca0 = params["steps"][0]["ca"]
    q0 = (perc @ ca0["wq"] + ca0["bq"]) * scale
    weights.append(("q0", q0))

    # Hoisted + fused cross-attn K|V weights for all steps: (D_in, 2*H*nsteps).
    wkv_all = jnp.concatenate(
        [jnp.concatenate([st["ca"]["wk"], st["ca"]["wv"]], axis=1)
         for st in params["steps"]], axis=1)
    bkv_all = jnp.concatenate(
        [jnp.concatenate([st["ca"]["bk"], st["ca"]["bv"]], axis=1)
         for st in params["steps"]], axis=1)
    weights.append(("ca_wkv_all", wkv_all))
    biases.append(("ca_bkv_all", bkv_all))

    for s, st in enumerate(params["steps"]):
        pre = f"s{s}_"
        ca, cp, sa, pj = st["ca"], st["cp"], st["sa"], st["pj"]
        if s > 0:   # step-0 Q already precomputed
            weights.append((pre + "ca_wq", ca["wq"] * scale))
            biases.append((pre + "ca_bq", ca["bq"] * scale))
        weights.append((pre + "ca_wo", ca["wo"])); biases.append((pre + "ca_bo", ca["bo"]))
        weights.append((pre + "cp_w1", cp["w1"])); biases.append((pre + "cp_b1", cp["b1"]))
        weights.append((pre + "cp_w2", cp["w2"])); biases.append((pre + "cp_b2", cp["b2"]))
        weights.append((pre + "sa_wqkv",
                        jnp.concatenate([sa["wq"] * scale, sa["wk"], sa["wv"]], axis=1)))
        biases.append((pre + "sa_bqkv",
                       jnp.concatenate([sa["bq"] * scale, sa["bk"], sa["bv"]], axis=1)))
        weights.append((pre + "sa_wo", sa["wo"])); biases.append((pre + "sa_bo", sa["bo"]))
        weights.append((pre + "pj_w1", pj["w1"])); biases.append((pre + "pj_b1", pj["b1"]))
        weights.append((pre + "pj_w2", pj["w2"])); biases.append((pre + "pj_b2", pj["b2"]))

    iv = params["inverse"]
    weights.append(("iv_wq", iv["wq"] * scale)); biases.append(("iv_bq", iv["bq"] * scale))
    weights.append(("iv_wkv", jnp.concatenate([iv["wk"], iv["wv"]], axis=1)))
    biases.append(("iv_bkv", jnp.concatenate([iv["bk"], iv["bv"]], axis=1)))
    weights.append(("iv_wo", iv["wo"])); biases.append(("iv_bo", iv["bo"]))

    # --- dense two-track lane packing: two 64-wide column tracks ---
    TRACK_W = 64
    meta, rows = {}, [0, 0]

    def place(name, arr, align):
        r, c = arr.shape
        assert c <= TRACK_W, name
        t = 0 if rows[0] <= rows[1] else 1
        ro = ((rows[t] + align - 1) // align) * align
        meta[name] = (ro, t * TRACK_W, r, c)
        rows[t] = ro + r

    for name, arr in weights:           # matmul operands: keep sublane-aligned
        place(name, arr, 8)
    for name, arr in biases:            # single-row biases: pack densely
        place(name, arr, 1)

    total_rows = ((max(rows) + 7) // 8) * 8
    slab = jnp.zeros((total_rows, 128), jnp.float32)
    for name, arr in weights + biases:
        ro, co, r, c = meta[name]
        slab = slab.at[ro:ro + r, co:co + c].set(arr)
    return slab, meta


# ------------------------- pure-JAX reference (unfused) -------------------------
def reference_forward(x, params):
    def attn(q, kv, p):
        h = p["wq"].shape[1]
        Q = q @ p["wq"] + p["bq"]
        K = kv @ p["wk"] + p["bk"]
        V = kv @ p["wv"] + p["bv"]
        s = (Q @ jnp.swapaxes(K, -1, -2)) * (1.0 / math.sqrt(h))
        w = jax.nn.softmax(s, axis=-1)
        return (w @ V) @ p["wo"] + p["bo"] + q

    def mlp(xx, p):
        return jnp.maximum(xx @ p["w1"] + p["b1"], 0.0) @ p["w2"] + p["b2"]

    B = x.shape[0]
    lat = jnp.broadcast_to(params["perception"], (B, NUM_PERCEPTIONS, LATENT_SIZE))
    for st in params["steps"]:
        lat = attn(lat, x, st["ca"])
        lat = mlp(lat, st["cp"]) + lat
        lat = attn(lat, lat, st["sa"])
        lat = mlp(lat, st["pj"]) + lat
    return attn(x, lat, params["inverse"])


# ----------------------------------- main ---------------------------------------
if __name__ == "__main__":
    key = jax.random.PRNGKey(0)
    k_param, k_input = jax.random.split(key)
    params = init_params(k_param)
    slab, meta = pack_params(params)

    B, N = 2, 16
    x = jax.random.normal(k_input, (B, N, INPUT_SIZE), jnp.float32)

    out = perceiver_forward(x, slab, meta)
    out = jax.block_until_ready(out)

    ref = reference_forward(x, params)
    assert out.shape == (B, N, INPUT_SIZE)
    assert jnp.all(jnp.isfinite(out))
    assert jnp.allclose(out, ref, atol=5e-2, rtol=5e-2), \
        float(jnp.max(jnp.abs(out - ref)))
    print("KERNEL_OK")
</pallas_src>

<mosaic_0001>
module attributes {stable_mosaic.version = 11 : i64} {
  func.func @_fused_kernel(%arg0: i32, %arg1: memref<32x16xf32, #tpu.memory_space<vmem>>, %arg2: memref<296x128xf32, #tpu.memory_space<vmem>>, %arg3: memref<32x16xf32, #tpu.memory_space<vmem>>) attributes {dimension_semantics = [#tpu.dimension_semantics<arbitrary>], iteration_bounds = array<i64: 1>, scalar_prefetch = 0 : i64, scratch_operands = 0 : i64, tpu.core_type = #tpu.core_type<tc>, window_params = [{pipeline_mode = #tpu.pipeline_mode<synchronous>, transform_indices = @transform_0, window_bounds = array<i64: 32, 16>}, {pipeline_mode = #tpu.pipeline_mode<synchronous>, transform_indices = @transform_1, window_bounds = array<i64: 296, 128>}, {pipeline_mode = #tpu.pipeline_mode<synchronous>, transform_indices = @transform_2, window_bounds = array<i64: 32, 16>}]} {
    %c0 = arith.constant 0 : index
    %c0_0 = arith.constant 0 : index
    %0 = vector.load %arg1[%c0, %c0_0] : memref<32x16xf32, #tpu.memory_space<vmem>>, vector<32x16xf32>
    %c32 = arith.constant 32 : index
    %c0_1 = arith.constant 0 : index
    %1 = vector.load %arg2[%c32, %c0_1] : memref<296x128xf32, #tpu.memory_space<vmem>>, vector<16x128xf32>
    %2 = vector.extract_strided_slice %1 {offsets = [0, 0], sizes = [16, 64], strides = [1, 1]} : vector<16x128xf32> to vector<16x64xf32>
    %cst = arith.constant dense<0.000000e+00> : vector<32x64xf32>
    %3 = tpu.matmul %0, %2, %cst {dimension_numbers = #tpu.dot_dimension_numbers<[1], [0], [0], [1], [0, 0, 1, 1], [], []>} : vector<32x16xf32>, vector<16x64xf32>, vector<32x64xf32> -> vector<32x64xf32>
    %c272 = arith.constant 272 : index
    %c0_2 = arith.constant 0 : index
    %4 = vector.load %arg2[%c272, %c0_2] : memref<296x128xf32, #tpu.memory_space<vmem>>, vector<1x128xf32>
    %5 = vector.extract_strided_slice %4 {offsets = [0, 64], sizes = [1, 64], strides = [1, 1]} : vector<1x128xf32> to vector<1x64xf32>
    %6 = vector.broadcast %5 : vector<1x64xf32> to vector<32x64xf32>
    %7 = arith.addf %3, %6 : vector<32x64xf32>
    %c0_3 = arith.constant 0 : index
    %c0_4 = arith.constant 0 : index
    %8 = vector.load %arg2[%c0_3, %c0_4] : memref<296x128xf32, #tpu.memory_space<vmem>>, vector<32x128xf32>
    %9 = vector.extract_strided_slice %8 {offsets = [0, 0], sizes = [32, 32], strides = [1, 1]} : vector<32x128xf32> to vector<32x32xf32>
    %10 = tpu.concatenate %9, %9 in 0 : vector<32x32xf32>, vector<32x32xf32> -> vector<64x32xf32>
    %c0_5 = arith.constant 0 : index
    %c0_6 = arith.constant 0 : index
    %11 = vector.load %arg2[%c0_5, %c0_6] : memref<296x128xf32, #tpu.memory_space<vmem>>, vector<32x128xf32>
    %12 = vector.extract_strided_slice %11 {offsets = [0, 64], sizes = [32, 16], strides = [1, 1]} : vector<32x128xf32> to vector<32x16xf32>
    %13 = tpu.concatenate %12, %12 in 0 : vector<32x16xf32>, vector<32x16xf32> -> vector<64x16xf32>
    %14 = vector.extract_strided_slice %7 {offsets = [0, 0], sizes = [32, 16], strides = [1, 1]} : vector<32x64xf32> to vector<32x16xf32>
    %15 = vector.extract_strided_slice %7 {offsets = [0, 16], sizes = [32, 16], strides = [1, 1]} : vector<32x64xf32> to vector<32x16xf32>
    %16 = vector.extract_strided_slice %13 {offsets = [0, 0], sizes = [32, 16], strides = [1, 1]} : vector<64x16xf32> to vector<32x16xf32>
    %17 = vector.extract_strided_slice %14 {offsets = [0, 0], sizes = [16, 16], strides = [1, 1]} : vector<32x16xf32> to vector<16x16xf32>
    %18 = vector.extract_strided_slice %15 {offsets = [0, 0], sizes = [16, 16], strides = [1, 1]} : vector<32x16xf32> to vector<16x16xf32>
    %cst_7 = arith.constant dense<0.000000e+00> : vector<32x16xf32>
    %19 = tpu.matmul %16, %17, %cst_7 {dimension_numbers = #tpu.dot_dimension_numbers<[1], [1], [0], [0], [0, 0, 1, 0], [], []>} : vector<32x16xf32>, vector<16x16xf32>, vector<32x16xf32> -> vector<32x16xf32>
    %cst_8 = arith.constant dense<0xFF800000> : vector<32xf32>
    %20 = vector.multi_reduction <maximumf>, %19, %cst_8 [1] : vector<32x16xf32> to vector<32xf32>
    %21 = vector.shape_cast %20 : vector<32xf32> to vector<32x1xf32>
    %22 = vector.broadcast %21 : vector<32x1xf32> to vector<32x16xf32>
    %23 = arith.subf %19, %22 : vector<32x16xf32>
    %24 = math.exp %23 : vector<32x16xf32>
    %cst_9 = arith.constant dense<0.000000e+00> : vector<32xf32>
    %25 = vector.multi_reduction <add>, %24, %cst_9 [1] : vector<32x16xf32> to vector<32xf32>
    %26 = vector.shape_cast %25 : vector<32xf32> to vector<32x1xf32>
    %27 = tpu.reciprocal %26 {approx = true} : vector<32x1xf32> -> vector<32x1xf32>
    %28 = vector.broadcast %27 : vector<32x1xf32> to vector<32x16xf32>
    %29 = arith.mulf %24, %28 : vector<32x16xf32>
    %cst_10 = arith.constant dense<0.000000e+00> : vector<32x16xf32>
    %30 = tpu.matmul %29, %18, %cst_10 {dimension_numbers = #tpu.dot_dimension_numbers<[1], [0], [0], [1], [0, 0, 1, 1], [], []>} : vector<32x16xf32>, vector<16x16xf32>, vector<32x16xf32> -> vector<32x16xf32>
    %31 = vector.extract_strided_slice %13 {offsets = [32, 0], sizes = [32, 16], strides = [1, 1]} : vector<64x16xf32> to vector<32x16xf32>
    %32 = vector.extract_strided_slice %14 {offsets = [16, 0], sizes = [16, 16], strides = [1, 1]} : vector<32x16xf32> to vector<16x16xf32>
    %33 = vector.extract_strided_slice %15 {offsets = [16, 0], sizes = [16, 16], strides = [1, 1]} : vector<32x16xf32> to vector<16x16xf32>
    %cst_11 = arith.constant dense<0.000000e+00> : vector<32x16xf32>
    %34 = tpu.matmul %31, %32, %cst_11 {dimension_numbers = #tpu.dot_dimension_numbers<[1], [1], [0], [0], [0, 0, 1, 0], [], []>} : vector<32x16xf32>, vector<16x16xf32>, vector<32x16xf32> -> vector<32x16xf32>
    %cst_12 = arith.constant dense<0xFF800000> : vector<32xf32>
    %35 = vector.multi_reduction <maximumf>, %34, %cst_12 [1] : vector<32x16xf32> to vector<32xf32>
    %36 = vector.shape_cast %35 : vector<32xf32> to vector<32x1xf32>
    %37 = vector.broadcast %36 : vector<32x1xf32> to vector<32x16xf32>
    %38 = arith.subf %34, %37 : vector<32x16xf32>
    %39 = math.exp %38 : vector<32x16xf32>
    %cst_13 = arith.constant dense<0.000000e+00> : vector<32xf32>
    %40 = vector.multi_reduction <add>, %39, %cst_13 [1] : vector<32x16xf32> to vector<32xf32>
    %41 = vector.shape_cast %40 : vector<32xf32> to vector<32x1xf32>
    %42 = tpu.reciprocal %41 {approx = true} : vector<32x1xf32> -> vector<32x1xf32>
    %43 = vector.broadcast %42 : vector<32x1xf32> to vector<32x16xf32>
    %44 = arith.mulf %39, %43 : vector<32x16xf32>
    %cst_14 = arith.constant dense<0.000000e+00> : vector<32x16xf32>
    %45 = tpu.matmul %44, %33, %cst_14 {dimension_numbers = #tpu.dot_dimension_numbers<[1], [0], [0], [1], [0, 0, 1, 1], [], []>} : vector<32x16xf32>, vector<16x16xf32>, vector<32x16xf32> -> vector<32x16xf32>
    %46 = tpu.concatenate %30, %45 in 0 : vector<32x16xf32>, vector<32x16xf32> -> vector<64x16xf32>
    %c32_15 = arith.constant 32 : index
    %c0_16 = arith.constant 0 : index
    %47 = vector.load %arg2[%c32_15, %c0_16] : memref<296x128xf32, #tpu.memory_space<vmem>>, vector<16x128xf32>
    %48 = vector.extract_strided_slice %47 {offsets = [0, 64], sizes = [16, 32], strides = [1, 1]} : vector<16x128xf32> to vector<16x32xf32>
    %cst_17 = arith.constant dense<0.000000e+00> : vector<64x32xf32>
    %49 = tpu.matmul %46, %48, %cst_17 {dimension_numbers = #tpu.dot_dimension_numbers<[1], [0], [0], [1], [0, 0, 1, 1], [], []>} : vector<64x16xf32>, vector<16x32xf32>, vector<64x32xf32> -> vector<64x32xf32>
    %c273 = arith.constant 273 : index
    %c0_18 = arith.constant 0 : index
    %50 = vector.load %arg2[%c273, %c0_18] : memref<296x128xf32, #tpu.memory_space<vmem>>, vector<1x128xf32>
    %51 = vector.extract_strided_slice %50 {offsets = [0, 64], sizes = [1, 32], strides = [1, 1]} : vector<1x128xf32> to vector<1x32xf32>
    %52 = vector.broadcast %51 : vector<1x32xf32> to vector<64x32xf32>
    %53 = arith.addf %49, %52 : vector<64x32xf32>
    %54 = arith.addf %53, %10 : vector<64x32xf32>
    %c48 = arith.constant 48 : index
    %c0_19 = arith.constant 0 : index
    %55 = vector.load %arg2[%c48, %c0_19] : memref<296x128xf32, #tpu.memory_space<vmem>>, vector<32x128xf32>
    %56 = vector.extract_strided_slice %55 {offsets = [0, 0], sizes = [32, 32], strides = [1, 1]} : vector<32x128xf32> to vector<32x32xf32>
    %cst_20 = arith.constant dense<0.000000e+00> : vector<64x32xf32>
    %57 = tpu.matmul %54, %56, %cst_20 {dimension_numbers = #tpu.dot_dimension_numbers<[1], [0], [0], [1], [0, 0, 1, 1], [], []>} : vector<64x32xf32>, vector<32x32xf32>, vector<64x32xf32> -> vector<64x32xf32>
    %c274 = arith.constant 274 : index
    %c0_21 = arith.constant 0 : index
    %58 = vector.load %arg2[%c274, %c0_21] : memref<296x128xf32, #tpu.memory_space<vmem>>, vector<1x128xf32>
    %59 = vector.extract_strided_slice %58 {offsets = [0, 64], sizes = [1, 32], strides = [1, 1]} : vector<1x128xf32> to vector<1x32xf32>
    %60 = vector.broadcast %59 : vector<1x32xf32> to vector<64x32xf32>
    %61 = arith.addf %57, %60 : vector<64x32xf32>
    %cst_22 = arith.constant 0.000000e+00 : f32
    %62 = vector.broadcast %cst_22 : f32 to vector<64x32xf32>
    %63 = arith.maximumf %61, %62 : vector<64x32xf32>
    %c48_23 = arith.constant 48 : index
    %c0_24 = arith.constant 0 : index
    %64 = vector.load %arg2[%c48_23, %c0_24] : memref<296x128xf32, #tpu.memory_space<vmem>>, vector<32x128xf32>
    %65 = vector.extract_strided_slice %64 {offsets = [0, 64], sizes = [32, 32], strides = [1, 1]} : vector<32x128xf32> to vector<32x32xf32>
    %cst_25 = arith.constant dense<0.000000e+00> : vector<64x32xf32>
    %66 = tpu.matmul %63, %65, %cst_25 {dimension_numbers = #tpu.dot_dimension_numbers<[1], [0], [0], [1], [0, 0, 1, 1], [], []>} : vector<64x32xf32>, vector<32x32xf32>, vector<64x32xf32> -> vector<64x32xf32>
    %c275 = arith.constant 275 : index
    %c0_26 = arith.constant 0 : index
    %67 = vector.load %arg2[%c275, %c0_26] : memref<296x128xf32, #tpu.memory_space<vmem>>, vector<1x128xf32>
    %68 = vector.extract_strided_slice %67 {offsets = [0, 64], sizes = [1, 32], strides = [1, 1]} : vector<1x128xf32> to vector<1x32xf32>
    %69 = vector.broadcast %68 : vector<1x32xf32> to vector<64x32xf32>
    %70 = arith.addf %66, %69 : vector<64x32xf32>
    %71 = arith.addf %70, %54 : vector<64x32xf32>
    %c80 = arith.constant 80 : index
    %c0_27 = arith.constant 0 : index
    %72 = vector.load %arg2[%c80, %c0_27] : memref<296x128xf32, #tpu.memory_space<vmem>>, vector<32x128xf32>
    %73 = vector.extract_strided_slice %72 {offsets = [0, 0], sizes = [32, 48], strides = [1, 1]} : vector<32x128xf32> to vector<32x48xf32>
    %cst_28 = arith.constant dense<0.000000e+00> : vector<64x48xf32>
    %74 = tpu.matmul %71, %73, %cst_28 {dimension_numbers = #tpu.dot_dimension_numbers<[1], [0], [0], [1], [0, 0, 1, 1], [], []>} : vector<64x32xf32>, vector<32x48xf32>, vector<64x48xf32> -> vector<64x48xf32>
    %c276 = arith.constant 276 : index
    %c0_29 = arith.constant 0 : index
    %75 = vector.load %arg2[%c276, %c0_29] : memref<296x128xf32, #tpu.memory_space<vmem>>, vector<1x128xf32>
    %76 = vector.extract_strided_slice %75 {offsets = [0, 64], sizes = [1, 48], strides = [1, 1]} : vector<1x128xf32> to vector<1x48xf32>
    %77 = vector.broadcast %76 : vector<1x48xf32> to vector<64x48xf32>
    %78 = arith.addf %74, %77 : vector<64x48xf32>
    %79 = vector.extract_strided_slice %78 {offsets = [0, 0], sizes = [64, 16], strides = [1, 1]} : vector<64x48xf32> to vector<64x16xf32>
    %80 = vector.extract_strided_slice %78 {offsets = [0, 16], sizes = [64, 16], strides = [1, 1]} : vector<64x48xf32> to vector<64x16xf32>
    %81 = vector.extract_strided_slice %78 {offsets = [0, 32], sizes = [64, 16], strides = [1, 1]} : vector<64x48xf32> to vector<64x16xf32>
    %82 = vector.extract_strided_slice %79 {offsets = [0, 0], sizes = [32, 16], strides = [1, 1]} : vector<64x16xf32> to vector<32x16xf32>
    %83 = vector.extract_strided_slice %80 {offsets = [0, 0], sizes = [32, 16], strides = [1, 1]} : vector<64x16xf32> to vector<32x16xf32>
    %84 = vector.extract_strided_slice %81 {offsets = [0, 0], sizes = [32, 16], strides = [1, 1]} : vector<64x16xf32> to vector<32x16xf32>
    %cst_30 = arith.constant dense<0.000000e+00> : vector<32x32xf32>
    %85 = tpu.matmul %82, %83, %cst_30 {dimension_numbers = #tpu.dot_dimension_numbers<[1], [1], [0], [0], [0, 0, 1, 0], [], []>} : vector<32x16xf32>, vector<32x16xf32>, vector<32x32xf32> -> vector<32x32xf32>
    %cst_31 = arith.constant dense<0xFF800000> : vector<32xf32>
    %86 = vector.multi_reduction <maximumf>, %85, %cst_31 [1] : vector<32x32xf32> to vector<32xf32>
    %87 = vector.shape_cast %86 : vector<32xf32> to vector<32x1xf32>
    %88 = vector.broadcast %87 : vector<32x1xf32> to vector<32x32xf32>
    %89 = arith.subf %85, %88 : vector<32x32xf32>
    %90 = math.exp %89 : vector<32x32xf32>
    %cst_32 = arith.constant dense<0.000000e+00> : vector<32xf32>
    %91 = vector.multi_reduction <add>, %90, %cst_32 [1] : vector<32x32xf32> to vector<32xf32>
    %92 = vector.shape_cast %91 : vector<32xf32> to vector<32x1xf32>
    %93 = tpu.reciprocal %92 {approx = true} : vector<32x1xf32> -> vector<32x1xf32>
    %94 = vector.broadcast %93 : vector<32x1xf32> to vector<32x32xf32>
    %95 = arith.mulf %90, %94 : vector<32x32xf32>
    %cst_33 = arith.constant dense<0.000000e+00> : vector<32x16xf32>
    %96 = tpu.matmul %95, %84, %cst_33 {dimension_numbers = #tpu.dot_dimension_numbers<[1], [0], [0], [1], [0, 0, 1, 1], [], []>} : vector<32x32xf32>, vector<32x16xf32>, vector<32x16xf32> -> vector<32x16xf32>
    %97 = vector.extract_strided_slice %79 {offsets = [32, 0], sizes = [32, 16], strides = [1, 1]} : vector<64x16xf32> to vector<32x16xf32>
    %98 = vector.extract_strided_slice %80 {offsets = [32, 0], sizes = [32, 16], strides = [1, 1]} : vector<64x16xf32> to vector<32x16xf32>
    %99 = vector.extract_strided_slice %81 {offsets = [32, 0], sizes = [32, 16], strides = [1, 1]} : vector<64x16xf32> to vector<32x16xf32>
    %cst_34 = arith.constant dense<0.000000e+00> : vector<32x32xf32>
    %100 = tpu.matmul %97, %98, %cst_34 {dimension_numbers = #tpu.dot_dimension_numbers<[1], [1], [0], [0], [0, 0, 1, 0], [], []>} : vector<32x16xf32>, vector<32x16xf32>, vector<32x32xf32> -> vector<32x32xf32>
    %cst_35 = arith.constant dense<0xFF800000> : vector<32xf32>
    %101 = vector.multi_reduction <maximumf>, %100, %cst_35 [1] : vector<32x32xf32> to vector<32xf32>
    %102 = vector.shape_cast %101 : vector<32xf32> to vector<32x1xf32>
    %103 = vector.broadcast %102 : vector<32x1xf32> to vector<32x32xf32>
    %104 = arith.subf %100, %103 : vector<32x32xf32>
    %105 = math.exp %104 : vector<32x32xf32>
    %cst_36 = arith.constant dense<0.000000e+00> : vector<32xf32>
    %106 = vector.multi_reduction <add>, %105, %cst_36 [1] : vector<32x32xf32> to vector<32xf32>
    %107 = vector.shape_cast %106 : vector<32xf32> to vector<32x1xf32>
    %108 = tpu.reciprocal %107 {approx = true} : vector<32x1xf32> -> vector<32x1xf32>
    %109 = vector.broadcast %108 : vector<32x1xf32> to vector<32x32xf32>
    %110 = arith.mulf %105, %109 : vector<32x32xf32>
    %cst_37 = arith.constant dense<0.000000e+00> : vector<32x16xf32>
    %111 = tpu.matmul %110, %99, %cst_37 {dimension_numbers = #tpu.dot_dimension_numbers<[1], [0], [0], [1], [0, 0, 1, 1], [], []>} : vector<32x32xf32>, vector<32x16xf32>, vector<32x16xf32> -> vector<32x16xf32>
    %112 = tpu.concatenate %96, %111 in 0 : vector<32x16xf32>, vector<32x16xf32> -> vector<64x16xf32>
    %c80_38 = arith.constant 80 : index
    %c0_39 = arith.constant 0 : index
    %113 = vector.load %arg2[%c80_38, %c0_39] : memref<296x128xf32, #tpu.memory_space<vmem>>, vector<16x128xf32>
    %114 = vector.extract_strided_slice %113 {offsets = [0, 64], sizes = [16, 32], strides = [1, 1]} : vector<16x128xf32> to vector<16x32xf32>
    %cst_40 = arith.constant dense<0.000000e+00> : vector<64x32xf32>
    %115 = tpu.matmul %112, %114, %cst_40 {dimension_numbers = #tpu.dot_dimension_numbers<[1], [0], [0], [1], [0, 0, 1, 1], [], []>} : vector<64x16xf32>, vector<16x32xf32>, vector<64x32xf32> -> vector<64x32xf32>
    %c277 = arith.constant 277 : index
    %c0_41 = arith.constant 0 : index
    %116 = vector.load %arg2[%c277, %c0_41] : memref<296x128xf32, #tpu.memory_space<vmem>>, vector<1x128xf32>
    %117 = vector.extract_strided_slice %116 {offsets = [0, 64], sizes = [1, 32], strides = [1, 1]} : vector<1x128xf32> to vector<1x32xf32>
    %118 = vector.broadcast %117 : vector<1x32xf32> to vector<64x32xf32>
    %119 = arith.addf %115, %118 : vector<64x32xf32>
    %120 = arith.addf %119, %71 : vector<64x32xf32>
    %c96 = arith.constant 96 : index
    %c0_42 = arith.constant 0 : index
    %121 = vector.load %arg2[%c96, %c0_42] : memref<296x128xf32, #tpu.memory_space<vmem>>, vector<32x128xf32>
    %122 = vector.extract_strided_slice %121 {offsets = [0, 64], sizes = [32, 32], strides = [1, 1]} : vector<32x128xf32> to vector<32x32xf32>
    %cst_43 = arith.constant dense<0.000000e+00> : vector<64x32xf32>
    %123 = tpu.matmul %120, %122, %cst_43 {dimension_numbers = #tpu.dot_dimension_numbers<[1], [0], [0], [1], [0, 0, 1, 1], [], []>} : vector<64x32xf32>, vector<32x32xf32>, vector<64x32xf32> -> vector<64x32xf32>
    %c278 = arith.constant 278 : index
    %c0_44 = arith.constant 0 : index
    %124 = vector.load %arg2[%c278, %c0_44] : memref<296x128xf32, #tpu.memory_space<vmem>>, vector<1x128xf32>
    %125 = vector.extract_strided_slice %124 {offsets = [0, 64], sizes = [1, 32], strides = [1, 1]} : vector<1x128xf32> to vector<1x32xf32>
    %126 = vector.broadcast %125 : vector<1x32xf32> to vector<64x32xf32>
    %127 = arith.addf %123, %126 : vector<64x32xf32>
    %cst_45 = arith.constant 0.000000e+00 : f32
    %128 = vector.broadcast %cst_45 : f32 to vector<64x32xf32>
    %129 = arith.maximumf %127, %128 : vector<64x32xf32>
    %c112 = arith.constant 112 : index
    %c0_46 = arith.constant 0 : index
    %130 = vector.load %arg2[%c112, %c0_46] : memref<296x128xf32, #tpu.memory_space<vmem>>, vector<32x128xf32>
    %131 = vector.extract_strided_slice %130 {offsets = [0, 0], sizes = [32, 32], strides = [1, 1]} : vector<32x128xf32> to vector<32x32xf32>
    %cst_47 = arith.constant dense<0.000000e+00> : vector<64x32xf32>
    %132 = tpu.matmul %129, %131, %cst_47 {dimension_numbers = #tpu.dot_dimension_numbers<[1], [0], [0], [1], [0, 0, 1, 1], [], []>} : vector<64x32xf32>, vector<32x32xf32>, vector<64x32xf32> -> vector<64x32xf32>
    %c279 = arith.constant 279 : index
    %c0_48 = arith.constant 0 : index
    %133 = vector.load %arg2[%c279, %c0_48] : memref<296x128xf32, #tpu.memory_space<vmem>>, vector<1x128xf32>
    %134 = vector.extract_strided_slice %133 {offsets = [0, 64], sizes = [1, 32], strides = [1, 1]} : vector<1x128xf32> to vector<1x32xf32>
    %135 = vector.broadcast %134 : vector<1x32xf32> to vector<64x32xf32>
    %136 = arith.addf %132, %135 : vector<64x32xf32>
    %137 = arith.addf %136, %120 : vector<64x32xf32>
    %c128 = arith.constant 128 : index
    %c0_49 = arith.constant 0 : index
    %138 = vector.load %arg2[%c128, %c0_49] : memref<296x128xf32, #tpu.memory_space<vmem>>, vector<32x128xf32>
    %139 = vector.extract_strided_slice %138 {offsets = [0, 64], sizes = [32, 16], strides = [1, 1]} : vector<32x128xf32> to vector<32x16xf32>
    %cst_50 = arith.constant dense<0.000000e+00> : vector<64x16xf32>
    %140 = tpu.matmul %137, %139, %cst_50 {dimension_numbers = #tpu.dot_dimension_numbers<[1], [0], [0], [1], [0, 0, 1, 1], [], []>} : vector<64x32xf32>, vector<32x16xf32>, vector<64x16xf32> -> vector<64x16xf32>
    %c280 = arith.constant 280 : index
    %c0_51 = arith.constant 0 : index
    %141 = vector.load %arg2[%c280, %c0_51] : memref<296x128xf32, #tpu.memory_space<vmem>>, vector<1x128xf32>
    %142 = vector.extract_strided_slice %141 {offsets = [0, 64], sizes = [1, 16], strides = [1, 1]} : vector<1x128xf32> to vector<1x16xf32>
    %143 = vector.broadcast %142 : vector<1x16xf32> to vector<64x16xf32>
    %144 = arith.addf %140, %143 : vector<64x16xf32>
    %145 = vector.extract_strided_slice %7 {offsets = [0, 32], sizes = [32, 16], strides = [1, 1]} : vector<32x64xf32> to vector<32x16xf32>
    %146 = vector.extract_strided_slice %7 {offsets = [0, 48], sizes = [32, 16], strides = [1, 1]} : vector<32x64xf32> to vector<32x16xf32>
    %147 = vector.extract_strided_slice %144 {offsets = [0, 0], sizes = [32, 16], strides = [1, 1]} : vector<64x16xf32> to vector<32x16xf32>
    %148 = vector.extract_strided_slice %145 {offsets = [0, 0], sizes = [16, 16], strides = [1, 1]} : vector<32x16xf32> to vector<16x16xf32>
    %149 = vector.extract_strided_slice %146 {offsets = [0, 0], sizes = [16, 16], strides = [1, 1]} : vector<32x16xf32> to vector<16x16xf32>
    %cst_52 = arith.constant dense<0.000000e+00> : vector<32x16xf32>
    %150 = tpu.matmul %147, %148, %cst_52 {dimension_numbers = #tpu.dot_dimension_numbers<[1], [1], [0], [0], [0, 0, 1, 0], [], []>} : vector<32x16xf32>, vector<16x16xf32>, vector<32x16xf32> -> vector<32x16xf32>
    %cst_53 = arith.constant dense<0xFF800000> : vector<32xf32>
    %151 = vector.multi_reduction <maximumf>, %150, %cst_53 [1] : vector<32x16xf32> to vector<32xf32>
    %152 = vector.shape_cast %151 : vector<32xf32> to vector<32x1xf32>
    %153 = vector.broadcast %152 : vector<32x1xf32> to vector<32x16xf32>
    %154 = arith.subf %150, %153 : vector<32x16xf32>
    %155 = math.exp %154 : vector<32x16xf32>
    %cst_54 = arith.constant dense<0.000000e+00> : vector<32xf32>
    %156 = vector.multi_reduction <add>, %155, %cst_54 [1] : vector<32x16xf32> to vector<32xf32>
    %157 = vector.shape_cast %156 : vector<32xf32> to vector<32x1xf32>
    %158 = tpu.reciprocal %157 {approx = true} : vector<32x1xf32> -> vector<32x1xf32>
    %159 = vector.broadcast %158 : vector<32x1xf32> to vector<32x16xf32>
    %160 = arith.mulf %155, %159 : vector<32x16xf32>
    %cst_55 = arith.constant dense<0.000000e+00> : vector<32x16xf32>
    %161 = tpu.matmul %160, %149, %cst_55 {dimension_numbers = #tpu.dot_dimension_numbers<[1], [0], [0], [1], [0, 0, 1, 1], [], []>} : vector<32x16xf32>, vector<16x16xf32>, vector<32x16xf32> -> vector<32x16xf32>
    %162 = vector.extract_strided_slice %144 {offsets = [32, 0], sizes = [32, 16], strides = [1, 1]} : vector<64x16xf32> to vector<32x16xf32>
    %163 = vector.extract_strided_slice %145 {offsets = [16, 0], sizes = [16, 16], strides = [1, 1]} : vector<32x16xf32> to vector<16x16xf32>
    %164 = vector.extract_strided_slice %146 {offsets = [16, 0], sizes = [16, 16], strides = [1, 1]} : vector<32x16xf32> to vector<16x16xf32>
    %cst_56 = arith.constant dense<0.000000e+00> : vector<32x16xf32>
    %165 = tpu.matmul %162, %163, %cst_56 {dimension_numbers = #tpu.dot_dimension_numbers<[1], [1], [0], [0], [0, 0, 1, 0], [], []>} : vector<32x16xf32>, vector<16x16xf32>, vector<32x16xf32> -> vector<32x16xf32>
    %cst_57 = arith.constant dense<0xFF800000> : vector<32xf32>
    %166 = vector.multi_reduction <maximumf>, %165, %cst_57 [1] : vector<32x16xf32> to vector<32xf32>
    %167 = vector.shape_cast %166 : vector<32xf32> to vector<32x1xf32>
    %168 = vector.broadcast %167 : vector<32x1xf32> to vector<32x16xf32>
    %169 = arith.subf %165, %168 : vector<32x16xf32>
    %170 = math.exp %169 : vector<32x16xf32>
    %cst_58 = arith.constant dense<0.000000e+00> : vector<32xf32>
    %171 = vector.multi_reduction <add>, %170, %cst_58 [1] : vector<32x16xf32> to vector<32xf32>
    %172 = vector.shape_cast %171 : vector<32xf32> to vector<32x1xf32>
    %173 = tpu.reciprocal %172 {approx = true} : vector<32x1xf32> -> vector<32x1xf32>
    %174 = vector.broadcast %173 : vector<32x1xf32> to vector<32x16xf32>
    %175 = arith.mulf %170, %174 : vector<32x16xf32>
    %cst_59 = arith.constant dense<0.000000e+00> : vector<32x16xf32>
    %176 = tpu.matmul %175, %164, %cst_59 {dimension_numbers = #tpu.dot_dimension_numbers<[1], [0], [0], [1], [0, 0, 1, 1], [], []>} : vector<32x16xf32>, vector<16x16xf32>, vector<32x16xf32> -> vector<32x16xf32>
    %177 = tpu.concatenate %161, %176 in 0 : vector<32x16xf32>, vector<32x16xf32> -> vector<64x16xf32>
    %c144 = arith.constant 144 : index
    %c0_60 = arith.constant 0 : index
    %178 = vector.load %arg2[%c144, %c0_60] : memref<296x128xf32, #tpu.memory_space<vmem>>, vector<16x128xf32>
    %179 = vector.extract_strided_slice %178 {offsets = [0, 0], sizes = [16, 32], strides = [1, 1]} : vector<16x128xf32> to vector<16x32xf32>
    %cst_61 = arith.constant dense<0.000000e+00> : vector<64x32xf32>
    %180 = tpu.matmul %177, %179, %cst_61 {dimension_numbers = #tpu.dot_dimension_numbers<[1], [0], [0], [1], [0, 0, 1, 1], [], []>} : vector<64x16xf32>, vector<16x32xf32>, vector<64x32xf32> -> vector<64x32xf32>
    %c281 = arith.constant 281 : index
    %c0_62 = arith.constant 0 : index
    %181 = vector.load %arg2[%c281, %c0_62] : memref<296x128xf32, #tpu.memory_space<vmem>>, vector<1x128xf32>
    %182 = vector.extract_strided_slice %181 {offsets = [0, 64], sizes = [1, 32], strides = [1, 1]} : vector<1x128xf32> to vector<1x32xf32>
    %183 = vector.broadcast %182 : vector<1x32xf32> to vector<64x32xf32>
    %184 = arith.addf %180, %183 : vector<64x32xf32>
    %185 = arith.addf %184, %137 : vector<64x32xf32>
    %c160 = arith.constant 160 : index
    %c0_63 = arith.constant 0 : index
    %186 = vector.load %arg2[%c160, %c0_63] : memref<296x128xf32, #tpu.memory_space<vmem>>, vector<32x128xf32>
    %187 = vector.extract_strided_slice %186 {offsets = [0, 0], sizes = [32, 32], strides = [1, 1]} : vector<32x128xf32> to vector<32x32xf32>
    %cst_64 = arith.constant dense<0.000000e+00> : vector<64x32xf32>
    %188 = tpu.matmul %185, %187, %cst_64 {dimension_numbers = #tpu.dot_dimension_numbers<[1], [0], [0], [1], [0, 0, 1, 1], [], []>} : vector<64x32xf32>, vector<32x32xf32>, vector<64x32xf32> -> vector<64x32xf32>
    %c282 = arith.constant 282 : index
    %c0_65 = arith.constant 0 : index
    %189 = vector.load %arg2[%c282, %c0_65] : memref<296x128xf32, #tpu.memory_space<vmem>>, vector<1x128xf32>
    %190 = vector.extract_strided_slice %189 {offsets = [0, 64], sizes = [1, 32], strides = [1, 1]} : vector<1x128xf32> to vector<1x32xf32>
    %191 = vector.broadcast %190 : vector<1x32xf32> to vector<64x32xf32>
    %192 = arith.addf %188, %191 : vector<64x32xf32>
    %cst_66 = arith.constant 0.000000e+00 : f32
    %193 = vector.broadcast %cst_66 : f32 to vector<64x32xf32>
    %194 = arith.maximumf %192, %193 : vector<64x32xf32>
    %c160_67 = arith.constant 160 : index
    %c0_68 = arith.constant 0 : index
    %195 = vector.load %arg2[%c160_67, %c0_68] : memref<296x128xf32, #tpu.memory_space<vmem>>, vector<32x128xf32>
    %196 = vector.extract_strided_slice %195 {offsets = [0, 64], sizes = [32, 32], strides = [1, 1]} : vector<32x128xf32> to vector<32x32xf32>
    %cst_69 = arith.constant dense<0.000000e+00> : vector<64x32xf32>
    %197 = tpu.matmul %194, %196, %cst_69 {dimension_numbers = #tpu.dot_dimension_numbers<[1], [0], [0], [1], [0, 0, 1, 1], [], []>} : vector<64x32xf32>, vector<32x32xf32>, vector<64x32xf32> -> vector<64x32xf32>
    %c283 = arith.constant 283 : index
    %c0_70 = arith.constant 0 : index
    %198 = vector.load %arg2[%c283, %c0_70] : memref<296x128xf32, #tpu.memory_space<vmem>>, vector<1x128xf32>
    %199 = vector.extract_strided_slice %198 {offsets = [0, 64], sizes = [1, 32], strides = [1, 1]} : vector<1x128xf32> to vector<1x32xf32>
    %200 = vector.broadcast %199 : vector<1x32xf32> to vector<64x32xf32>
    %201 = arith.addf %197, %200 : vector<64x32xf32>
    %202 = arith.addf %201, %185 : vector<64x32xf32>
    %c192 = arith.constant 192 : index
    %c0_71 = arith.constant 0 : index
    %203 = vector.load %arg2[%c192, %c0_71] : memref<296x128xf32, #tpu.memory_space<vmem>>, vector<32x128xf32>
    %204 = vector.extract_strided_slice %203 {offsets = [0, 0], sizes = [32, 48], strides = [1, 1]} : vector<32x128xf32> to vector<32x48xf32>
    %cst_72 = arith.constant dense<0.000000e+00> : vector<64x48xf32>
    %205 = tpu.matmul %202, %204, %cst_72 {dimension_numbers = #tpu.dot_dimension_numbers<[1], [0], [0], [1], [0, 0, 1, 1], [], []>} : vector<64x32xf32>, vector<32x48xf32>, vector<64x48xf32> -> vector<64x48xf32>
    %c284 = arith.constant 284 : index
    %c0_73 = arith.constant 0 : index
    %206 = vector.load %arg2[%c284, %c0_73] : memref<296x128xf32, #tpu.memory_space<vmem>>, vector<1x128xf32>
    %207 = vector.extract_strided_slice %206 {offsets = [0, 64], sizes = [1, 48], strides = [1, 1]} : vector<1x128xf32> to vector<1x48xf32>
    %208 = vector.broadcast %207 : vector<1x48xf32> to vector<64x48xf32>
    %209 = arith.addf %205, %208 : vector<64x48xf32>
    %210 = vector.extract_strided_slice %209 {offsets = [0, 0], sizes = [64, 16], strides = [1, 1]} : vector<64x48xf32> to vector<64x16xf32>
    %211 = vector.extract_strided_slice %209 {offsets = [0, 16], sizes = [64, 16], strides = [1, 1]} : vector<64x48xf32> to vector<64x16xf32>
    %212 = vector.extract_strided_slice %209 {offsets = [0, 32], sizes = [64, 16], strides = [1, 1]} : vector<64x48xf32> to vector<64x16xf32>
    %213 = vector.extract_strided_slice %210 {offsets = [0, 0], sizes = [32, 16], strides = [1, 1]} : vector<64x16xf32> to vector<32x16xf32>
    %214 = vector.extract_strided_slice %211 {offsets = [0, 0], sizes = [32, 16], strides = [1, 1]} : vector<64x16xf32> to vector<32x16xf32>
    %215 = vector.extract_strided_slice %212 {offsets = [0, 0], sizes = [32, 16], strides = [1, 1]} : vector<64x16xf32> to vector<32x16xf32>
    %cst_74 = arith.constant dense<0.000000e+00> : vector<32x32xf32>
    %216 = tpu.matmul %213, %214, %cst_74 {dimension_numbers = #tpu.dot_dimension_numbers<[1], [1], [0], [0], [0, 0, 1, 0], [], []>} : vector<32x16xf32>, vector<32x16xf32>, vector<32x32xf32> -> vector<32x32xf32>
    %cst_75 = arith.constant dense<0xFF800000> : vector<32xf32>
    %217 = vector.multi_reduction <maximumf>, %216, %cst_75 [1] : vector<32x32xf32> to vector<32xf32>
    %218 = vector.shape_cast %217 : vector<32xf32> to vector<32x1xf32>
    %219 = vector.broadcast %218 : vector<32x1xf32> to vector<32x32xf32>
    %220 = arith.subf %216, %219 : vector<32x32xf32>
    %221 = math.exp %220 : vector<32x32xf32>
    %cst_76 = arith.constant dense<0.000000e+00> : vector<32xf32>
    %222 = vector.multi_reduction <add>, %221, %cst_76 [1] : vector<32x32xf32> to vector<32xf32>
    %223 = vector.shape_cast %222 : vector<32xf32> to vector<32x1xf32>
    %224 = tpu.reciprocal %223 {approx = true} : vector<32x1xf32> -> vector<32x1xf32>
    %225 = vector.broadcast %224 : vector<32x1xf32> to vector<32x32xf32>
    %226 = arith.mulf %221, %225 : vector<32x32xf32>
    %cst_77 = arith.constant dense<0.000000e+00> : vector<32x16xf32>
    %227 = tpu.matmul %226, %215, %cst_77 {dimension_numbers = #tpu.dot_dimension_numbers<[1], [0], [0], [1], [0, 0, 1, 1], [], []>} : vector<32x32xf32>, vector<32x16xf32>, vector<32x16xf32> -> vector<32x16xf32>
    %228 = vector.extract_strided_slice %210 {offsets = [32, 0], sizes = [32, 16], strides = [1, 1]} : vector<64x16xf32> to vector<32x16xf32>
    %229 = vector.extract_strided_slice %211 {offsets = [32, 0], sizes = [32, 16], strides = [1, 1]} : vector<64x16xf32> to vector<32x16xf32>
    %230 = vector.extract_strided_slice %212 {offsets = [32, 0], sizes = [32, 16], strides = [1, 1]} : vector<64x16xf32> to vector<32x16xf32>
    %cst_78 = arith.constant dense<0.000000e+00> : vector<32x32xf32>
    %231 = tpu.matmul %228, %229, %cst_78 {dimension_numbers = #tpu.dot_dimension_numbers<[1], [1], [0], [0], [0, 0, 1, 0], [], []>} : vector<32x16xf32>, vector<32x16xf32>, vector<32x32xf32> -> vector<32x32xf32>
    %cst_79 = arith.constant dense<0xFF800000> : vector<32xf32>
    %232 = vector.multi_reduction <maximumf>, %231, %cst_79 [1] : vector<32x32xf32> to vector<32xf32>
    %233 = vector.shape_cast %232 : vector<32xf32> to vector<32x1xf32>
    %234 = vector.broadcast %233 : vector<32x1xf32> to vector<32x32xf32>
    %235 = arith.subf %231, %234 : vector<32x32xf32>
    %236 = math.exp %235 : vector<32x32xf32>
    %cst_80 = arith.constant dense<0.000000e+00> : vector<32xf32>
    %237 = vector.multi_reduction <add>, %236, %cst_80 [1] : vector<32x32xf32> to vector<32xf32>
    %238 = vector.shape_cast %237 : vector<32xf32> to vector<32x1xf32>
    %239 = tpu.reciprocal %238 {approx = true} : vector<32x1xf32> -> vector<32x1xf32>
    %240 = vector.broadcast %239 : vector<32x1xf32> to vector<32x32xf32>
    %241 = arith.mulf %236, %240 : vector<32x32xf32>
    %cst_81 = arith.constant dense<0.000000e+00> : vector<32x16xf32>
    %242 = tpu.matmul %241, %230, %cst_81 {dimension_numbers = #tpu.dot_dimension_numbers<[1], [0], [0], [1], [0, 0, 1, 1], [], []>} : vector<32x32xf32>, vector<32x16xf32>, vector<32x16xf32> -> vector<32x16xf32>
    %243 = tpu.concatenate %227, %242 in 0 : vector<32x16xf32>, vector<32x16xf32> -> vector<64x16xf32>
    %c192_82 = arith.constant 192 : index
    %c0_83 = arith.constant 0 : index
    %244 = vector.load %arg2[%c192_82, %c0_83] : memref<296x128xf32, #tpu.memory_space<vmem>>, vector<16x128xf32>
    %245 = vector.extract_strided_slice %244 {offsets = [0, 64], sizes = [16, 32], strides = [1, 1]} : vector<16x128xf32> to vector<16x32xf32>
    %cst_84 = arith.constant dense<0.000000e+00> : vector<64x32xf32>
    %246 = tpu.matmul %243, %245, %cst_84 {dimension_numbers = #tpu.dot_dimension_numbers<[1], [0], [0], [1], [0, 0, 1, 1], [], []>} : vector<64x16xf32>, vector<16x32xf32>, vector<64x32xf32> -> vector<64x32xf32>
    %c285 = arith.constant 285 : index
    %c0_85 = arith.constant 0 : index
    %247 = vector.load %arg2[%c285, %c0_85] : memref<296x128xf32, #tpu.memory_space<vmem>>, vector<1x128xf32>
    %248 = vector.extract_strided_slice %247 {offsets = [0, 64], sizes = [1, 32], strides = [1, 1]} : vector<1x128xf32> to vector<1x32xf32>
    %249 = vector.broadcast %248 : vector<1x32xf32> to vector<64x32xf32>
    %250 = arith.addf %246, %249 : vector<64x32xf32>
    %251 = arith.addf %250, %202 : vector<64x32xf32>
    %c208 = arith.constant 208 : index
    %c0_86 = arith.constant 0 : index
    %252 = vector.load %arg2[%c208, %c0_86] : memref<296x128xf32, #tpu.memory_space<vmem>>, vector<32x128xf32>
    %253 = vector.extract_strided_slice %252 {offsets = [0, 64], sizes = [32, 32], strides = [1, 1]} : vector<32x128xf32> to vector<32x32xf32>
    %cst_87 = arith.constant dense<0.000000e+00> : vector<64x32xf32>
    %254 = tpu.matmul %251, %253, %cst_87 {dimension_numbers = #tpu.dot_dimension_numbers<[1], [0], [0], [1], [0, 0, 1, 1], [], []>} : vector<64x32xf32>, vector<32x32xf32>, vector<64x32xf32> -> vector<64x32xf32>
    %c286 = arith.constant 286 : index
    %c0_88 = arith.constant 0 : index
    %255 = vector.load %arg2[%c286, %c0_88] : memref<296x128xf32, #tpu.memory_space<vmem>>, vector<1x128xf32>
    %256 = vector.extract_strided_slice %255 {offsets = [0, 64], sizes = [1, 32], strides = [1, 1]} : vector<1x128xf32> to vector<1x32xf32>
    %257 = vector.broadcast %256 : vector<1x32xf32> to vector<64x32xf32>
    %258 = arith.addf %254, %257 : vector<64x32xf32>
    %cst_89 = arith.constant 0.000000e+00 : f32
    %259 = vector.broadcast %cst_89 : f32 to vector<64x32xf32>
    %260 = arith.maximumf %258, %259 : vector<64x32xf32>
    %c224 = arith.constant 224 : index
    %c0_90 = arith.constant 0 : index
    %261 = vector.load %arg2[%c224, %c0_90] : memref<296x128xf32, #tpu.memory_space<vmem>>, vector<32x128xf32>
    %262 = vector.extract_strided_slice %261 {offsets = [0, 0], sizes = [32, 32], strides = [1, 1]} : vector<32x128xf32> to vector<32x32xf32>
    %cst_91 = arith.constant dense<0.000000e+00> : vector<64x32xf32>
    %263 = tpu.matmul %260, %262, %cst_91 {dimension_numbers = #tpu.dot_dimension_numbers<[1], [0], [0], [1], [0, 0, 1, 1], [], []>} : vector<64x32xf32>, vector<32x32xf32>, vector<64x32xf32> -> vector<64x32xf32>
    %c287 = arith.constant 287 : index
    %c0_92 = arith.constant 0 : index
    %264 = vector.load %arg2[%c287, %c0_92] : memref<296x128xf32, #tpu.memory_space<vmem>>, vector<1x128xf32>
    %265 = vector.extract_strided_slice %264 {offsets = [0, 64], sizes = [1, 32], strides = [1, 1]} : vector<1x128xf32> to vector<1x32xf32>
    %266 = vector.broadcast %265 : vector<1x32xf32> to vector<64x32xf32>
    %267 = arith.addf %263, %266 : vector<64x32xf32>
    %268 = arith.addf %267, %251 : vector<64x32xf32>
    %c240 = arith.constant 240 : index
    %c0_93 = arith.constant 0 : index
    %269 = vector.load %arg2[%c240, %c0_93] : memref<296x128xf32, #tpu.memory_space<vmem>>, vector<16x128xf32>
    %270 = vector.extract_strided_slice %269 {offsets = [0, 64], sizes = [16, 16], strides = [1, 1]} : vector<16x128xf32> to vector<16x16xf32>
    %cst_94 = arith.constant dense<0.000000e+00> : vector<32x16xf32>
    %271 = tpu.matmul %0, %270, %cst_94 {dimension_numbers = #tpu.dot_dimension_numbers<[1], [0], [0], [1], [0, 0, 1, 1], [], []>} : vector<32x16xf32>, vector<16x16xf32>, vector<32x16xf32> -> vector<32x16xf32>
    %c288 = arith.constant 288 : index
    %c0_95 = arith.constant 0 : index
    %272 = vector.load %arg2[%c288, %c0_95] : memref<296x128xf32, #tpu.memory_space<vmem>>, vector<1x128xf32>
    %273 = vector.extract_strided_slice %272 {offsets = [0, 0], sizes = [1, 16], strides = [1, 1]} : vector<1x128xf32> to vector<1x16xf32>
    %274 = vector.broadcast %273 : vector<1x16xf32> to vector<32x16xf32>
    %275 = arith.addf %271, %274 : vector<32x16xf32>
    %c256 = arith.constant 256 : index
    %c0_96 = arith.constant 0 : index
    %276 = vector.load %arg2[%c256, %c0_96] : memref<296x128xf32, #tpu.memory_space<vmem>>, vector<32x128xf32>
    %277 = vector.extract_strided_slice %276 {offsets = [0, 0], sizes = [32, 32], strides = [1, 1]} : vector<32x128xf32> to vector<32x32xf32>
    %cst_97 = arith.constant dense<0.000000e+00> : vector<64x32xf32>
    %278 = tpu.matmul %268, %277, %cst_97 {dimension_numbers = #tpu.dot_dimension_numbers<[1], [0], [0], [1], [0, 0, 1, 1], [], []>} : vector<64x32xf32>, vector<32x32xf32>, vector<64x32xf32> -> vector<64x32xf32>
    %c288_98 = arith.constant 288 : index
    %c0_99 = arith.constant 0 : index
    %279 = vector.load %arg2[%c288_98, %c0_99] : memref<296x128xf32, #tpu.memory_space<vmem>>, vector<1x128xf32>
    %280 = vector.extract_strided_slice %279 {offsets = [0, 64], sizes = [1, 32], strides = [1, 1]} : vector<1x128xf32> to vector<1x32xf32>
    %281 = vector.broadcast %280 : vector<1x32xf32> to vector<64x32xf32>
    %282 = arith.addf %278, %281 : vector<64x32xf32>
    %283 = vector.extract_strided_slice %282 {offsets = [0, 0], sizes = [64, 16], strides = [1, 1]} : vector<64x32xf32> to vector<64x16xf32>
    %284 = vector.extract_strided_slice %282 {offsets = [0, 16], sizes = [64, 16], strides = [1, 1]} : vector<64x32xf32> to vector<64x16xf32>
    %285 = vector.extract_strided_slice %275 {offsets = [0, 0], sizes = [16, 16], strides = [1, 1]} : vector<32x16xf32> to vector<16x16xf32>
    %286 = vector.extract_strided_slice %283 {offsets = [0, 0], sizes = [32, 16], strides = [1, 1]} : vector<64x16xf32> to vector<32x16xf32>
    %287 = vector.extract_strided_slice %284 {offsets = [0, 0], sizes = [32, 16], strides = [1, 1]} : vector<64x16xf32> to vector<32x16xf32>
    %cst_100 = arith.constant dense<0.000000e+00> : vector<16x32xf32>
    %288 = tpu.matmul %285, %286, %cst_100 {dimension_numbers = #tpu.dot_dimension_numbers<[1], [1], [0], [0], [0, 0, 1, 0], [], []>} : vector<16x16xf32>, vector<32x16xf32>, vector<16x32xf32> -> vector<16x32xf32>
    %cst_101 = arith.constant dense<0xFF800000> : vector<16xf32>
    %289 = vector.multi_reduction <maximumf>, %288, %cst_101 [1] : vector<16x32xf32> to vector<16xf32>
    %290 = vector.shape_cast %289 : vector<16xf32> to vector<16x1xf32>
    %291 = vector.broadcast %290 : vector<16x1xf32> to vector<16x32xf32>
    %292 = arith.subf %288, %291 : vector<16x32xf32>
    %293 = math.exp %292 : vector<16x32xf32>
    %cst_102 = arith.constant dense<0.000000e+00> : vector<16xf32>
    %294 = vector.multi_reduction <add>, %293, %cst_102 [1] : vector<16x32xf32> to vector<16xf32>
    %295 = vector.shape_cast %294 : vector<16xf32> to vector<16x1xf32>
    %296 = tpu.reciprocal %295 {approx = true} : vector<16x1xf32> -> vector<16x1xf32>
    %297 = vector.broadcast %296 : vector<16x1xf32> to vector<16x32xf32>
    %298 = arith.mulf %293, %297 : vector<16x32xf32>
    %cst_103 = arith.constant dense<0.000000e+00> : vector<16x16xf32>
    %299 = tpu.matmul %298, %287, %cst_103 {dimension_numbers = #tpu.dot_dimension_numbers<[1], [0], [0], [1], [0, 0, 1, 1], [], []>} : vector<16x32xf32>, vector<32x16xf32>, vector<16x16xf32> -> vector<16x16xf32>
    %300 = vector.extract_strided_slice %275 {offsets = [16, 0], sizes = [16, 16], strides = [1, 1]} : vector<32x16xf32> to vector<16x16xf32>
    %301 = vector.extract_strided_slice %283 {offsets = [32, 0], sizes = [32, 16], strides = [1, 1]} : vector<64x16xf32> to vector<32x16xf32>
    %302 = vector.extract_strided_slice %284 {offsets = [32, 0], sizes = [32, 16], strides = [1, 1]} : vector<64x16xf32> to vector<32x16xf32>
    %cst_104 = arith.constant dense<0.000000e+00> : vector<16x32xf32>
    %303 = tpu.matmul %300, %301, %cst_104 {dimension_numbers = #tpu.dot_dimension_numbers<[1], [1], [0], [0], [0, 0, 1, 0], [], []>} : vector<16x16xf32>, vector<32x16xf32>, vector<16x32xf32> -> vector<16x32xf32>
    %cst_105 = arith.constant dense<0xFF800000> : vector<16xf32>
    %304 = vector.multi_reduction <maximumf>, %303, %cst_105 [1] : vector<16x32xf32> to vector<16xf32>
    %305 = vector.shape_cast %304 : vector<16xf32> to vector<16x1xf32>
    %306 = vector.broadcast %305 : vector<16x1xf32> to vector<16x32xf32>
    %307 = arith.subf %303, %306 : vector<16x32xf32>
    %308 = math.exp %307 : vector<16x32xf32>
    %cst_106 = arith.constant dense<0.000000e+00> : vector<16xf32>
    %309 = vector.multi_reduction <add>, %308, %cst_106 [1] : vector<16x32xf32> to vector<16xf32>
    %310 = vector.shape_cast %309 : vector<16xf32> to vector<16x1xf32>
    %311 = tpu.reciprocal %310 {approx = true} : vector<16x1xf32> -> vector<16x1xf32>
    %312 = vector.broadcast %311 : vector<16x1xf32> to vector<16x32xf32>
    %313 = arith.mulf %308, %312 : vector<16x32xf32>
    %cst_107 = arith.constant dense<0.000000e+00> : vector<16x16xf32>
    %314 = tpu.matmul %313, %302, %cst_107 {dimension_numbers = #tpu.dot_dimension_numbers<[1], [0], [0], [1], [0, 0, 1, 1], [], []>} : vector<16x32xf32>, vector<32x16xf32>, vector<16x16xf32> -> vector<16x16xf32>
    %315 = tpu.concatenate %299, %314 in 0 : vector<16x16xf32>, vector<16x16xf32> -> vector<32x16xf32>
    %c256_108 = arith.constant 256 : index
    %c0_109 = arith.constant 0 : index
    %316 = vector.load %arg2[%c256_108, %c0_109] : memref<296x128xf32, #tpu.memory_space<vmem>>, vector<16x128xf32>
    %317 = vector.extract_strided_slice %316 {offsets = [0, 64], sizes = [16, 16], strides = [1, 1]} : vector<16x128xf32> to vector<16x16xf32>
    %cst_110 = arith.constant dense<0.000000e+00> : vector<32x16xf32>
    %318 = tpu.matmul %315, %317, %cst_110 {dimension_numbers = #tpu.dot_dimension_numbers<[1], [0], [0], [1], [0, 0, 1, 1], [], []>} : vector<32x16xf32>, vector<16x16xf32>, vector<32x16xf32> -> vector<32x16xf32>
    %c289 = arith.constant 289 : index
    %c0_111 = arith.constant 0 : index
    %319 = vector.load %arg2[%c289, %c0_111] : memref<296x128xf32, #tpu.memory_space<vmem>>, vector<1x128xf32>
    %320 = vector.extract_strided_slice %319 {offsets = [0, 0], sizes = [1, 16], strides = [1, 1]} : vector<1x128xf32> to vector<1x16xf32>
    %321 = vector.broadcast %320 : vector<1x16xf32> to vector<32x16xf32>
    %322 = arith.addf %318, %321 : vector<32x16xf32>
    %323 = arith.addf %322, %0 : vector<32x16xf32>
    %c0_112 = arith.constant 0 : index
    %c0_113 = arith.constant 0 : index
    %324 = vector.load %arg3[%c0_112, %c0_113] : memref<32x16xf32, #tpu.memory_space<vmem>>, vector<32x16xf32>
    tpu.vector_store %arg3[%c0_112, %c0_113], %323 {strides = array<i32>} : memref<32x16xf32, #tpu.memory_space<vmem>>, vector<32x16xf32>,
    return
  }
  func.func @transform_0(%arg0: i32) -> (i32, i32) {
    %c0_i32 = arith.constant 0 : i32
    %c0_i32_0 = arith.constant 0 : i32
    %c0_i32_1 = arith.constant 0 : i32
    return %c0_i32, %c0_i32_0 : i32, i32
  }
  func.func @transform_1(%arg0: i32) -> (i32, i32) {
    %c0_i32 = arith.constant 0 : i32
    %c0_i32_0 = arith.constant 0 : i32
    %c0_i32_1 = arith.constant 0 : i32
    return %c0_i32, %c0_i32_0 : i32, i32
  }
  func.func @transform_2(%arg0: i32) -> (i32, i32) {
    %c0_i32 = arith.constant 0 : i32
    %c0_i32_0 = arith.constant 0 : i32
    %c0_i32_1 = arith.constant 0 : i32
    return %c0_i32, %c0_i32_0 : i32, i32
  }
}

</mosaic_0001>

<llo_original>
// kernel: tpu_custom_call.1
$region0: #{tpu_custom_call.1}
  #allocation0 [shape = 'u32[]', space=smem, size = 0x4, offset = 0x4, fixed_abs, tag = 'smem constant byte address 0x4 - core index']
  #allocation1 [shape = 'u32[144,128]{1,0:T(1,128)}', space=vmem, size = 0x12000, scoped, tag = 'internal scratch']
  %s0 = inlined_call_operand.vmem [shape: f32[32,16], index: 0, kind: input, shape index: {}]
  %s1 = inlined_call_operand.hbm [shape: f32[296,128], index: 1, kind: input, shape index: {}]
  %s2 = inlined_call_operand.vmem [shape: f32[32,16], index: 2, kind: output, shape index: {}]
  %s3 = sld [smem:[#allocation0]]
  $region22: #{tpu_custom_call.1} parent=0
    _
  %s5 = ssub.s32 1, %s3
  %s6 = scalar_select 0, %s5, %s3
  $region1: #{tpu_custom_call.1} parent=0
    #allocation2 [shape = 'u8[151552]{0}', space=vmem, size = 0x25000, scoped, tag = 'input window, operand 1, single buffered']
    #allocation3 [shape = 's32[1]{0}', space=sflag, size = 0x4, scoped, tag = 'scoped memory for tpu_custom_call.1']
    %7 = vsyncpa [#allocation3], 0
    // Predicated region
    $region2: #{tpu_custom_call.1} parent=1 // pred_check
      _
    $region3: #{tpu_custom_call.1} parent=1 // pred_check_branch
      %9 = sbr.rel (0) target = $region5
    $region4: #{tpu_custom_call.1} parent=1 // pred_region
      _
    $region5: #{tpu_custom_call.1} parent=1 // pred_fallthru
      _
    // Predicated region
    $region6: #{tpu_custom_call.1} parent=1 // pred_check
      _
    $region7: #{tpu_custom_call.1} parent=1 // pred_check_branch
      %11 = sbr.rel (0) target = $region9
    $region8: #{tpu_custom_call.1} parent=1 // pred_region
      %s13 = ssub.s32 4736, 4736
      %14 = vsyncadd [#allocation3], %s13
      %s15 = sshll.u32 [#allocation2], 4
      %s16 = int_to_ptr.vmem [resolvable:$true] %s15
      %21 = dma.hbm_to_vmem [thread:$0]  %s1, 4736, %s16, [#allocation3], 128, 128, 8
    $region9: #{tpu_custom_call.1} parent=1 // pred_fallthru
      _
    // Predicated region
    $region10: #{tpu_custom_call.1} parent=1 // pred_check
      _
    $region11: #{tpu_custom_call.1} parent=1 // pred_check_branch
      %23 = sbr.rel (0) target = $region13
    $region12: #{tpu_custom_call.1} parent=1 // pred_region
      %24 = dma.done [#allocation3], 4736
    $region13: #{tpu_custom_call.1} parent=1 // pred_fallthru
      _
    %v25 = vld [vmem:[%s0] sm:$0xff]
    %v26 = vld [vmem:[%s0 + $0x8] sm:$0xff]
    %v27 = vld [vmem:[%s0 + $0x10] sm:$0xff]
    %v28 = vld [vmem:[%s0 + $0x18] sm:$0xff]
    %v29 = vld [vmem:[#allocation2 + $0x20] sm:$0xff]
    %v30 = vld [vmem:[#allocation2 + $0x28] sm:$0xff]
    %v31 = vld [vmem:[#allocation2 + $0x110] sm:$0x1]
    %v32 = vlaneseq
    %v33 = vshrl.u32 %v32, 7
    %v34 = vsub.s32 0, %v33
    %v35 = vrot.slane %v31, %v34
    %37 = vrot.lane.b32.xlu0 %v35, 64
    %v38 = vpop.permute.xlu0 %37
    %vm40 = vcmask 130048
    %v42 = vsel %vm40, %v25, 0
    %v45 = vsel %vm40, %v26, 0
    %v48 = vsel %vm40, %v27, 0
    %v51 = vsel %vm40, %v28, 0
    %53 = vmatprep.subr.mxu0 0.0
    %54 = vmatpush1.msra.mxu0 %v29
    %55 = vmatprep.subr.mxu0 0.0
    %56 = vmatpush1.msra.mxu0 %v30
    %57 = vmatprep.subr.mxu0 0.0
    %58 = vmatpush1.msra.mxu0 0.0
    %59 = vmatprep.subr.mxu0 0.0
    %60 = vmatpush1.msra.mxu0 0.0
    %61 = vmatprep.subr.mxu0 0.0
    %62 = vmatpush1.msra.mxu0 0.0
    %63 = vmatprep.subr.mxu0 0.0
    %64 = vmatpush1.msra.mxu0 0.0
    %65 = vmatprep.subr.mxu0 0.0
    %66 = vmatpush1.msra.mxu0 0.0
    %67 = vmatprep.subr.mxu0 0.0
    %68 = vmatpush1.msra.mxu0 0.0
    %69 = vmatprep.subr.mxu0 0.0
    %70 = vmatpush1.msra.mxu0 0.0
    %71 = vmatprep.subr.mxu0 0.0
    %72 = vmatpush1.msra.mxu0 0.0
    %73 = vmatprep.subr.mxu0 0.0
    %74 = vmatpush1.msra.mxu0 0.0
    %75 = vmatprep.subr.mxu0 0.0
    %76 = vmatpush1.msra.mxu0 0.0
    %77 = vmatprep.subr.mxu0 0.0
    %78 = vmatpush1.msra.mxu0 0.0
    %79 = vmatprep.subr.mxu0 0.0
    %80 = vmatpush1.msra.mxu0 0.0
    %81 = vmatprep.subr.mxu0 0.0
    %82 = vmatpush1.msra.mxu0 0.0
    %83 = vmatprep.subr.mxu0 0.0
    %84 = vmatpush1.msra.mxu0 0.0
    %85 = vmatprep.subr.mxu0 0.0
    %86 = vmatpush1.msra.mxu0 0.0
    %87 = vmatprep.subr.mxu0 0.0
    %88 = vmatpush1.msra.mxu0 0.0
    %89 = vmatprep.subr.mxu0 0.0
    %90 = vmatpush1.msra.mxu0 0.0
    %91 = vmatprep.subr.mxu0 0.0
    %92 = vmatpush1.msra.mxu0 0.0
    %93 = vmatprep.subr.mxu0 0.0
    %94 = vmatpush1.msra.mxu0 0.0
    %95 = vmatprep.subr.mxu0 0.0
    %96 = vmatpush1.msra.mxu0 0.0
    %97 = vmatprep.subr.mxu0 0.0
    %98 = vmatpush1.msra.mxu0 0.0
    %99 = vmatprep.subr.mxu0 0.0
    %100 = vmatpush1.msra.mxu0 0.0
    %101 = vmatprep.subr.mxu0 0.0
    %102 = vmatpush1.msra.mxu0 0.0
    %103 = vmatprep.subr.mxu0 0.0
    %104 = vmatpush1.msra.mxu0 0.0
    %105 = vmatprep.subr.mxu0 0.0
    %106 = vmatpush1.msra.mxu0 0.0
    %107 = vmatprep.subr.mxu0 0.0
    %108 = vmatpush1.msra.mxu0 0.0
    %109 = vmatprep.subr.mxu0 0.0
    %110 = vmatpush1.msra.mxu0 0.0
    %111 = vmatprep.subr.mxu0 0.0
    %112 = vmatpush1.msra.mxu0 0.0
    %113 = vmatprep.subr.mxu0 0.0
    %114 = vmatpush1.msra.mxu0 0.0
    %115 = vmatprep.subr.mxu0 0.0
    %116 = vmatpush1.msra.mxu0 0.0
    %117 = vmatprep.mubr.f32.mxu0 0.0
    %118 = vmatmul.mubr.f32.gmra.mrb[0].mxu0 %v42
    %v119 = vpop.f32.mrb[0].mxu0
    %v120 = vadd.f32 %v38, %v119
    %v121 = vpop.f32.mrb[0].mxu0
    %122 = vmatprep.mubr.f32.mxu0 0.0
    %123 = vmatmul.mubr.f32.gmra.mrb[0].mxu0 %v45
    %v124 = vpop.f32.mrb[0].mxu0
    %v125 = vadd.f32 %v38, %v124
    %v126 = vpop.f32.mrb[0].mxu0
    %127 = vmatprep.mubr.f32.mxu0 0.0
    %128 = vmatmul.mubr.f32.gmra.mrb[0].mxu0 %v48
    %v129 = vpop.f32.mrb[0].mxu0
    %v130 = vadd.f32 %v38, %v129
    %v131 = vpop.f32.mrb[0].mxu0
    %132 = vmatprep.mubr.f32.mxu0 0.0
    %133 = vmatmul.mubr.f32.gmra.mrb[0].mxu0 %v51
    %v134 = vpop.f32.mrb[0].mxu0
    %v135 = vadd.f32 %v38, %v134
    %v136 = vpop.f32.mrb[0].mxu0
    %137 = vdwg.mxu0
    %v138 = vld [vmem:[#allocation2] sm:$0xff]
    %v139 = vld [vmem:[#allocation2 + $0x8] sm:$0xff]
    %v140 = vld [vmem:[#allocation2 + $0x10] sm:$0xff]
    %v141 = vld [vmem:[#allocation2 + $0x18] sm:$0xff]
    %146 = vrot.lane.b32.xlu0 %v138, 64
    %v147 = vpop.permute.xlu0 %146
    %148 = vrot.lane.b32.xlu0 %v139, 64
    %v149 = vpop.permute.xlu0 %148
    %150 = vrot.lane.b32.xlu0 %v140, 64
    %v151 = vpop.permute.xlu0 %150
    %152 = vrot.lane.b32.xlu0 %v141, 64
    %v153 = vpop.permute.xlu0 %152
    %v154 = vsel %vm40, %v147, 0
    %v156 = vsel %vm40, %v149, 0
    %v158 = vsel %vm40, %v151, 0
    %v160 = vsel %vm40, %v153, 0
    %v163 = vsel %vm40, %v120, 0
    %v166 = vsel %vm40, %v125, 0
    %168 = vmatprep.subr.mxu0 0.0
    %169 = vmatpush1.xpose.msra.mxu0 %v163
    %170 = vmatprep.subr.mxu0 0.0
    %171 = vmatpush1.xpose.msra.mxu0 %v166
    %172 = vmatprep.subr.mxu0 0.0
    %173 = vmatpush1.xpose.msra.mxu0 0.0
    %174 = vmatprep.subr.mxu0 0.0
    %175 = vmatpush1.xpose.msra.mxu0 0.0
    %176 = vmatprep.subr.mxu0 0.0
    %177 = vmatpush1.xpose.msra.mxu0 0.0
    %178 = vmatprep.subr.mxu0 0.0
    %179 = vmatpush1.xpose.msra.mxu0 0.0
    %180 = vmatprep.subr.mxu0 0.0
    %181 = vmatpush1.xpose.msra.mxu0 0.0
    %182 = vmatprep.subr.mxu0 0.0
    %183 = vmatpush1.xpose.msra.mxu0 0.0
    %184 = vmatprep.subr.mxu0 0.0
    %185 = vmatpush1.xpose.msra.mxu0 0.0
    %186 = vmatprep.subr.mxu0 0.0
    %187 = vmatpush1.xpose.msra.mxu0 0.0
    %188 = vmatprep.subr.mxu0 0.0
    %189 = vmatpush1.xpose.msra.mxu0 0.0
    %190 = vmatprep.subr.mxu0 0.0
    %191 = vmatpush1.xpose.msra.mxu0 0.0
    %192 = vmatprep.subr.mxu0 0.0
    %193 = vmatpush1.xpose.msra.mxu0 0.0
    %194 = vmatprep.subr.mxu0 0.0
    %195 = vmatpush1.xpose.msra.mxu0 0.0
    %196 = vmatprep.subr.mxu0 0.0
    %197 = vmatpush1.xpose.msra.mxu0 0.0
    %198 = vmatprep.subr.mxu0 0.0
    %199 = vmatpush1.xpose.msra.mxu0 0.0
    %200 = vmatprep.subr.mxu0 0.0
    %201 = vmatpush1.xpose.msra.mxu0 0.0
    %202 = vmatprep.subr.mxu0 0.0
    %203 = vmatpush1.xpose.msra.mxu0 0.0
    %204 = vmatprep.subr.mxu0 0.0
    %205 = vmatpush1.xpose.msra.mxu0 0.0
    %206 = vmatprep.subr.mxu0 0.0
    %207 = vmatpush1.xpose.msra.mxu0 0.0
    %208 = vmatprep.subr.mxu0 0.0
    %209 = vmatpush1.xpose.msra.mxu0 0.0
    %210 = vmatprep.subr.mxu0 0.0
    %211 = vmatpush1.xpose.msra.mxu0 0.0
    %212 = vmatprep.subr.mxu0 0.0
    %213 = vmatpush1.xpose.msra.mxu0 0.0
    %214 = vmatprep.subr.mxu0 0.0
    %215 = vmatpush1.xpose.msra.mxu0 0.0
    %216 = vmatprep.subr.mxu0 0.0
    %217 = vmatpush1.xpose.msra.mxu0 0.0
    %218 = vmatprep.subr.mxu0 0.0
    %219 = vmatpush1.xpose.msra.mxu0 0.0
    %220 = vmatprep.subr.mxu0 0.0
    %221 = vmatpush1.xpose.msra.mxu0 0.0
    %222 = vmatprep.subr.mxu0 0.0
    %223 = vmatpush1.xpose.msra.mxu0 0.0
    %224 = vmatprep.subr.mxu0 0.0
    %225 = vmatpush1.xpose.msra.mxu0 0.0
    %226 = vmatprep.subr.mxu0 0.0
    %227 = vmatpush1.xpose.msra.mxu0 0.0
    %228 = vmatprep.subr.mxu0 0.0
    %229 = vmatpush1.xpose.msra.mxu0 0.0
    %230 = vmatprep.subr.mxu0 0.0
    %231 = vmatpush1.xpose.msra.mxu0 0.0
    %232 = vmatprep.mubr.f32.mxu0 0.0
    %233 = vmatmul.mubr.f32.gmra.mrb[0].mxu0 %v154
    %v234 = vpop.f32.mrb[0].mxu0
    %v235 = vadd.f32 0.0, %v234
    %v236 = vpop.f32.mrb[0].mxu0
    %237 = vmatprep.mubr.f32.mxu0 0.0
    %238 = vmatmul.mubr.f32.gmra.mrb[0].mxu0 %v156
    %v239 = vpop.f32.mrb[0].mxu0
    %v240 = vadd.f32 0.0, %v239
    %v241 = vpop.f32.mrb[0].mxu0
    %242 = vmatprep.mubr.f32.mxu0 0.0
    %243 = vmatmul.mubr.f32.gmra.mrb[0].mxu0 %v158
    %v244 = vpop.f32.mrb[0].mxu0
    %v245 = vadd.f32 0.0, %v244
    %v246 = vpop.f32.mrb[0].mxu0
    %247 = vmatprep.mubr.f32.mxu0 0.0
    %248 = vmatmul.mubr.f32.gmra.mrb[0].mxu0 %v160
    %v249 = vpop.f32.mrb[0].mxu0
    %v250 = vadd.f32 0.0, %v249
    %v251 = vpop.f32.mrb[0].mxu0
    %252 = vdwg.mxu0
    %v253 = vsel %vm40, %v235, -inf
    %254 = vmax.xlane.f32.xlu0 %v253
    %v255 = vpop.xlane.xlu0 %254
    %v256 = vsel %vm40, %v240, -inf
    %257 = vmax.xlane.f32.xlu0 %v256
    %v258 = vpop.xlane.xlu0 %257
    %v259 = vsel %vm40, %v245, -inf
    %260 = vmax.xlane.f32.xlu0 %v259
    %v261 = vpop.xlane.xlu0 %260
    %v262 = vsel %vm40, %v250, -inf
    %263 = vmax.xlane.f32.xlu0 %v262
    %v264 = vpop.xlane.xlu0 %263
    %v265 = vsub.f32 %v235, %v255
    %v266 = vsub.f32 %v240, %v258
    %v267 = vsub.f32 %v245, %v261
    %v268 = vsub.f32 %v250, %v264
    %v269 = vmul.f32 %v265, 1.442695
    %v270 = vpow.pop %v269
    %v271 = vmul.f32 %v266, 1.442695
    %v272 = vpow.pop %v271
    %v273 = vmul.f32 %v267, 1.442695
    %v274 = vpow.pop %v273
    %v275 = vmul.f32 %v268, 1.442695
    %v276 = vpow.pop %v275
    %v277 = vsel %vm40, %v270, 0.0
    %278 = vadd.xlane.f32.xlu0 %v277
    %v279 = vpop.xlane.xlu0 %278
    %v280 = vsel %vm40, %v272, 0.0
    %281 = vadd.xlane.f32.xlu0 %v280
    %v282 = vpop.xlane.xlu0 %281
    %v283 = vsel %vm40, %v274, 0.0
    %284 = vadd.xlane.f32.xlu0 %v283
    %v285 = vpop.xlane.xlu0 %284
    %v286 = vsel %vm40, %v276, 0.0
    %287 = vadd.xlane.f32.xlu0 %v286
    %v288 = vpop.xlane.xlu0 %287
    %v289 = vrcp.pop %v279
    %v290 = vrcp.pop %v282
    %v291 = vrcp.pop %v285
    %v292 = vrcp.pop %v288
    %v293 = vmul.f32 %v270, %v289
    %v294 = vmul.f32 %v272, %v290
    %v295 = vmul.f32 %v274, %v291
    %v296 = vmul.f32 %v276, %v292
    %297 = vrot.lane.b32.xlu0 %v120, 112
    %v298 = vpop.permute.xlu0 %297
    %299 = vrot.lane.b32.xlu0 %v125, 112
    %v300 = vpop.permute.xlu0 %299
    %v304 = vsel %vm40, %v293, 0
    %v307 = vsel %vm40, %v294, 0
    %v310 = vsel %vm40, %v295, 0
    %v313 = vsel %vm40, %v296, 0
    %315 = vmatprep.subr.mxu0 0.0
    %316 = vmatpush1.msra.mxu0 %v298
    %317 = vmatprep.subr.mxu0 0.0
    %318 = vmatpush1.msra.mxu0 %v300
    %319 = vmatprep.subr.mxu0 0.0
    %320 = vmatpush1.msra.mxu0 0.0
    %321 = vmatprep.subr.mxu0 0.0
    %322 = vmatpush1.msra.mxu0 0.0
    %323 = vmatprep.subr.mxu0 0.0
    %324 = vmatpush1.msra.mxu0 0.0
    %325 = vmatprep.subr.mxu0 0.0
    %326 = vmatpush1.msra.mxu0 0.0
    %327 = vmatprep.subr.mxu0 0.0
    %328 = vmatpush1.msra.mxu0 0.0
    %329 = vmatprep.subr.mxu0 0.0
    %330 = vmatpush1.msra.mxu0 0.0
    %331 = vmatprep.subr.mxu0 0.0
    %332 = vmatpush1.msra.mxu0 0.0
    %333 = vmatprep.subr.mxu0 0.0
    %334 = vmatpush1.msra.mxu0 0.0
    %335 = vmatprep.subr.mxu0 0.0
    %336 = vmatpush1.msra.mxu0 0.0
    %337 = vmatprep.subr.mxu0 0.0
    %338 = vmatpush1.msra.mxu0 0.0
    %339 = vmatprep.subr.mxu0 0.0
    %340 = vmatpush1.msra.mxu0 0.0
    %341 = vmatprep.subr.mxu0 0.0
    %342 = vmatpush1.msra.mxu0 0.0
    %343 = vmatprep.subr.mxu0 0.0
    %344 = vmatpush1.msra.mxu0 0.0
    %345 = vmatprep.subr.mxu0 0.0
    %346 = vmatpush1.msra.mxu0 0.0
    %347 = vmatprep.subr.mxu0 0.0
    %348 = vmatpush1.msra.mxu0 0.0
    %349 = vmatprep.subr.mxu0 0.0
    %350 = vmatpush1.msra.mxu0 0.0
    %351 = vmatprep.subr.mxu0 0.0
    %352 = vmatpush1.msra.mxu0 0.0
    %353 = vmatprep.subr.mxu0 0.0
    %354 = vmatpush1.msra.mxu0 0.0
    %355 = vmatprep.subr.mxu0 0.0
    %356 = vmatpush1.msra.mxu0 0.0
    %357 = vmatprep.subr.mxu0 0.0
    %358 = vmatpush1.msra.mxu0 0.0
    %359 = vmatprep.subr.mxu0 0.0
    %360 = vmatpush1.msra.mxu0 0.0
    %361 = vmatprep.subr.mxu0 0.0
    %362 = vmatpush1.msra.mxu0 0.0
    %363 = vmatprep.subr.mxu0 0.0
    %364 = vmatpush1.msra.mxu0 0.0
    %365 = vmatprep.subr.mxu0 0.0
    %366 = vmatpush1.msra.mxu0 0.0
    %367 = vmatprep.subr.mxu0 0.0
    %368 = vmatpush1.msra.mxu0 0.0
    %369 = vmatprep.subr.mxu0 0.0
    %370 = vmatpush1.msra.mxu0 0.0
    %371 = vmatprep.subr.mxu0 0.0
    %372 = vmatpush1.msra.mxu0 0.0
    %373 = vmatprep.subr.mxu0 0.0
    %374 = vmatpush1.msra.mxu0 0.0
    %375 = vmatprep.subr.mxu0 0.0
    %376 = vmatpush1.msra.mxu0 0.0
    %377 = vmatprep.subr.mxu0 0.0
    %378 = vmatpush1.msra.mxu0 0.0
    %379 = vmatprep.mubr.f32.mxu0 0.0
    %380 = vmatmul.mubr.f32.gmra.mrb[0].mxu0 %v304
    %v381 = vpop.f32.mrb[0].mxu0
    %v382 = vadd.f32 0.0, %v381
    %v383 = vpop.f32.mrb[0].mxu0
    %384 = vmatprep.mubr.f32.mxu0 0.0
    %385 = vmatmul.mubr.f32.gmra.mrb[0].mxu0 %v307
    %v386 = vpop.f32.mrb[0].mxu0
    %v387 = vadd.f32 0.0, %v386
    %v388 = vpop.f32.mrb[0].mxu0
    %389 = vmatprep.mubr.f32.mxu0 0.0
    %390 = vmatmul.mubr.f32.gmra.mrb[0].mxu0 %v310
    %v391 = vpop.f32.mrb[0].mxu0
    %v392 = vadd.f32 0.0, %v391
    %v393 = vpop.f32.mrb[0].mxu0
    %394 = vmatprep.mubr.f32.mxu0 0.0
    %395 = vmatmul.mubr.f32.gmra.mrb[0].mxu0 %v313
    %v396 = vpop.f32.mrb[0].mxu0
    %v397 = vadd.f32 0.0, %v396
    %v398 = vpop.f32.mrb[0].mxu0
    %399 = vdwg.mxu0
    %v401 = vsel %vm40, %v130, 0
    %v404 = vsel %vm40, %v135, 0
    %406 = vmatprep.subr.mxu0 0.0
    %407 = vmatpush1.xpose.msra.mxu0 %v401
    %408 = vmatprep.subr.mxu0 0.0
    %409 = vmatpush1.xpose.msra.mxu0 %v404
    %410 = vmatprep.subr.mxu0 0.0
    %411 = vmatpush1.xpose.msra.mxu0 0.0
    %412 = vmatprep.subr.mxu0 0.0
    %413 = vmatpush1.xpose.msra.mxu0 0.0
    %414 = vmatprep.subr.mxu0 0.0
    %415 = vmatpush1.xpose.msra.mxu0 0.0
    %416 = vmatprep.subr.mxu0 0.0
    %417 = vmatpush1.xpose.msra.mxu0 0.0
    %418 = vmatprep.subr.mxu0 0.0
    %419 = vmatpush1.xpose.msra.mxu0 0.0
    %420 = vmatprep.subr.mxu0 0.0
    %421 = vmatpush1.xpose.msra.mxu0 0.0
    %422 = vmatprep.subr.mxu0 0.0
    %423 = vmatpush1.xpose.msra.mxu0 0.0
    %424 = vmatprep.subr.mxu0 0.0
    %425 = vmatpush1.xpose.msra.mxu0 0.0
    %426 = vmatprep.subr.mxu0 0.0
    %427 = vmatpush1.xpose.msra.mxu0 0.0
    %428 = vmatprep.subr.mxu0 0.0
    %429 = vmatpush1.xpose.msra.mxu0 0.0
    %430 = vmatprep.subr.mxu0 0.0
    %431 = vmatpush1.xpose.msra.mxu0 0.0
    %432 = vmatprep.subr.mxu0 0.0
    %433 = vmatpush1.xpose.msra.mxu0 0.0
    %434 = vmatprep.subr.mxu0 0.0
    %435 = vmatpush1.xpose.msra.mxu0 0.0
    %436 = vmatprep.subr.mxu0 0.0
    %437 = vmatpush1.xpose.msra.mxu0 0.0
    %438 = vmatprep.subr.mxu0 0.0
    %439 = vmatpush1.xpose.msra.mxu0 0.0
    %440 = vmatprep.subr.mxu0 0.0
    %441 = vmatpush1.xpose.msra.mxu0 0.0
    %442 = vmatprep.subr.mxu0 0.0
    %443 = vmatpush1.xpose.msra.mxu0 0.0
    %444 = vmatprep.subr.mxu0 0.0
    %445 = vmatpush1.xpose.msra.mxu0 0.0
    %446 = vmatprep.subr.mxu0 0.0
    %447 = vmatpush1.xpose.msra.mxu0 0.0
    %448 = vmatprep.subr.mxu0 0.0
    %449 = vmatpush1.xpose.msra.mxu0 0.0
    %450 = vmatprep.subr.mxu0 0.0
    %451 = vmatpush1.xpose.msra.mxu0 0.0
    %452 = vmatprep.subr.mxu0 0.0
    %453 = vmatpush1.xpose.msra.mxu0 0.0
    %454 = vmatprep.subr.mxu0 0.0
    %455 = vmatpush1.xpose.msra.mxu0 0.0
    %456 = vmatprep.subr.mxu0 0.0
    %457 = vmatpush1.xpose.msra.mxu0 0.0
    %458 = vmatprep.subr.mxu0 0.0
    %459 = vmatpush1.xpose.msra.mxu0 0.0
    %460 = vmatprep.subr.mxu0 0.0
    %461 = vmatpush1.xpose.msra.mxu0 0.0
    %462 = vmatprep.subr.mxu0 0.0
    %463 = vmatpush1.xpose.msra.mxu0 0.0
    %464 = vmatprep.subr.mxu0 0.0
    %465 = vmatpush1.xpose.msra.mxu0 0.0
    %466 = vmatprep.subr.mxu0 0.0
    %467 = vmatpush1.xpose.msra.mxu0 0.0
    %468 = vmatprep.subr.mxu0 0.0
    %469 = vmatpush1.xpose.msra.mxu0 0.0
    %470 = vmatprep.mubr.f32.mxu0 0.0
    %471 = vmatmul.mubr.f32.gmra.mrb[0].mxu0 %v154
    %v472 = vpop.f32.mrb[0].mxu0
    %v473 = vadd.f32 0.0, %v472
    %v474 = vpop.f32.mrb[0].mxu0
    %475 = vmatprep.mubr.f32.mxu0 0.0
    %476 = vmatmul.mubr.f32.gmra.mrb[0].mxu0 %v156
    %v477 = vpop.f32.mrb[0].mxu0
    %v478 = vadd.f32 0.0, %v477
    %v479 = vpop.f32.mrb[0].mxu0
    %480 = vmatprep.mubr.f32.mxu0 0.0
    %481 = vmatmul.mubr.f32.gmra.mrb[0].mxu0 %v158
    %v482 = vpop.f32.mrb[0].mxu0
    %v483 = vadd.f32 0.0, %v482
    %v484 = vpop.f32.mrb[0].mxu0
    %485 = vmatprep.mubr.f32.mxu0 0.0
    %486 = vmatmul.mubr.f32.gmra.mrb[0].mxu0 %v160
    %v487 = vpop.f32.mrb[0].mxu0
    %v488 = vadd.f32 0.0, %v487
    %v489 = vpop.f32.mrb[0].mxu0
    %490 = vdwg.mxu0
    %v491 = vsel %vm40, %v473, -inf
    %492 = vmax.xlane.f32.xlu0 %v491
    %v493 = vpop.xlane.xlu0 %492
    %v494 = vsel %vm40, %v478, -inf
    %495 = vmax.xlane.f32.xlu0 %v494
    %v496 = vpop.xlane.xlu0 %495
    %v497 = vsel %vm40, %v483, -inf
    %498 = vmax.xlane.f32.xlu0 %v497
    %v499 = vpop.xlane.xlu0 %498
    %v500 = vsel %vm40, %v488, -inf
    %501 = vmax.xlane.f32.xlu0 %v500
    %v502 = vpop.xlane.xlu0 %501
    %v503 = vsub.f32 %v473, %v493
    %v504 = vsub.f32 %v478, %v496
    %v505 = vsub.f32 %v483, %v499
    %v506 = vsub.f32 %v488, %v502
    %v507 = vmul.f32 %v503, 1.442695
    %v508 = vpow.pop %v507
    %v509 = vmul.f32 %v504, 1.442695
    %v510 = vpow.pop %v509
    %v511 = vmul.f32 %v505, 1.442695
    %v512 = vpow.pop %v511
    %v513 = vmul.f32 %v506, 1.442695
    %v514 = vpow.pop %v513
    %v515 = vsel %vm40, %v508, 0.0
    %516 = vadd.xlane.f32.xlu0 %v515
    %v517 = vpop.xlane.xlu0 %516
    %v518 = vsel %vm40, %v510, 0.0
    %519 = vadd.xlane.f32.xlu0 %v518
    %v520 = vpop.xlane.xlu0 %519
    %v521 = vsel %vm40, %v512, 0.0
    %522 = vadd.xlane.f32.xlu0 %v521
    %v523 = vpop.xlane.xlu0 %522
    %v524 = vsel %vm40, %v514, 0.0
    %525 = vadd.xlane.f32.xlu0 %v524
    %v526 = vpop.xlane.xlu0 %525
    %v527 = vrcp.pop %v517
    %v528 = vrcp.pop %v520
    %v529 = vrcp.pop %v523
    %v530 = vrcp.pop %v526
    %v531 = vmul.f32 %v508, %v527
    %v532 = vmul.f32 %v510, %v528
    %v533 = vmul.f32 %v512, %v529
    %v534 = vmul.f32 %v514, %v530
    %535 = vrot.lane.b32.xlu0 %v130, 112
    %v536 = vpop.permute.xlu0 %535
    %537 = vrot.lane.b32.xlu0 %v135, 112
    %v538 = vpop.permute.xlu0 %537
    %v542 = vsel %vm40, %v531, 0
    %v545 = vsel %vm40, %v532, 0
    %v548 = vsel %vm40, %v533, 0
    %v551 = vsel %vm40, %v534, 0
    %553 = vmatprep.subr.mxu0 0.0
    %554 = vmatpush1.msra.mxu0 %v536
    %555 = vmatprep.subr.mxu0 0.0
    %556 = vmatpush1.msra.mxu0 %v538
    %557 = vmatprep.subr.mxu0 0.0
    %558 = vmatpush1.msra.mxu0 0.0
    %559 = vmatprep.subr.mxu0 0.0
    %560 = vmatpush1.msra.mxu0 0.0
    %561 = vmatprep.subr.mxu0 0.0
    %562 = vmatpush1.msra.mxu0 0.0
    %563 = vmatprep.subr.mxu0 0.0
    %564 = vmatpush1.msra.mxu0 0.0
    %565 = vmatprep.subr.mxu0 0.0
    %566 = vmatpush1.msra.mxu0 0.0
    %567 = vmatprep.subr.mxu0 0.0
    %568 = vmatpush1.msra.mxu0 0.0
    %569 = vmatprep.subr.mxu0 0.0
    %570 = vmatpush1.msra.mxu0 0.0
    %571 = vmatprep.subr.mxu0 0.0
    %572 = vmatpush1.msra.mxu0 0.0
    %573 = vmatprep.subr.mxu0 0.0
    %574 = vmatpush1.msra.mxu0 0.0
    %575 = vmatprep.subr.mxu0 0.0
    %576 = vmatpush1.msra.mxu0 0.0
    %577 = vmatprep.subr.mxu0 0.0
    %578 = vmatpush1.msra.mxu0 0.0
    %579 = vmatprep.subr.mxu0 0.0
    %580 = vmatpush1.msra.mxu0 0.0
    %581 = vmatprep.subr.mxu0 0.0
    %582 = vmatpush1.msra.mxu0 0.0
    %583 = vmatprep.subr.mxu0 0.0
    %584 = vmatpush1.msra.mxu0 0.0
    %585 = vmatprep.subr.mxu0 0.0
    %586 = vmatpush1.msra.mxu0 0.0
    %587 = vmatprep.subr.mxu0 0.0
    %588 = vmatpush1.msra.mxu0 0.0
    %589 = vmatprep.subr.mxu0 0.0
    %590 = vmatpush1.msra.mxu0 0.0
    %591 = vmatprep.subr.mxu0 0.0
    %592 = vmatpush1.msra.mxu0 0.0
    %593 = vmatprep.subr.mxu0 0.0
    %594 = vmatpush1.msra.mxu0 0.0
    %595 = vmatprep.subr.mxu0 0.0
    %596 = vmatpush1.msra.mxu0 0.0
    %597 = vmatprep.subr.mxu0 0.0
    %598 = vmatpush1.msra.mxu0 0.0
    %599 = vmatprep.subr.mxu0 0.0
    %600 = vmatpush1.msra.mxu0 0.0
    %601 = vmatprep.subr.mxu0 0.0
    %602 = vmatpush1.msra.mxu0 0.0
    %603 = vmatprep.subr.mxu0 0.0
    %604 = vmatpush1.msra.mxu0 0.0
    %605 = vmatprep.subr.mxu0 0.0
    %606 = vmatpush1.msra.mxu0 0.0
    %607 = vmatprep.subr.mxu0 0.0
    %608 = vmatpush1.msra.mxu0 0.0
    %609 = vmatprep.subr.mxu0 0.0
    %610 = vmatpush1.msra.mxu0 0.0
    %611 = vmatprep.subr.mxu0 0.0
    %612 = vmatpush1.msra.mxu0 0.0
    %613 = vmatprep.subr.mxu0 0.0
    %614 = vmatpush1.msra.mxu0 0.0
    %615 = vmatprep.subr.mxu0 0.0
    %616 = vmatpush1.msra.mxu0 0.0
    %617 = vmatprep.mubr.f32.mxu0 0.0
    %618 = vmatmul.mubr.f32.gmra.mrb[0].mxu0 %v542
    %v619 = vpop.f32.mrb[0].mxu0
    %v620 = vadd.f32 0.0, %v619
    %v621 = vpop.f32.mrb[0].mxu0
    %622 = vmatprep.mubr.f32.mxu0 0.0
    %623 = vmatmul.mubr.f32.gmra.mrb[0].mxu0 %v545
    %v624 = vpop.f32.mrb[0].mxu0
    %v625 = vadd.f32 0.0, %v624
    %v626 = vpop.f32.mrb[0].mxu0
    %627 = vmatprep.mubr.f32.mxu0 0.0
    %628 = vmatmul.mubr.f32.gmra.mrb[0].mxu0 %v548
    %v629 = vpop.f32.mrb[0].mxu0
    %v630 = vadd.f32 0.0, %v629
    %v631 = vpop.f32.mrb[0].mxu0
    %632 = vmatprep.mubr.f32.mxu0 0.0
    %633 = vmatmul.mubr.f32.gmra.mrb[0].mxu0 %v551
    %v634 = vpop.f32.mrb[0].mxu0
    %v635 = vadd.f32 0.0, %v634
    %v636 = vpop.f32.mrb[0].mxu0
    %637 = vdwg.mxu0
    %v638 = vld [vmem:[#allocation2 + $0x111] sm:$0x1]
    %v639 = vlaneseq
    %v640 = vshrl.u32 %v639, 7
    %v641 = vsub.s32 0, %v640
    %v642 = vrot.slane %v638, %v641
    %645 = vrot.lane.b32.xlu0 %v29, 64
    %v646 = vpop.permute.xlu0 %645
    %647 = vrot.lane.b32.xlu0 %v30, 64
    %v648 = vpop.permute.xlu0 %647
    %652 = vrot.lane.b32.xlu0 %v642, 64
    %v653 = vpop.permute.xlu0 %652
    %v656 = vsel %vm40, %v382, 0
    %v659 = vsel %vm40, %v387, 0
    %v662 = vsel %vm40, %v392, 0
    %v665 = vsel %vm40, %v397, 0
    %v668 = vsel %vm40, %v620, 0
    %v671 = vsel %vm40, %v625, 0
    %v674 = vsel %vm40, %v630, 0
    %v677 = vsel %vm40, %v635, 0
    %679 = vmatprep.subr.mxu0 0.0
    %680 = vmatpush1.msra.mxu0 %v646
    %681 = vmatprep.subr.mxu0 0.0
    %682 = vmatpush1.msra.mxu0 %v648
    %683 = vmatprep.subr.mxu0 0.0
    %684 = vmatpush1.msra.mxu0 0.0
    %685 = vmatprep.subr.mxu0 0.0
    %686 = vmatpush1.msra.mxu0 0.0
    %687 = vmatprep.subr.mxu0 0.0
    %688 = vmatpush1.msra.mxu0 0.0
    %689 = vmatprep.subr.mxu0 0.0
    %690 = vmatpush1.msra.mxu0 0.0
    %691 = vmatprep.subr.mxu0 0.0
    %692 = vmatpush1.msra.mxu0 0.0
    %693 = vmatprep.subr.mxu0 0.0
    %694 = vmatpush1.msra.mxu0 0.0
    %695 = vmatprep.subr.mxu0 0.0
    %696 = vmatpush1.msra.mxu0 0.0
    %697 = vmatprep.subr.mxu0 0.0
    %698 = vmatpush1.msra.mxu0 0.0
    %699 = vmatprep.subr.mxu0 0.0
    %700 = vmatpush1.msra.mxu0 0.0
    %701 = vmatprep.subr.mxu0 0.0
    %702 = vmatpush1.msra.mxu0 0.0
    %703 = vmatprep.subr.mxu0 0.0
    %704 = vmatpush1.msra.mxu0 0.0
    %705 = vmatprep.subr.mxu0 0.0
    %706 = vmatpush1.msra.mxu0 0.0
    %707 = vmatprep.subr.mxu0 0.0
    %708 = vmatpush1.msra.mxu0 0.0
    %709 = vmatprep.subr.mxu0 0.0
    %710 = vmatpush1.msra.mxu0 0.0
    %711 = vmatprep.subr.mxu0 0.0
    %712 = vmatpush1.msra.mxu0 0.0
    %713 = vmatprep.subr.mxu0 0.0
    %714 = vmatpush1.msra.mxu0 0.0
    %715 = vmatprep.subr.mxu0 0.0
    %716 = vmatpush1.msra.mxu0 0.0
    %717 = vmatprep.subr.mxu0 0.0
    %718 = vmatpush1.msra.mxu0 0.0
    %719 = vmatprep.subr.mxu0 0.0
    %720 = vmatpush1.msra.mxu0 0.0
    %721 = vmatprep.subr.mxu0 0.0
    %722 = vmatpush1.msra.mxu0 0.0
    %723 = vmatprep.subr.mxu0 0.0
    %724 = vmatpush1.msra.mxu0 0.0
    %725 = vmatprep.subr.mxu0 0.0
    %726 = vmatpush1.msra.mxu0 0.0
    %727 = vmatprep.subr.mxu0 0.0
    %728 = vmatpush1.msra.mxu0 0.0
    %729 = vmatprep.subr.mxu0 0.0
    %730 = vmatpush1.msra.mxu0 0.0
    %731 = vmatprep.subr.mxu0 0.0
    %732 = vmatpush1.msra.mxu0 0.0
    %733 = vmatprep.subr.mxu0 0.0
    %734 = vmatpush1.msra.mxu0 0.0
    %735 = vmatprep.subr.mxu0 0.0
    %736 = vmatpush1.msra.mxu0 0.0
    %737 = vmatprep.subr.mxu0 0.0
    %738 = vmatpush1.msra.mxu0 0.0
    %739 = vmatprep.subr.mxu0 0.0
    %740 = vmatpush1.msra.mxu0 0.0
    %741 = vmatprep.subr.mxu0 0.0
    %742 = vmatpush1.msra.mxu0 0.0
    %743 = vmatprep.mubr.f32.mxu0 0.0
    %744 = vmatmul.mubr.f32.gmra.mrb[0].mxu0 %v656
    %v745 = vpop.f32.mrb[0].mxu0
    %v746 = vadd.f32 %v653, %v745
    %v747 = vpop.f32.mrb[0].mxu0
    %748 = vmatprep.mubr.f32.mxu0 0.0
    %749 = vmatmul.mubr.f32.gmra.mrb[0].mxu0 %v659
    %v750 = vpop.f32.mrb[0].mxu0
    %v751 = vadd.f32 %v653, %v750
    %v752 = vpop.f32.mrb[0].mxu0
    %753 = vmatprep.mubr.f32.mxu0 0.0
    %754 = vmatmul.mubr.f32.gmra.mrb[0].mxu0 %v662
    %v755 = vpop.f32.mrb[0].mxu0
    %v756 = vadd.f32 %v653, %v755
    %v757 = vpop.f32.mrb[0].mxu0
    %758 = vmatprep.mubr.f32.mxu0 0.0
    %759 = vmatmul.mubr.f32.gmra.mrb[0].mxu0 %v665
    %v760 = vpop.f32.mrb[0].mxu0
    %v761 = vadd.f32 %v653, %v760
    %v762 = vpop.f32.mrb[0].mxu0
    %763 = vmatprep.mubr.f32.mxu0 0.0
    %764 = vmatmul.mubr.f32.gmra.mrb[0].mxu0 %v668
    %v765 = vpop.f32.mrb[0].mxu0
    %v766 = vadd.f32 %v653, %v765
    %v767 = vpop.f32.mrb[0].mxu0
    %768 = vmatprep.mubr.f32.mxu0 0.0
    %769 = vmatmul.mubr.f32.gmra.mrb[0].mxu0 %v671
    %v770 = vpop.f32.mrb[0].mxu0
    %v771 = vadd.f32 %v653, %v770
    %v772 = vpop.f32.mrb[0].mxu0
    %773 = vmatprep.mubr.f32.mxu0 0.0
    %774 = vmatmul.mubr.f32.gmra.mrb[0].mxu0 %v674
    %v775 = vpop.f32.mrb[0].mxu0
    %v776 = vadd.f32 %v653, %v775
    %v777 = vpop.f32.mrb[0].mxu0
    %778 = vmatprep.mubr.f32.mxu0 0.0
    %779 = vmatmul.mubr.f32.gmra.mrb[0].mxu0 %v677
    %v780 = vpop.f32.mrb[0].mxu0
    %v781 = vadd.f32 %v653, %v780
    %v782 = vpop.f32.mrb[0].mxu0
    %783 = vdwg.mxu0
    %v784 = vadd.f32 %v746, %v138
    %v785 = vadd.f32 %v751, %v139
    %v786 = vadd.f32 %v756, %v140
    %v787 = vadd.f32 %v761, %v141
    %v788 = vadd.f32 %v766, %v138
    %v789 = vadd.f32 %v771, %v139
    %v790 = vadd.f32 %v776, %v140
    %v791 = vadd.f32 %v781, %v141
    %v792 = vld [vmem:[#allocation2 + $0x30] sm:$0xff]
    %v793 = vld [vmem:[#allocation2 + $0x38] sm:$0xff]
    %v794 = vld [vmem:[#allocation2 + $0x40] sm:$0xff]
    %v795 = vld [vmem:[#allocation2 + $0x48] sm:$0xff]
    %v796 = vld [vmem:[#allocation2 + $0x112] sm:$0x1]
    %v797 = vlaneseq
    %v798 = vshrl.u32 %v797, 7
    %v799 = vsub.s32 0, %v798
    %v800 = vrot.slane %v796, %v799
    %802 = vrot.lane.b32.xlu0 %v800, 64
    %v803 = vpop.permute.xlu0 %802
    %vm805 = vcmask 261120
    %v807 = vsel %vm805, %v784, 0
    %v810 = vsel %vm805, %v785, 0
    %v813 = vsel %vm805, %v786, 0
    %v816 = vsel %vm805, %v787, 0
    %v819 = vsel %vm805, %v788, 0
    %v822 = vsel %vm805, %v789, 0
    %v825 = vsel %vm805, %v790, 0
    %v828 = vsel %vm805, %v791, 0
    %830 = vmatprep.subr.mxu0 0.0
    %831 = vmatpush1.msra.mxu0 %v792
    %832 = vmatprep.subr.mxu0 0.0
    %833 = vmatpush1.msra.mxu0 %v793
    %834 = vmatprep.subr.mxu0 0.0
    %835 = vmatpush1.msra.mxu0 %v794
    %836 = vmatprep.subr.mxu0 0.0
    %837 = vmatpush1.msra.mxu0 %v795
    %838 = vmatprep.subr.mxu0 0.0
    %839 = vmatpush1.msra.mxu0 0.0
    %840 = vmatprep.subr.mxu0 0.0
    %841 = vmatpush1.msra.mxu0 0.0
    %842 = vmatprep.subr.mxu0 0.0
    %843 = vmatpush1.msra.mxu0 0.0
    %844 = vmatprep.subr.mxu0 0.0
    %845 = vmatpush1.msra.mxu0 0.0
    %846 = vmatprep.subr.mxu0 0.0
    %847 = vmatpush1.msra.mxu0 0.0
    %848 = vmatprep.subr.mxu0 0.0
    %849 = vmatpush1.msra.mxu0 0.0
    %850 = vmatprep.subr.mxu0 0.0
    %851 = vmatpush1.msra.mxu0 0.0
    %852 = vmatprep.subr.mxu0 0.0
    %853 = vmatpush1.msra.mxu0 0.0
    %854 = vmatprep.subr.mxu0 0.0
    %855 = vmatpush1.msra.mxu0 0.0
    %856 = vmatprep.subr.mxu0 0.0
    %857 = vmatpush1.msra.mxu0 0.0
    %858 = vmatprep.subr.mxu0 0.0
    %859 = vmatpush1.msra.mxu0 0.0
    %860 = vmatprep.subr.mxu0 0.0
    %861 = vmatpush1.msra.mxu0 0.0
    %862 = vmatprep.subr.mxu0 0.0
    %863 = vmatpush1.msra.mxu0 0.0
    %864 = vmatprep.subr.mxu0 0.0
    %865 = vmatpush1.msra.mxu0 0.0
    %866 = vmatprep.subr.mxu0 0.0
    %867 = vmatpush1.msra.mxu0 0.0
    %868 = vmatprep.subr.mxu0 0.0
    %869 = vmatpush1.msra.mxu0 0.0
    %870 = vmatprep.subr.mxu0 0.0
    %871 = vmatpush1.msra.mxu0 0.0
    %872 = vmatprep.subr.mxu0 0.0
    %873 = vmatpush1.msra.mxu0 0.0
    %874 = vmatprep.subr.mxu0 0.0
    %875 = vmatpush1.msra.mxu0 0.0
    %876 = vmatprep.subr.mxu0 0.0
    %877 = vmatpush1.msra.mxu0 0.0
    %878 = vmatprep.subr.mxu0 0.0
    %879 = vmatpush1.msra.mxu0 0.0
    %880 = vmatprep.subr.mxu0 0.0
    %881 = vmatpush1.msra.mxu0 0.0
    %882 = vmatprep.subr.mxu0 0.0
    %883 = vmatpush1.msra.mxu0 0.0
    %884 = vmatprep.subr.mxu0 0.0
    %885 = vmatpush1.msra.mxu0 0.0
    %886 = vmatprep.subr.mxu0 0.0
    %887 = vmatpush1.msra.mxu0 0.0
    %888 = vmatprep.subr.mxu0 0.0
    %889 = vmatpush1.msra.mxu0 0.0
    %890 = vmatprep.subr.mxu0 0.0
    %891 = vmatpush1.msra.mxu0 0.0
    %892 = vmatprep.subr.mxu0 0.0
    %893 = vmatpush1.msra.mxu0 0.0
    %894 = vmatprep.mubr.f32.mxu0 0.0
    %895 = vmatmul.mubr.f32.gmra.mrb[0].mxu0 %v807
    %v896 = vpop.f32.mrb[0].mxu0
    %v897 = vadd.f32 %v803, %v896
    %v898 = vpop.f32.mrb[0].mxu0
    %899 = vmatprep.mubr.f32.mxu0 0.0
    %900 = vmatmul.mubr.f32.gmra.mrb[0].mxu0 %v810
    %v901 = vpop.f32.mrb[0].mxu0
    %v902 = vadd.f32 %v803, %v901
    %v903 = vpop.f32.mrb[0].mxu0
    %904 = vmatprep.mubr.f32.mxu0 0.0
    %905 = vmatmul.mubr.f32.gmra.mrb[0].mxu0 %v813
    %v906 = vpop.f32.mrb[0].mxu0
    %v907 = vadd.f32 %v803, %v906
    %v908 = vpop.f32.mrb[0].mxu0
    %909 = vmatprep.mubr.f32.mxu0 0.0
    %910 = vmatmul.mubr.f32.gmra.mrb[0].mxu0 %v816
    %v911 = vpop.f32.mrb[0].mxu0
    %v912 = vadd.f32 %v803, %v911
    %v913 = vpop.f32.mrb[0].mxu0
    %914 = vmatprep.mubr.f32.mxu0 0.0
    %915 = vmatmul.mubr.f32.gmra.mrb[0].mxu0 %v819
    %v916 = vpop.f32.mrb[0].mxu0
    %v917 = vadd.f32 %v803, %v916
    %v918 = vpop.f32.mrb[0].mxu0
    %919 = vmatprep.mubr.f32.mxu0 0.0
    %920 = vmatmul.mubr.f32.gmra.mrb[0].mxu0 %v822
    %v921 = vpop.f32.mrb[0].mxu0
    %v922 = vadd.f32 %v803, %v921
    %v923 = vpop.f32.mrb[0].mxu0
    %924 = vmatprep.mubr.f32.mxu0 0.0
    %925 = vmatmul.mubr.f32.gmra.mrb[0].mxu0 %v825
    %v926 = vpop.f32.mrb[0].mxu0
    %v927 = vadd.f32 %v803, %v926
    %v928 = vpop.f32.mrb[0].mxu0
    %929 = vmatprep.mubr.f32.mxu0 0.0
    %930 = vmatmul.mubr.f32.gmra.mrb[0].mxu0 %v828
    %v931 = vpop.f32.mrb[0].mxu0
    %v932 = vadd.f32 %v803, %v931
    %v933 = vpop.f32.mrb[0].mxu0
    %934 = vdwg.mxu0
    %v935 = vmax.f32 %v897, 0.0
    %v936 = vmax.f32 %v902, 0.0
    %v937 = vmax.f32 %v907, 0.0
    %v938 = vmax.f32 %v912, 0.0
    %v939 = vmax.f32 %v917, 0.0
    %v940 = vmax.f32 %v922, 0.0
    %v941 = vmax.f32 %v927, 0.0
    %v942 = vmax.f32 %v932, 0.0
    %v943 = vld [vmem:[#allocation2 + $0x113] sm:$0x1]
    %v944 = vlaneseq
    %v945 = vshrl.u32 %v944, 7
    %v946 = vsub.s32 0, %v945
    %v947 = vrot.slane %v943, %v946
    %952 = vrot.lane.b32.xlu0 %v792, 64
    %v953 = vpop.permute.xlu0 %952
    %954 = vrot.lane.b32.xlu0 %v793, 64
    %v955 = vpop.permute.xlu0 %954
    %956 = vrot.lane.b32.xlu0 %v794, 64
    %v957 = vpop.permute.xlu0 %956
    %958 = vrot.lane.b32.xlu0 %v795, 64
    %v959 = vpop.permute.xlu0 %958
    %965 = vrot.lane.b32.xlu0 %v947, 64
    %v966 = vpop.permute.xlu0 %965
    %v969 = vsel %vm805, %v935, 0
    %v972 = vsel %vm805, %v936, 0
    %v975 = vsel %vm805, %v937, 0
    %v978 = vsel %vm805, %v938, 0
    %v981 = vsel %vm805, %v939, 0
    %v984 = vsel %vm805, %v940, 0
    %v987 = vsel %vm805, %v941, 0
    %v990 = vsel %vm805, %v942, 0
    %992 = vmatprep.subr.mxu0 0.0
    %993 = vmatpush1.msra.mxu0 %v953
    %994 = vmatprep.subr.mxu0 0.0
    %995 = vmatpush1.msra.mxu0 %v955
    %996 = vmatprep.subr.mxu0 0.0
    %997 = vmatpush1.msra.mxu0 %v957
    %998 = vmatprep.subr.mxu0 0.0
    %999 = vmatpush1.msra.mxu0 %v959
    %1000 = vmatprep.subr.mxu0 0.0
    %1001 = vmatpush1.msra.mxu0 0.0
    %1002 = vmatprep.subr.mxu0 0.0
    %1003 = vmatpush1.msra.mxu0 0.0
    %1004 = vmatprep.subr.mxu0 0.0
    %1005 = vmatpush1.msra.mxu0 0.0
    %1006 = vmatprep.subr.mxu0 0.0
    %1007 = vmatpush1.msra.mxu0 0.0
    %1008 = vmatprep.subr.mxu0 0.0
    %1009 = vmatpush1.msra.mxu0 0.0
    %1010 = vmatprep.subr.mxu0 0.0
    %1011 = vmatpush1.msra.mxu0 0.0
    %1012 = vmatprep.subr.mxu0 0.0
    %1013 = vmatpush1.msra.mxu0 0.0
    %1014 = vmatprep.subr.mxu0 0.0
    %1015 = vmatpush1.msra.mxu0 0.0
    %1016 = vmatprep.subr.mxu0 0.0
    %1017 = vmatpush1.msra.mxu0 0.0
    %1018 = vmatprep.subr.mxu0 0.0
    %1019 = vmatpush1.msra.mxu0 0.0
    %1020 = vmatprep.subr.mxu0 0.0
    %1021 = vmatpush1.msra.mxu0 0.0
    %1022 = vmatprep.subr.mxu0 0.0
    %1023 = vmatpush1.msra.mxu0 0.0
    %1024 = vmatprep.subr.mxu0 0.0
    %1025 = vmatpush1.msra.mxu0 0.0
    %1026 = vmatprep.subr.mxu0 0.0
    %1027 = vmatpush1.msra.mxu0 0.0
    %1028 = vmatprep.subr.mxu0 0.0
    %1029 = vmatpush1.msra.mxu0 0.0
    %1030 = vmatprep.subr.mxu0 0.0
    %1031 = vmatpush1.msra.mxu0 0.0
    %1032 = vmatprep.subr.mxu0 0.0
    %1033 = vmatpush1.msra.mxu0 0.0
    %1034 = vmatprep.subr.mxu0 0.0
    %1035 = vmatpush1.msra.mxu0 0.0
    %1036 = vmatprep.subr.mxu0 0.0
    %1037 = vmatpush1.msra.mxu0 0.0
    %1038 = vmatprep.subr.mxu0 0.0
    %1039 = vmatpush1.msra.mxu0 0.0
    %1040 = vmatprep.subr.mxu0 0.0
    %1041 = vmatpush1.msra.mxu0 0.0
    %1042 = vmatprep.subr.mxu0 0.0
    %1043 = vmatpush1.msra.mxu0 0.0
    %1044 = vmatprep.subr.mxu0 0.0
    %1045 = vmatpush1.msra.mxu0 0.0
    %1046 = vmatprep.subr.mxu0 0.0
    %1047 = vmatpush1.msra.mxu0 0.0
    %1048 = vmatprep.subr.mxu0 0.0
    %1049 = vmatpush1.msra.mxu0 0.0
    %1050 = vmatprep.subr.mxu0 0.0
    %1051 = vmatpush1.msra.mxu0 0.0
    %1052 = vmatprep.subr.mxu0 0.0
    %1053 = vmatpush1.msra.mxu0 0.0
    %1054 = vmatprep.subr.mxu0 0.0
    %1055 = vmatpush1.msra.mxu0 0.0
    %1056 = vmatprep.mubr.f32.mxu0 0.0
    %1057 = vmatmul.mubr.f32.gmra.mrb[0].mxu0 %v969
    %v1058 = vpop.f32.mrb[0].mxu0
    %v1059 = vadd.f32 %v966, %v1058
    %v1060 = vpop.f32.mrb[0].mxu0
    %1061 = vmatprep.mubr.f32.mxu0 0.0
    %1062 = vmatmul.mubr.f32.gmra.mrb[0].mxu0 %v972
    %v1063 = vpop.f32.mrb[0].mxu0
    %v1064 = vadd.f32 %v966, %v1063
    %v1065 = vpop.f32.mrb[0].mxu0
    %1066 = vmatprep.mubr.f32.mxu0 0.0
    %1067 = vmatmul.mubr.f32.gmra.mrb[0].mxu0 %v975
    %v1068 = vpop.f32.mrb[0].mxu0
    %v1069 = vadd.f32 %v966, %v1068
    %v1070 = vpop.f32.mrb[0].mxu0
    %1071 = vmatprep.mubr.f32.mxu0 0.0
    %1072 = vmatmul.mubr.f32.gmra.mrb[0].mxu0 %v978
    %v1073 = vpop.f32.mrb[0].mxu0
    %v1074 = vadd.f32 %v966, %v1073
    %v1075 = vpop.f32.mrb[0].mxu0
    %1076 = vmatprep.mubr.f32.mxu0 0.0
    %1077 = vmatmul.mubr.f32.gmra.mrb[0].mxu0 %v981
    %v1078 = vpop.f32.mrb[0].mxu0
    %v1079 = vadd.f32 %v966, %v1078
    %v1080 = vpop.f32.mrb[0].mxu0
    %1081 = vmatprep.mubr.f32.mxu0 0.0
    %1082 = vmatmul.mubr.f32.gmra.mrb[0].mxu0 %v984
    %v1083 = vpop.f32.mrb[0].mxu0
    %v1084 = vadd.f32 %v966, %v1083
    %v1085 = vpop.f32.mrb[0].mxu0
    %1086 = vmatprep.mubr.f32.mxu0 0.0
    %1087 = vmatmul.mubr.f32.gmra.mrb[0].mxu0 %v987
    %v1088 = vpop.f32.mrb[0].mxu0
    %v1089 = vadd.f32 %v966, %v1088
    %v1090 = vpop.f32.mrb[0].mxu0
    %1091 = vmatprep.mubr.f32.mxu0 0.0
    %1092 = vmatmul.mubr.f32.gmra.mrb[0].mxu0 %v990
    %v1093 = vpop.f32.mrb[0].mxu0
    %v1094 = vadd.f32 %v966, %v1093
    %v1095 = vpop.f32.mrb[0].mxu0
    %1096 = vdwg.mxu0
    %v1097 = vadd.f32 %v1059, %v784
    %v1098 = vadd.f32 %v1064, %v785
    %v1099 = vadd.f32 %v1069, %v786
    %v1100 = vadd.f32 %v1074, %v787
    %v1101 = vadd.f32 %v1079, %v788
    %v1102 = vadd.f32 %v1084, %v789
    %v1103 = vadd.f32 %v1089, %v790
    %v1104 = vadd.f32 %v1094, %v791
    %v1105 = vld [vmem:[#allocation2 + $0x50] sm:$0xff]
    %v1106 = vld [vmem:[#allocation2 + $0x58] sm:$0xff]
    %v1107 = vld [vmem:[#allocation2 + $0x60] sm:$0xff]
    %v1108 = vld [vmem:[#allocation2 + $0x68] sm:$0xff]
    %v1109 = vld [vmem:[#allocation2 + $0x114] sm:$0x1]
    %v1110 = vlaneseq
    %v1111 = vshrl.u32 %v1110, 7
    %v1112 = vsub.s32 0, %v1111
    %v1113 = vrot.slane %v1109, %v1112
    %1115 = vrot.lane.b32.xlu0 %v1113, 64
    %v1116 = vpop.permute.xlu0 %1115
    %v1119 = vsel %vm805, %v1097, 0
    %v1122 = vsel %vm805, %v1098, 0
    %v1125 = vsel %vm805, %v1099, 0
    %v1128 = vsel %vm805, %v1100, 0
    %v1131 = vsel %vm805, %v1101, 0
    %v1134 = vsel %vm805, %v1102, 0
    %v1137 = vsel %vm805, %v1103, 0
    %v1140 = vsel %vm805, %v1104, 0
    %1142 = vmatprep.subr.mxu0 0.0
    %1143 = vmatpush1.msra.mxu0 %v1105
    %1144 = vmatprep.subr.mxu0 0.0
    %1145 = vmatpush1.msra.mxu0 %v1106
    %1146 = vmatprep.subr.mxu0 0.0
    %1147 = vmatpush1.msra.mxu0 %v1107
    %1148 = vmatprep.subr.mxu0 0.0
    %1149 = vmatpush1.msra.mxu0 %v1108
    %1150 = vmatprep.subr.mxu0 0.0
    %1151 = vmatpush1.msra.mxu0 0.0
    %1152 = vmatprep.subr.mxu0 0.0
    %1153 = vmatpush1.msra.mxu0 0.0
    %1154 = vmatprep.subr.mxu0 0.0
    %1155 = vmatpush1.msra.mxu0 0.0
    %1156 = vmatprep.subr.mxu0 0.0
    %1157 = vmatpush1.msra.mxu0 0.0
    %1158 = vmatprep.subr.mxu0 0.0
    %1159 = vmatpush1.msra.mxu0 0.0
    %1160 = vmatprep.subr.mxu0 0.0
    %1161 = vmatpush1.msra.mxu0 0.0
    %1162 = vmatprep.subr.mxu0 0.0
    %1163 = vmatpush1.msra.mxu0 0.0
    %1164 = vmatprep.subr.mxu0 0.0
    %1165 = vmatpush1.msra.mxu0 0.0
    %1166 = vmatprep.subr.mxu0 0.0
    %1167 = vmatpush1.msra.mxu0 0.0
    %1168 = vmatprep.subr.mxu0 0.0
    %1169 = vmatpush1.msra.mxu0 0.0
    %1170 = vmatprep.subr.mxu0 0.0
    %1171 = vmatpush1.msra.mxu0 0.0
    %1172 = vmatprep.subr.mxu0 0.0
    %1173 = vmatpush1.msra.mxu0 0.0
    %1174 = vmatprep.subr.mxu0 0.0
    %1175 = vmatpush1.msra.mxu0 0.0
    %1176 = vmatprep.subr.mxu0 0.0
    %1177 = vmatpush1.msra.mxu0 0.0
    %1178 = vmatprep.subr.mxu0 0.0
    %1179 = vmatpush1.msra.mxu0 0.0
    %1180 = vmatprep.subr.mxu0 0.0
    %1181 = vmatpush1.msra.mxu0 0.0
    %1182 = vmatprep.subr.mxu0 0.0
    %1183 = vmatpush1.msra.mxu0 0.0
    %1184 = vmatprep.subr.mxu0 0.0
    %1185 = vmatpush1.msra.mxu0 0.0
    %1186 = vmatprep.subr.mxu0 0.0
    %1187 = vmatpush1.msra.mxu0 0.0
    %1188 = vmatprep.subr.mxu0 0.0
    %1189 = vmatpush1.msra.mxu0 0.0
    %1190 = vmatprep.subr.mxu0 0.0
    %1191 = vmatpush1.msra.mxu0 0.0
    %1192 = vmatprep.subr.mxu0 0.0
    %1193 = vmatpush1.msra.mxu0 0.0
    %1194 = vmatprep.subr.mxu0 0.0
    %1195 = vmatpush1.msra.mxu0 0.0
    %1196 = vmatprep.subr.mxu0 0.0
    %1197 = vmatpush1.msra.mxu0 0.0
    %1198 = vmatprep.subr.mxu0 0.0
    %1199 = vmatpush1.msra.mxu0 0.0
    %1200 = vmatprep.subr.mxu0 0.0
    %1201 = vmatpush1.msra.mxu0 0.0
    %1202 = vmatprep.subr.mxu0 0.0
    %1203 = vmatpush1.msra.mxu0 0.0
    %1204 = vmatprep.subr.mxu0 0.0
    %1205 = vmatpush1.msra.mxu0 0.0
    %1206 = vmatprep.mubr.f32.mxu0 0.0
    %1207 = vmatmul.mubr.f32.gmra.mrb[0].mxu0 %v1119
    %v1208 = vpop.f32.mrb[0].mxu0
    %v1209 = vadd.f32 %v1116, %v1208
    %v1210 = vpop.f32.mrb[0].mxu0
    %1211 = vmatprep.mubr.f32.mxu0 0.0
    %1212 = vmatmul.mubr.f32.gmra.mrb[0].mxu0 %v1122
    %v1213 = vpop.f32.mrb[0].mxu0
    %v1214 = vadd.f32 %v1116, %v1213
    %v1215 = vpop.f32.mrb[0].mxu0
    %1216 = vmatprep.mubr.f32.mxu0 0.0
    %1217 = vmatmul.mubr.f32.gmra.mrb[0].mxu0 %v1125
    %v1218 = vpop.f32.mrb[0].mxu0
    %v1219 = vadd.f32 %v1116, %v1218
    %v1220 = vpop.f32.mrb[0].mxu0
    %1221 = vmatprep.mubr.f32.mxu0 0.0
    %1222 = vmatmul.mubr.f32.gmra.mrb[0].mxu0 %v1128
    %v1223 = vpop.f32.mrb[0].mxu0
    %v1224 = vadd.f32 %v1116, %v1223
    %v1225 = vpop.f32.mrb[0].mxu0
    %1226 = vmatprep.mubr.f32.mxu0 0.0
    %1227 = vmatmul.mubr.f32.gmra.mrb[0].mxu0 %v1131
    %v1228 = vpop.f32.mrb[0].mxu0
    %v1229 = vadd.f32 %v1116, %v1228
    %v1230 = vpop.f32.mrb[0].mxu0
    %1231 = vmatprep.mubr.f32.mxu0 0.0
    %1232 = vmatmul.mubr.f32.gmra.mrb[0].mxu0 %v1134
    %v1233 = vpop.f32.mrb[0].mxu0
    %v1234 = vadd.f32 %v1116, %v1233
    %v1235 = vpop.f32.mrb[0].mxu0
    %1236 = vmatprep.mubr.f32.mxu0 0.0
    %1237 = vmatmul.mubr.f32.gmra.mrb[0].mxu0 %v1137
    %v1238 = vpop.f32.mrb[0].mxu0
    %v1239 = vadd.f32 %v1116, %v1238
    %v1240 = vpop.f32.mrb[0].mxu0
    %1241 = vmatprep.mubr.f32.mxu0 0.0
    %1242 = vmatmul.mubr.f32.gmra.mrb[0].mxu0 %v1140
    %v1243 = vpop.f32.mrb[0].mxu0
    %v1244 = vadd.f32 %v1116, %v1243
    %v1245 = vpop.f32.mrb[0].mxu0
    %1246 = vdwg.mxu0
    %1251 = vrot.lane.b32.xlu0 %v1209, 112
    %v1252 = vpop.permute.xlu0 %1251
    %1253 = vrot.lane.b32.xlu0 %v1214, 112
    %v1254 = vpop.permute.xlu0 %1253
    %1255 = vrot.lane.b32.xlu0 %v1219, 112
    %v1256 = vpop.permute.xlu0 %1255
    %1257 = vrot.lane.b32.xlu0 %v1224, 112
    %v1258 = vpop.permute.xlu0 %1257
    %v1259 = vsel %vm40, %v1209, 0
    %v1261 = vsel %vm40, %v1214, 0
    %v1263 = vsel %vm40, %v1219, 0
    %v1265 = vsel %vm40, %v1224, 0
    %v1267 = vsel %vm40, %v1252, 0
    %v1269 = vsel %vm40, %v1254, 0
    %v1271 = vsel %vm40, %v1256, 0
    %v1273 = vsel %vm40, %v1258, 0
    %1275 = vmatprep.subr.mxu0 0.0
    %1276 = vmatpush1.xpose.msra.mxu0 %v1267
    %1277 = vmatprep.subr.mxu0 0.0
    %1278 = vmatpush1.xpose.msra.mxu0 %v1269
    %1279 = vmatprep.subr.mxu0 0.0
    %1280 = vmatpush1.xpose.msra.mxu0 %v1271
    %1281 = vmatprep.subr.mxu0 0.0
    %1282 = vmatpush1.xpose.msra.mxu0 %v1273
    %1283 = vmatprep.subr.mxu0 0.0
    %1284 = vmatpush1.xpose.msra.mxu0 0.0
    %1285 = vmatprep.subr.mxu0 0.0
    %1286 = vmatpush1.xpose.msra.mxu0 0.0
    %1287 = vmatprep.subr.mxu0 0.0
    %1288 = vmatpush1.xpose.msra.mxu0 0.0
    %1289 = vmatprep.subr.mxu0 0.0
    %1290 = vmatpush1.xpose.msra.mxu0 0.0
    %1291 = vmatprep.subr.mxu0 0.0
    %1292 = vmatpush1.xpose.msra.mxu0 0.0
    %1293 = vmatprep.subr.mxu0 0.0
    %1294 = vmatpush1.xpose.msra.mxu0 0.0
    %1295 = vmatprep.subr.mxu0 0.0
    %1296 = vmatpush1.xpose.msra.mxu0 0.0
    %1297 = vmatprep.subr.mxu0 0.0
    %1298 = vmatpush1.xpose.msra.mxu0 0.0
    %1299 = vmatprep.subr.mxu0 0.0
    %1300 = vmatpush1.xpose.msra.mxu0 0.0
    %1301 = vmatprep.subr.mxu0 0.0
    %1302 = vmatpush1.xpose.msra.mxu0 0.0
    %1303 = vmatprep.subr.mxu0 0.0
    %1304 = vmatpush1.xpose.msra.mxu0 0.0
    %1305 = vmatprep.subr.mxu0 0.0
    %1306 = vmatpush1.xpose.msra.mxu0 0.0
    %1307 = vmatprep.subr.mxu0 0.0
    %1308 = vmatpush1.xpose.msra.mxu0 0.0
    %1309 = vmatprep.subr.mxu0 0.0
    %1310 = vmatpush1.xpose.msra.mxu0 0.0
    %1311 = vmatprep.subr.mxu0 0.0
    %1312 = vmatpush1.xpose.msra.mxu0 0.0
    %1313 = vmatprep.subr.mxu0 0.0
    %1314 = vmatpush1.xpose.msra.mxu0 0.0
    %1315 = vmatprep.subr.mxu0 0.0
    %1316 = vmatpush1.xpose.msra.mxu0 0.0
    %1317 = vmatprep.subr.mxu0 0.0
    %1318 = vmatpush1.xpose.msra.mxu0 0.0
    %1319 = vmatprep.subr.mxu0 0.0
    %1320 = vmatpush1.xpose.msra.mxu0 0.0
    %1321 = vmatprep.subr.mxu0 0.0
    %1322 = vmatpush1.xpose.msra.mxu0 0.0
    %1323 = vmatprep.subr.mxu0 0.0
    %1324 = vmatpush1.xpose.msra.mxu0 0.0
    %1325 = vmatprep.subr.mxu0 0.0
    %1326 = vmatpush1.xpose.msra.mxu0 0.0
    %1327 = vmatprep.subr.mxu0 0.0
    %1328 = vmatpush1.xpose.msra.mxu0 0.0
    %1329 = vmatprep.subr.mxu0 0.0
    %1330 = vmatpush1.xpose.msra.mxu0 0.0
    %1331 = vmatprep.subr.mxu0 0.0
    %1332 = vmatpush1.xpose.msra.mxu0 0.0
    %1333 = vmatprep.subr.mxu0 0.0
    %1334 = vmatpush1.xpose.msra.mxu0 0.0
    %1335 = vmatprep.subr.mxu0 0.0
    %1336 = vmatpush1.xpose.msra.mxu0 0.0
    %1337 = vmatprep.subr.mxu0 0.0
    %1338 = vmatpush1.xpose.msra.mxu0 0.0
    %1339 = vmatprep.mubr.f32.mxu0 0.0
    %1340 = vmatmul.mubr.f32.gmra.mrb[0].mxu0 %v1259
    %v1341 = vpop.f32.mrb[0].mxu0
    %v1342 = vadd.f32 0.0, %v1341
    %v1343 = vpop.f32.mrb[0].mxu0
    %1344 = vmatprep.mubr.f32.mxu0 0.0
    %1345 = vmatmul.mubr.f32.gmra.mrb[0].mxu0 %v1261
    %v1346 = vpop.f32.mrb[0].mxu0
    %v1347 = vadd.f32 0.0, %v1346
    %v1348 = vpop.f32.mrb[0].mxu0
    %1349 = vmatprep.mubr.f32.mxu0 0.0
    %1350 = vmatmul.mubr.f32.gmra.mrb[0].mxu0 %v1263
    %v1351 = vpop.f32.mrb[0].mxu0
    %v1352 = vadd.f32 0.0, %v1351
    %v1353 = vpop.f32.mrb[0].mxu0
    %1354 = vmatprep.mubr.f32.mxu0 0.0
    %1355 = vmatmul.mubr.f32.gmra.mrb[0].mxu0 %v1265
    %v1356 = vpop.f32.mrb[0].mxu0
    %v1357 = vadd.f32 0.0, %v1356
    %v1358 = vpop.f32.mrb[0].mxu0
    %1359 = vdwg.mxu0
    %v1360 = vsel %vm805, %v1342, -inf
    %1361 = vmax.xlane.f32.xlu0 %v1360
    %v1362 = vpop.xlane.xlu0 %1361
    %v1363 = vsel %vm805, %v1347, -inf
    %1364 = vmax.xlane.f32.xlu0 %v1363
    %v1365 = vpop.xlane.xlu0 %1364
    %v1366 = vsel %vm805, %v1352, -inf
    %1367 = vmax.xlane.f32.xlu0 %v1366
    %v1368 = vpop.xlane.xlu0 %1367
    %v1369 = vsel %vm805, %v1357, -inf
    %1370 = vmax.xlane.f32.xlu0 %v1369
    %v1371 = vpop.xlane.xlu0 %1370
    %v1372 = vsub.f32 %v1342, %v1362
    %v1373 = vsub.f32 %v1347, %v1365
    %v1374 = vsub.f32 %v1352, %v1368
    %v1375 = vsub.f32 %v1357, %v1371
    %v1376 = vmul.f32 %v1372, 1.442695
    %v1377 = vpow.pop %v1376
    %v1378 = vmul.f32 %v1373, 1.442695
    %v1379 = vpow.pop %v1378
    %v1380 = vmul.f32 %v1374, 1.442695
    %v1381 = vpow.pop %v1380
    %v1382 = vmul.f32 %v1375, 1.442695
    %v1383 = vpow.pop %v1382
    %v1384 = vsel %vm805, %v1377, 0.0
    %1385 = vadd.xlane.f32.xlu0 %v1384
    %v1386 = vpop.xlane.xlu0 %1385
    %v1387 = vsel %vm805, %v1379, 0.0
    %1388 = vadd.xlane.f32.xlu0 %v1387
    %v1389 = vpop.xlane.xlu0 %1388
    %v1390 = vsel %vm805, %v1381, 0.0
    %1391 = vadd.xlane.f32.xlu0 %v1390
    %v1392 = vpop.xlane.xlu0 %1391
    %v1393 = vsel %vm805, %v1383, 0.0
    %1394 = vadd.xlane.f32.xlu0 %v1393
    %v1395 = vpop.xlane.xlu0 %1394
    %v1396 = vrcp.pop %v1386
    %v1397 = vrcp.pop %v1389
    %v1398 = vrcp.pop %v1392
    %v1399 = vrcp.pop %v1395
    %v1400 = vmul.f32 %v1377, %v1396
    %v1401 = vmul.f32 %v1379, %v1397
    %v1402 = vmul.f32 %v1381, %v1398
    %v1403 = vmul.f32 %v1383, %v1399
    %1404 = vrot.lane.b32.xlu0 %v1209, 96
    %v1405 = vpop.permute.xlu0 %1404
    %1406 = vrot.lane.b32.xlu0 %v1214, 96
    %v1407 = vpop.permute.xlu0 %1406
    %1408 = vrot.lane.b32.xlu0 %v1219, 96
    %v1409 = vpop.permute.xlu0 %1408
    %1410 = vrot.lane.b32.xlu0 %v1224, 96
    %v1411 = vpop.permute.xlu0 %1410
    %v1417 = vsel %vm805, %v1400, 0
    %v1420 = vsel %vm805, %v1401, 0
    %v1423 = vsel %vm805, %v1402, 0
    %v1426 = vsel %vm805, %v1403, 0
    %1428 = vmatprep.subr.mxu0 0.0
    %1429 = vmatpush1.msra.mxu0 %v1405
    %1430 = vmatprep.subr.mxu0 0.0
    %1431 = vmatpush1.msra.mxu0 %v1407
    %1432 = vmatprep.subr.mxu0 0.0
    %1433 = vmatpush1.msra.mxu0 %v1409
    %1434 = vmatprep.subr.mxu0 0.0
    %1435 = vmatpush1.msra.mxu0 %v1411
    %1436 = vmatprep.subr.mxu0 0.0
    %1437 = vmatpush1.msra.mxu0 0.0
    %1438 = vmatprep.subr.mxu0 0.0
    %1439 = vmatpush1.msra.mxu0 0.0
    %1440 = vmatprep.subr.mxu0 0.0
    %1441 = vmatpush1.msra.mxu0 0.0
    %1442 = vmatprep.subr.mxu0 0.0
    %1443 = vmatpush1.msra.mxu0 0.0
    %1444 = vmatprep.subr.mxu0 0.0
    %1445 = vmatpush1.msra.mxu0 0.0
    %1446 = vmatprep.subr.mxu0 0.0
    %1447 = vmatpush1.msra.mxu0 0.0
    %1448 = vmatprep.subr.mxu0 0.0
    %1449 = vmatpush1.msra.mxu0 0.0
    %1450 = vmatprep.subr.mxu0 0.0
    %1451 = vmatpush1.msra.mxu0 0.0
    %1452 = vmatprep.subr.mxu0 0.0
    %1453 = vmatpush1.msra.mxu0 0.0
    %1454 = vmatprep.subr.mxu0 0.0
    %1455 = vmatpush1.msra.mxu0 0.0
    %1456 = vmatprep.subr.mxu0 0.0
    %1457 = vmatpush1.msra.mxu0 0.0
    %1458 = vmatprep.subr.mxu0 0.0
    %1459 = vmatpush1.msra.mxu0 0.0
    %1460 = vmatprep.subr.mxu0 0.0
    %1461 = vmatpush1.msra.mxu0 0.0
    %1462 = vmatprep.subr.mxu0 0.0
    %1463 = vmatpush1.msra.mxu0 0.0
    %1464 = vmatprep.subr.mxu0 0.0
    %1465 = vmatpush1.msra.mxu0 0.0
    %1466 = vmatprep.subr.mxu0 0.0
    %1467 = vmatpush1.msra.mxu0 0.0
    %1468 = vmatprep.subr.mxu0 0.0
    %1469 = vmatpush1.msra.mxu0 0.0
    %1470 = vmatprep.subr.mxu0 0.0
    %1471 = vmatpush1.msra.mxu0 0.0
    %1472 = vmatprep.subr.mxu0 0.0
    %1473 = vmatpush1.msra.mxu0 0.0
    %1474 = vmatprep.subr.mxu0 0.0
    %1475 = vmatpush1.msra.mxu0 0.0
    %1476 = vmatprep.subr.mxu0 0.0
    %1477 = vmatpush1.msra.mxu0 0.0
    %1478 = vmatprep.subr.mxu0 0.0
    %1479 = vmatpush1.msra.mxu0 0.0
    %1480 = vmatprep.subr.mxu0 0.0
    %1481 = vmatpush1.msra.mxu0 0.0
    %1482 = vmatprep.subr.mxu0 0.0
    %1483 = vmatpush1.msra.mxu0 0.0
    %1484 = vmatprep.subr.mxu0 0.0
    %1485 = vmatpush1.msra.mxu0 0.0
    %1486 = vmatprep.subr.mxu0 0.0
    %1487 = vmatpush1.msra.mxu0 0.0
    %1488 = vmatprep.subr.mxu0 0.0
    %1489 = vmatpush1.msra.mxu0 0.0
    %1490 = vmatprep.subr.mxu0 0.0
    %1491 = vmatpush1.msra.mxu0 0.0
    %1492 = vmatprep.mubr.f32.mxu0 0.0
    %1493 = vmatmul.mubr.f32.gmra.mrb[0].mxu0 %v1417
    %v1494 = vpop.f32.mrb[0].mxu0
    %v1495 = vadd.f32 0.0, %v1494
    %v1496 = vpop.f32.mrb[0].mxu0
    %1497 = vmatprep.mubr.f32.mxu0 0.0
    %1498 = vmatmul.mubr.f32.gmra.mrb[0].mxu0 %v1420
    %v1499 = vpop.f32.mrb[0].mxu0
    %v1500 = vadd.f32 0.0, %v1499
    %v1501 = vpop.f32.mrb[0].mxu0
    %1502 = vmatprep.mubr.f32.mxu0 0.0
    %1503 = vmatmul.mubr.f32.gmra.mrb[0].mxu0 %v1423
    %v1504 = vpop.f32.mrb[0].mxu0
    %v1505 = vadd.f32 0.0, %v1504
    %v1506 = vpop.f32.mrb[0].mxu0
    %1507 = vmatprep.mubr.f32.mxu0 0.0
    %1508 = vmatmul.mubr.f32.gmra.mrb[0].mxu0 %v1426
    %v1509 = vpop.f32.mrb[0].mxu0
    %v1510 = vadd.f32 0.0, %v1509
    %v1511 = vpop.f32.mrb[0].mxu0
    %1512 = vdwg.mxu0
    %1517 = vrot.lane.b32.xlu0 %v1229, 112
    %v1518 = vpop.permute.xlu0 %1517
    %1519 = vrot.lane.b32.xlu0 %v1234, 112
    %v1520 = vpop.permute.xlu0 %1519
    %1521 = vrot.lane.b32.xlu0 %v1239, 112
    %v1522 = vpop.permute.xlu0 %1521
    %1523 = vrot.lane.b32.xlu0 %v1244, 112
    %v1524 = vpop.permute.xlu0 %1523
    %v1525 = vsel %vm40, %v1229, 0
    %v1527 = vsel %vm40, %v1234, 0
    %v1529 = vsel %vm40, %v1239, 0
    %v1531 = vsel %vm40, %v1244, 0
    %v1533 = vsel %vm40, %v1518, 0
    %v1535 = vsel %vm40, %v1520, 0
    %v1537 = vsel %vm40, %v1522, 0
    %v1539 = vsel %vm40, %v1524, 0
    %1541 = vmatprep.subr.mxu0 0.0
    %1542 = vmatpush1.xpose.msra.mxu0 %v1533
    %1543 = vmatprep.subr.mxu0 0.0
    %1544 = vmatpush1.xpose.msra.mxu0 %v1535
    %1545 = vmatprep.subr.mxu0 0.0
    %1546 = vmatpush1.xpose.msra.mxu0 %v1537
    %1547 = vmatprep.subr.mxu0 0.0
    %1548 = vmatpush1.xpose.msra.mxu0 %v1539
    %1549 = vmatprep.subr.mxu0 0.0
    %1550 = vmatpush1.xpose.msra.mxu0 0.0
    %1551 = vmatprep.subr.mxu0 0.0
    %1552 = vmatpush1.xpose.msra.mxu0 0.0
    %1553 = vmatprep.subr.mxu0 0.0
    %1554 = vmatpush1.xpose.msra.mxu0 0.0
    %1555 = vmatprep.subr.mxu0 0.0
    %1556 = vmatpush1.xpose.msra.mxu0 0.0
    %1557 = vmatprep.subr.mxu0 0.0
    %1558 = vmatpush1.xpose.msra.mxu0 0.0
    %1559 = vmatprep.subr.mxu0 0.0
    %1560 = vmatpush1.xpose.msra.mxu0 0.0
    %1561 = vmatprep.subr.mxu0 0.0
    %1562 = vmatpush1.xpose.msra.mxu0 0.0
    %1563 = vmatprep.subr.mxu0 0.0
    %1564 = vmatpush1.xpose.msra.mxu0 0.0
    %1565 = vmatprep.subr.mxu0 0.0
    %1566 = vmatpush1.xpose.msra.mxu0 0.0
    %1567 = vmatprep.subr.mxu0 0.0
    %1568 = vmatpush1.xpose.msra.mxu0 0.0
    %1569 = vmatprep.subr.mxu0 0.0
    %1570 = vmatpush1.xpose.msra.mxu0 0.0
    %1571 = vmatprep.subr.mxu0 0.0
    %1572 = vmatpush1.xpose.msra.mxu0 0.0
    %1573 = vmatprep.subr.mxu0 0.0
    %1574 = vmatpush1.xpose.msra.mxu0 0.0
    %1575 = vmatprep.subr.mxu0 0.0
    %1576 = vmatpush1.xpose.msra.mxu0 0.0
    %1577 = vmatprep.subr.mxu0 0.0
    %1578 = vmatpush1.xpose.msra.mxu0 0.0
    %1579 = vmatprep.subr.mxu0 0.0
    %1580 = vmatpush1.xpose.msra.mxu0 0.0
    %1581 = vmatprep.subr.mxu0 0.0
    %1582 = vmatpush1.xpose.msra.mxu0 0.0
    %1583 = vmatprep.subr.mxu0 0.0
    %1584 = vmatpush1.xpose.msra.mxu0 0.0
    %1585 = vmatprep.subr.mxu0 0.0
    %1586 = vmatpush1.xpose.msra.mxu0 0.0
    %1587 = vmatprep.subr.mxu0 0.0
    %1588 = vmatpush1.xpose.msra.mxu0 0.0
    %1589 = vmatprep.subr.mxu0 0.0
    %1590 = vmatpush1.xpose.msra.mxu0 0.0
    %1591 = vmatprep.subr.mxu0 0.0
    %1592 = vmatpush1.xpose.msra.mxu0 0.0
    %1593 = vmatprep.subr.mxu0 0.0
    %1594 = vmatpush1.xpose.msra.mxu0 0.0
    %1595 = vmatprep.subr.mxu0 0.0
    %1596 = vmatpush1.xpose.msra.mxu0 0.0
    %1597 = vmatprep.subr.mxu0 0.0
    %1598 = vmatpush1.xpose.msra.mxu0 0.0
    %1599 = vmatprep.subr.mxu0 0.0
    %1600 = vmatpush1.xpose.msra.mxu0 0.0
    %1601 = vmatprep.subr.mxu0 0.0
    %1602 = vmatpush1.xpose.msra.mxu0 0.0
    %1603 = vmatprep.subr.mxu0 0.0
    %1604 = vmatpush1.xpose.msra.mxu0 0.0
    %1605 = vmatprep.mubr.f32.mxu0 0.0
    %1606 = vmatmul.mubr.f32.gmra.mrb[0].mxu0 %v1525
    %v1607 = vpop.f32.mrb[0].mxu0
    %v1608 = vadd.f32 0.0, %v1607
    %v1609 = vpop.f32.mrb[0].mxu0
    %1610 = vmatprep.mubr.f32.mxu0 0.0
    %1611 = vmatmul.mubr.f32.gmra.mrb[0].mxu0 %v1527
    %v1612 = vpop.f32.mrb[0].mxu0
    %v1613 = vadd.f32 0.0, %v1612
    %v1614 = vpop.f32.mrb[0].mxu0
    %1615 = vmatprep.mubr.f32.mxu0 0.0
    %1616 = vmatmul.mubr.f32.gmra.mrb[0].mxu0 %v1529
    %v1617 = vpop.f32.mrb[0].mxu0
    %v1618 = vadd.f32 0.0, %v1617
    %v1619 = vpop.f32.mrb[0].mxu0
    %1620 = vmatprep.mubr.f32.mxu0 0.0
    %1621 = vmatmul.mubr.f32.gmra.mrb[0].mxu0 %v1531
    %v1622 = vpop.f32.mrb[0].mxu0
    %v1623 = vadd.f32 0.0, %v1622
    %v1624 = vpop.f32.mrb[0].mxu0
    %1625 = vdwg.mxu0
    %v1626 = vsel %vm805, %v1608, -inf
    %1627 = vmax.xlane.f32.xlu0 %v1626
    %v1628 = vpop.xlane.xlu0 %1627
    %v1629 = vsel %vm805, %v1613, -inf
    %1630 = vmax.xlane.f32.xlu0 %v1629
    %v1631 = vpop.xlane.xlu0 %1630
    %v1632 = vsel %vm805, %v1618, -inf
    %1633 = vmax.xlane.f32.xlu0 %v1632
    %v1634 = vpop.xlane.xlu0 %1633
    %v1635 = vsel %vm805, %v1623, -inf
    %1636 = vmax.xlane.f32.xlu0 %v1635
    %v1637 = vpop.xlane.xlu0 %1636
    %v1638 = vsub.f32 %v1608, %v1628
    %v1639 = vsub.f32 %v1613, %v1631
    %v1640 = vsub.f32 %v1618, %v1634
    %v1641 = vsub.f32 %v1623, %v1637
    %v1642 = vmul.f32 %v1638, 1.442695
    %v1643 = vpow.pop %v1642
    %v1644 = vmul.f32 %v1639, 1.442695
    %v1645 = vpow.pop %v1644
    %v1646 = vmul.f32 %v1640, 1.442695
    %v1647 = vpow.pop %v1646
    %v1648 = vmul.f32 %v1641, 1.442695
    %v1649 = vpow.pop %v1648
    %v1650 = vsel %vm805, %v1643, 0.0
    %1651 = vadd.xlane.f32.xlu0 %v1650
    %v1652 = vpop.xlane.xlu0 %1651
    %v1653 = vsel %vm805, %v1645, 0.0
    %1654 = vadd.xlane.f32.xlu0 %v1653
    %v1655 = vpop.xlane.xlu0 %1654
    %v1656 = vsel %vm805, %v1647, 0.0
    %1657 = vadd.xlane.f32.xlu0 %v1656
    %v1658 = vpop.xlane.xlu0 %1657
    %v1659 = vsel %vm805, %v1649, 0.0
    %1660 = vadd.xlane.f32.xlu0 %v1659
    %v1661 = vpop.xlane.xlu0 %1660
    %v1662 = vrcp.pop %v1652
    %v1663 = vrcp.pop %v1655
    %v1664 = vrcp.pop %v1658
    %v1665 = vrcp.pop %v1661
    %v1666 = vmul.f32 %v1643, %v1662
    %v1667 = vmul.f32 %v1645, %v1663
    %v1668 = vmul.f32 %v1647, %v1664
    %v1669 = vmul.f32 %v1649, %v1665
    %1670 = vrot.lane.b32.xlu0 %v1229, 96
    %v1671 = vpop.permute.xlu0 %1670
    %1672 = vrot.lane.b32.xlu0 %v1234, 96
    %v1673 = vpop.permute.xlu0 %1672
    %1674 = vrot.lane.b32.xlu0 %v1239, 96
    %v1675 = vpop.permute.xlu0 %1674
    %1676 = vrot.lane.b32.xlu0 %v1244, 96
    %v1677 = vpop.permute.xlu0 %1676
    %v1683 = vsel %vm805, %v1666, 0
    %v1686 = vsel %vm805, %v1667, 0
    %v1689 = vsel %vm805, %v1668, 0
    %v1692 = vsel %vm805, %v1669, 0
    %1694 = vmatprep.subr.mxu0 0.0
    %1695 = vmatpush1.msra.mxu0 %v1671
    %1696 = vmatprep.subr.mxu0 0.0
    %1697 = vmatpush1.msra.mxu0 %v1673
    %1698 = vmatprep.subr.mxu0 0.0
    %1699 = vmatpush1.msra.mxu0 %v1675
    %1700 = vmatprep.subr.mxu0 0.0
    %1701 = vmatpush1.msra.mxu0 %v1677
    %1702 = vmatprep.subr.mxu0 0.0
    %1703 = vmatpush1.msra.mxu0 0.0
    %1704 = vmatprep.subr.mxu0 0.0
    %1705 = vmatpush1.msra.mxu0 0.0
    %1706 = vmatprep.subr.mxu0 0.0
    %1707 = vmatpush1.msra.mxu0 0.0
    %1708 = vmatprep.subr.mxu0 0.0
    %1709 = vmatpush1.msra.mxu0 0.0
    %1710 = vmatprep.subr.mxu0 0.0
    %1711 = vmatpush1.msra.mxu0 0.0
    %1712 = vmatprep.subr.mxu0 0.0
    %1713 = vmatpush1.msra.mxu0 0.0
    %1714 = vmatprep.subr.mxu0 0.0
    %1715 = vmatpush1.msra.mxu0 0.0
    %1716 = vmatprep.subr.mxu0 0.0
    %1717 = vmatpush1.msra.mxu0 0.0
    %1718 = vmatprep.subr.mxu0 0.0
    %1719 = vmatpush1.msra.mxu0 0.0
    %1720 = vmatprep.subr.mxu0 0.0
    %1721 = vmatpush1.msra.mxu0 0.0
    %1722 = vmatprep.subr.mxu0 0.0
    %1723 = vmatpush1.msra.mxu0 0.0
    %1724 = vmatprep.subr.mxu0 0.0
    %1725 = vmatpush1.msra.mxu0 0.0
    %1726 = vmatprep.subr.mxu0 0.0
    %1727 = vmatpush1.msra.mxu0 0.0
    %1728 = vmatprep.subr.mxu0 0.0
    %1729 = vmatpush1.msra.mxu0 0.0
    %1730 = vmatprep.subr.mxu0 0.0
    %1731 = vmatpush1.msra.mxu0 0.0
    %1732 = vmatprep.subr.mxu0 0.0
    %1733 = vmatpush1.msra.mxu0 0.0
    %1734 = vmatprep.subr.mxu0 0.0
    %1735 = vmatpush1.msra.mxu0 0.0
    %1736 = vmatprep.subr.mxu0 0.0
    %1737 = vmatpush1.msra.mxu0 0.0
    %1738 = vmatprep.subr.mxu0 0.0
    %1739 = vmatpush1.msra.mxu0 0.0
    %1740 = vmatprep.subr.mxu0 0.0
    %1741 = vmatpush1.msra.mxu0 0.0
    %1742 = vmatprep.subr.mxu0 0.0
    %1743 = vmatpush1.msra.mxu0 0.0
    %1744 = vmatprep.subr.mxu0 0.0
    %1745 = vmatpush1.msra.mxu0 0.0
    %1746 = vmatprep.subr.mxu0 0.0
    %1747 = vmatpush1.msra.mxu0 0.0
    %1748 = vmatprep.subr.mxu0 0.0
    %1749 = vmatpush1.msra.mxu0 0.0
    %1750 = vmatprep.subr.mxu0 0.0
    %1751 = vmatpush1.msra.mxu0 0.0
    %1752 = vmatprep.subr.mxu0 0.0
    %1753 = vmatpush1.msra.mxu0 0.0
    %1754 = vmatprep.subr.mxu0 0.0
    %1755 = vmatpush1.msra.mxu0 0.0
    %1756 = vmatprep.subr.mxu0 0.0
    %1757 = vmatpush1.msra.mxu0 0.0
    %1758 = vmatprep.mubr.f32.mxu0 0.0
    %1759 = vmatmul.mubr.f32.gmra.mrb[0].mxu0 %v1683
    %v1760 = vpop.f32.mrb[0].mxu0
    %v1761 = vadd.f32 0.0, %v1760
    %v1762 = vpop.f32.mrb[0].mxu0
    %1763 = vmatprep.mubr.f32.mxu0 0.0
    %1764 = vmatmul.mubr.f32.gmra.mrb[0].mxu0 %v1686
    %v1765 = vpop.f32.mrb[0].mxu0
    %v1766 = vadd.f32 0.0, %v1765
    %v1767 = vpop.f32.mrb[0].mxu0
    %1768 = vmatprep.mubr.f32.mxu0 0.0
    %1769 = vmatmul.mubr.f32.gmra.mrb[0].mxu0 %v1689
    %v1770 = vpop.f32.mrb[0].mxu0
    %v1771 = vadd.f32 0.0, %v1770
    %v1772 = vpop.f32.mrb[0].mxu0
    %1773 = vmatprep.mubr.f32.mxu0 0.0
    %1774 = vmatmul.mubr.f32.gmra.mrb[0].mxu0 %v1692
    %v1775 = vpop.f32.mrb[0].mxu0
    %v1776 = vadd.f32 0.0, %v1775
    %v1777 = vpop.f32.mrb[0].mxu0
    %1778 = vdwg.mxu0
    %v1779 = vld [vmem:[#allocation2 + $0x50] sm:$0xff]
    %v1780 = vld [vmem:[#allocation2 + $0x58] sm:$0xff]
    %v1781 = vld [vmem:[#allocation2 + $0x115] sm:$0x1]
    %v1782 = vlaneseq
    %v1783 = vshrl.u32 %v1782, 7
    %v1784 = vsub.s32 0, %v1783
    %v1785 = vrot.slane %v1781, %v1784
    %1788 = vrot.lane.b32.xlu0 %v1779, 64
    %v1789 = vpop.permute.xlu0 %1788
    %1790 = vrot.lane.b32.xlu0 %v1780, 64
    %v1791 = vpop.permute.xlu0 %1790
    %1795 = vrot.lane.b32.xlu0 %v1785, 64
    %v1796 = vpop.permute.xlu0 %1795
    %v1799 = vsel %vm40, %v1495, 0
    %v1802 = vsel %vm40, %v1500, 0
    %v1805 = vsel %vm40, %v1505, 0
    %v1808 = vsel %vm40, %v1510, 0
    %v1811 = vsel %vm40, %v1761, 0
    %v1814 = vsel %vm40, %v1766, 0
    %v1817 = vsel %vm40, %v1771, 0
    %v1820 = vsel %vm40, %v1776, 0
    %1822 = vmatprep.subr.mxu0 0.0
    %1823 = vmatpush1.msra.mxu0 %v1789
    %1824 = vmatprep.subr.mxu0 0.0
    %1825 = vmatpush1.msra.mxu0 %v1791
    %1826 = vmatprep.subr.mxu0 0.0
    %1827 = vmatpush1.msra.mxu0 0.0
    %1828 = vmatprep.subr.mxu0 0.0
    %1829 = vmatpush1.msra.mxu0 0.0
    %1830 = vmatprep.subr.mxu0 0.0
    %1831 = vmatpush1.msra.mxu0 0.0
    %1832 = vmatprep.subr.mxu0 0.0
    %1833 = vmatpush1.msra.mxu0 0.0
    %1834 = vmatprep.subr.mxu0 0.0
    %1835 = vmatpush1.msra.mxu0 0.0
    %1836 = vmatprep.subr.mxu0 0.0
    %1837 = vmatpush1.msra.mxu0 0.0
    %1838 = vmatprep.subr.mxu0 0.0
    %1839 = vmatpush1.msra.mxu0 0.0
    %1840 = vmatprep.subr.mxu0 0.0
    %1841 = vmatpush1.msra.mxu0 0.0
    %1842 = vmatprep.subr.mxu0 0.0
    %1843 = vmatpush1.msra.mxu0 0.0
    %1844 = vmatprep.subr.mxu0 0.0
    %1845 = vmatpush1.msra.mxu0 0.0
    %1846 = vmatprep.subr.mxu0 0.0
    %1847 = vmatpush1.msra.mxu0 0.0
    %1848 = vmatprep.subr.mxu0 0.0
    %1849 = vmatpush1.msra.mxu0 0.0
    %1850 = vmatprep.subr.mxu0 0.0
    %1851 = vmatpush1.msra.mxu0 0.0
    %1852 = vmatprep.subr.mxu0 0.0
    %1853 = vmatpush1.msra.mxu0 0.0
    %1854 = vmatprep.subr.mxu0 0.0
    %1855 = vmatpush1.msra.mxu0 0.0
    %1856 = vmatprep.subr.mxu0 0.0
    %1857 = vmatpush1.msra.mxu0 0.0
    %1858 = vmatprep.subr.mxu0 0.0
    %1859 = vmatpush1.msra.mxu0 0.0
    %1860 = vmatprep.subr.mxu0 0.0
    %1861 = vmatpush1.msra.mxu0 0.0
    %1862 = vmatprep.subr.mxu0 0.0
    %1863 = vmatpush1.msra.mxu0 0.0
    %1864 = vmatprep.subr.mxu0 0.0
    %1865 = vmatpush1.msra.mxu0 0.0
    %1866 = vmatprep.subr.mxu0 0.0
    %1867 = vmatpush1.msra.mxu0 0.0
    %1868 = vmatprep.subr.mxu0 0.0
    %1869 = vmatpush1.msra.mxu0 0.0
    %1870 = vmatprep.subr.mxu0 0.0
    %1871 = vmatpush1.msra.mxu0 0.0
    %1872 = vmatprep.subr.mxu0 0.0
    %1873 = vmatpush1.msra.mxu0 0.0
    %1874 = vmatprep.subr.mxu0 0.0
    %1875 = vmatpush1.msra.mxu0 0.0
    %1876 = vmatprep.subr.mxu0 0.0
    %1877 = vmatpush1.msra.mxu0 0.0
    %1878 = vmatprep.subr.mxu0 0.0
    %1879 = vmatpush1.msra.mxu0 0.0
    %1880 = vmatprep.subr.mxu0 0.0
    %1881 = vmatpush1.msra.mxu0 0.0
    %1882 = vmatprep.subr.mxu0 0.0
    %1883 = vmatpush1.msra.mxu0 0.0
    %1884 = vmatprep.subr.mxu0 0.0
    %1885 = vmatpush1.msra.mxu0 0.0
    %1886 = vmatprep.mubr.f32.mxu0 0.0
    %1887 = vmatmul.mubr.f32.gmra.mrb[0].mxu0 %v1799
    %v1888 = vpop.f32.mrb[0].mxu0
    %v1889 = vadd.f32 %v1796, %v1888
    %v1890 = vpop.f32.mrb[0].mxu0
    %1891 = vmatprep.mubr.f32.mxu0 0.0
    %1892 = vmatmul.mubr.f32.gmra.mrb[0].mxu0 %v1802
    %v1893 = vpop.f32.mrb[0].mxu0
    %v1894 = vadd.f32 %v1796, %v1893
    %v1895 = vpop.f32.mrb[0].mxu0
    %1896 = vmatprep.mubr.f32.mxu0 0.0
    %1897 = vmatmul.mubr.f32.gmra.mrb[0].mxu0 %v1805
    %v1898 = vpop.f32.mrb[0].mxu0
    %v1899 = vadd.f32 %v1796, %v1898
    %v1900 = vpop.f32.mrb[0].mxu0
    %1901 = vmatprep.mubr.f32.mxu0 0.0
    %1902 = vmatmul.mubr.f32.gmra.mrb[0].mxu0 %v1808
    %v1903 = vpop.f32.mrb[0].mxu0
    %v1904 = vadd.f32 %v1796, %v1903
    %v1905 = vpop.f32.mrb[0].mxu0
    %1906 = vmatprep.mubr.f32.mxu0 0.0
    %1907 = vmatmul.mubr.f32.gmra.mrb[0].mxu0 %v1811
    %v1908 = vpop.f32.mrb[0].mxu0
    %v1909 = vadd.f32 %v1796, %v1908
    %v1910 = vpop.f32.mrb[0].mxu0
    %1911 = vmatprep.mubr.f32.mxu0 0.0
    %1912 = vmatmul.mubr.f32.gmra.mrb[0].mxu0 %v1814
    %v1913 = vpop.f32.mrb[0].mxu0
    %v1914 = vadd.f32 %v1796, %v1913
    %v1915 = vpop.f32.mrb[0].mxu0
    %1916 = vmatprep.mubr.f32.mxu0 0.0
    %1917 = vmatmul.mubr.f32.gmra.mrb[0].mxu0 %v1817
    %v1918 = vpop.f32.mrb[0].mxu0
    %v1919 = vadd.f32 %v1796, %v1918
    %v1920 = vpop.f32.mrb[0].mxu0
    %1921 = vmatprep.mubr.f32.mxu0 0.0
    %1922 = vmatmul.mubr.f32.gmra.mrb[0].mxu0 %v1820
    %v1923 = vpop.f32.mrb[0].mxu0
    %v1924 = vadd.f32 %v1796, %v1923
    %v1925 = vpop.f32.mrb[0].mxu0
    %1926 = vdwg.mxu0
    %v1927 = vadd.f32 %v1889, %v1097
    %v1928 = vadd.f32 %v1894, %v1098
    %v1929 = vadd.f32 %v1899, %v1099
    %v1930 = vadd.f32 %v1904, %v1100
    %v1931 = vadd.f32 %v1909, %v1101
    %v1932 = vadd.f32 %v1914, %v1102
    %v1933 = vadd.f32 %v1919, %v1103
    %v1934 = vadd.f32 %v1924, %v1104
    %v1935 = vld [vmem:[#allocation2 + $0x60] sm:$0xff]
    %v1936 = vld [vmem:[#allocation2 + $0x68] sm:$0xff]
    %v1937 = vld [vmem:[#allocation2 + $0x70] sm:$0xff]
    %v1938 = vld [vmem:[#allocation2 + $0x78] sm:$0xff]
    %v1939 = vld [vmem:[#allocation2 + $0x116] sm:$0x1]
    %v1940 = vlaneseq
    %v1941 = vshrl.u32 %v1940, 7
    %v1942 = vsub.s32 0, %v1941
    %v1943 = vrot.slane %v1939, %v1942
    %1948 = vrot.lane.b32.xlu0 %v1935, 64
    %v1949 = vpop.permute.xlu0 %1948
    %1950 = vrot.lane.b32.xlu0 %v1936, 64
    %v1951 = vpop.permute.xlu0 %1950
    %1952 = vrot.lane.b32.xlu0 %v1937, 64
    %v1953 = vpop.permute.xlu0 %1952
    %1954 = vrot.lane.b32.xlu0 %v1938, 64
    %v1955 = vpop.permute.xlu0 %1954
    %1961 = vrot.lane.b32.xlu0 %v1943, 64
    %v1962 = vpop.permute.xlu0 %1961
    %v1965 = vsel %vm805, %v1927, 0
    %v1968 = vsel %vm805, %v1928, 0
    %v1971 = vsel %vm805, %v1929, 0
    %v1974 = vsel %vm805, %v1930, 0
    %v1977 = vsel %vm805, %v1931, 0
    %v1980 = vsel %vm805, %v1932, 0
    %v1983 = vsel %vm805, %v1933, 0
    %v1986 = vsel %vm805, %v1934, 0
    %1988 = vmatprep.subr.mxu0 0.0
    %1989 = vmatpush1.msra.mxu0 %v1949
    %1990 = vmatprep.subr.mxu0 0.0
    %1991 = vmatpush1.msra.mxu0 %v1951
    %1992 = vmatprep.subr.mxu0 0.0
    %1993 = vmatpush1.msra.mxu0 %v1953
    %1994 = vmatprep.subr.mxu0 0.0
    %1995 = vmatpush1.msra.mxu0 %v1955
    %1996 = vmatprep.subr.mxu0 0.0
    %1997 = vmatpush1.msra.mxu0 0.0
    %1998 = vmatprep.subr.mxu0 0.0
    %1999 = vmatpush1.msra.mxu0 0.0
    %2000 = vmatprep.subr.mxu0 0.0
    %2001 = vmatpush1.msra.mxu0 0.0
    %2002 = vmatprep.subr.mxu0 0.0
    %2003 = vmatpush1.msra.mxu0 0.0
    %2004 = vmatprep.subr.mxu0 0.0
    %2005 = vmatpush1.msra.mxu0 0.0
    %2006 = vmatprep.subr.mxu0 0.0
    %2007 = vmatpush1.msra.mxu0 0.0
    %2008 = vmatprep.subr.mxu0 0.0
    %2009 = vmatpush1.msra.mxu0 0.0
    %2010 = vmatprep.subr.mxu0 0.0
    %2011 = vmatpush1.msra.mxu0 0.0
    %2012 = vmatprep.subr.mxu0 0.0
    %2013 = vmatpush1.msra.mxu0 0.0
    %2014 = vmatprep.subr.mxu0 0.0
    %2015 = vmatpush1.msra.mxu0 0.0
    %2016 = vmatprep.subr.mxu0 0.0
    %2017 = vmatpush1.msra.mxu0 0.0
    %2018 = vmatprep.subr.mxu0 0.0
    %2019 = vmatpush1.msra.mxu0 0.0
    %2020 = vmatprep.subr.mxu0 0.0
    %2021 = vmatpush1.msra.mxu0 0.0
    %2022 = vmatprep.subr.mxu0 0.0
    %2023 = vmatpush1.msra.mxu0 0.0
    %2024 = vmatprep.subr.mxu0 0.0
    %2025 = vmatpush1.msra.mxu0 0.0
    %2026 = vmatprep.subr.mxu0 0.0
    %2027 = vmatpush1.msra.mxu0 0.0
    %2028 = vmatprep.subr.mxu0 0.0
    %2029 = vmatpush1.msra.mxu0 0.0
    %2030 = vmatprep.subr.mxu0 0.0
    %2031 = vmatpush1.msra.mxu0 0.0
    %2032 = vmatprep.subr.mxu0 0.0
    %2033 = vmatpush1.msra.mxu0 0.0
    %2034 = vmatprep.subr.mxu0 0.0
    %2035 = vmatpush1.msra.mxu0 0.0
    %2036 = vmatprep.subr.mxu0 0.0
    %2037 = vmatpush1.msra.mxu0 0.0
    %2038 = vmatprep.subr.mxu0 0.0
    %2039 = vmatpush1.msra.mxu0 0.0
    %2040 = vmatprep.subr.mxu0 0.0
    %2041 = vmatpush1.msra.mxu0 0.0
    %2042 = vmatprep.subr.mxu0 0.0
    %2043 = vmatpush1.msra.mxu0 0.0
    %2044 = vmatprep.subr.mxu0 0.0
    %2045 = vmatpush1.msra.mxu0 0.0
    %2046 = vmatprep.subr.mxu0 0.0
    %2047 = vmatpush1.msra.mxu0 0.0
    %2048 = vmatprep.subr.mxu0 0.0
    %2049 = vmatpush1.msra.mxu0 0.0
    %2050 = vmatprep.subr.mxu0 0.0
    %2051 = vmatpush1.msra.mxu0 0.0
    %2052 = vmatprep.mubr.f32.mxu0 0.0
    %2053 = vmatmul.mubr.f32.gmra.mrb[0].mxu0 %v1965
    %v2054 = vpop.f32.mrb[0].mxu0
    %v2055 = vadd.f32 %v1962, %v2054
    %v2056 = vpop.f32.mrb[0].mxu0
    %2057 = vmatprep.mubr.f32.mxu0 0.0
    %2058 = vmatmul.mubr.f32.gmra.mrb[0].mxu0 %v1968
    %v2059 = vpop.f32.mrb[0].mxu0
    %v2060 = vadd.f32 %v1962, %v2059
    %v2061 = vpop.f32.mrb[0].mxu0
    %2062 = vmatprep.mubr.f32.mxu0 0.0
    %2063 = vmatmul.mubr.f32.gmra.mrb[0].mxu0 %v1971
    %v2064 = vpop.f32.mrb[0].mxu0
    %v2065 = vadd.f32 %v1962, %v2064
    %v2066 = vpop.f32.mrb[0].mxu0
    %2067 = vmatprep.mubr.f32.mxu0 0.0
    %2068 = vmatmul.mubr.f32.gmra.mrb[0].mxu0 %v1974
    %v2069 = vpop.f32.mrb[0].mxu0
    %v2070 = vadd.f32 %v1962, %v2069
    %v2071 = vpop.f32.mrb[0].mxu0
    %2072 = vmatprep.mubr.f32.mxu0 0.0
    %2073 = vmatmul.mubr.f32.gmra.mrb[0].mxu0 %v1977
    %v2074 = vpop.f32.mrb[0].mxu0
    %v2075 = vadd.f32 %v1962, %v2074
    %v2076 = vpop.f32.mrb[0].mxu0
    %2077 = vmatprep.mubr.f32.mxu0 0.0
    %2078 = vmatmul.mubr.f32.gmra.mrb[0].mxu0 %v1980
    %v2079 = vpop.f32.mrb[0].mxu0
    %v2080 = vadd.f32 %v1962, %v2079
    %v2081 = vpop.f32.mrb[0].mxu0
    %2082 = vmatprep.mubr.f32.mxu0 0.0
    %2083 = vmatmul.mubr.f32.gmra.mrb[0].mxu0 %v1983
    %v2084 = vpop.f32.mrb[0].mxu0
    %v2085 = vadd.f32 %v1962, %v2084
    %v2086 = vpop.f32.mrb[0].mxu0
    %2087 = vmatprep.mubr.f32.mxu0 0.0
    %2088 = vmatmul.mubr.f32.gmra.mrb[0].mxu0 %v1986
    %v2089 = vpop.f32.mrb[0].mxu0
    %v2090 = vadd.f32 %v1962, %v2089
    %v2091 = vpop.f32.mrb[0].mxu0
    %2092 = vdwg.mxu0
    %v2093 = vmax.f32 %v2055, 0.0
    %v2094 = vmax.f32 %v2060, 0.0
    %v2095 = vmax.f32 %v2065, 0.0
    %v2096 = vmax.f32 %v2070, 0.0
    %v2097 = vmax.f32 %v2075, 0.0
    %v2098 = vmax.f32 %v2080, 0.0
    %v2099 = vmax.f32 %v2085, 0.0
    %v2100 = vmax.f32 %v2090, 0.0
    %v2101 = vld [vmem:[#allocation2 + $0x70] sm:$0xff]
    %v2102 = vld [vmem:[#allocation2 + $0x78] sm:$0xff]
    %v2103 = vld [vmem:[#allocation2 + $0x80] sm:$0xff]
    %v2104 = vld [vmem:[#allocation2 + $0x88] sm:$0xff]
    %v2105 = vld [vmem:[#allocation2 + $0x117] sm:$0x1]
    %v2106 = vlaneseq
    %v2107 = vshrl.u32 %v2106, 7
    %v2108 = vsub.s32 0, %v2107
    %v2109 = vrot.slane %v2105, %v2108
    %2111 = vrot.lane.b32.xlu0 %v2109, 64
    %v2112 = vpop.permute.xlu0 %2111
    %v2115 = vsel %vm805, %v2093, 0
    %v2118 = vsel %vm805, %v2094, 0
    %v2121 = vsel %vm805, %v2095, 0
    %v2124 = vsel %vm805, %v2096, 0
    %v2127 = vsel %vm805, %v2097, 0
    %v2130 = vsel %vm805, %v2098, 0
    %v2133 = vsel %vm805, %v2099, 0
    %v2136 = vsel %vm805, %v2100, 0
    %2138 = vmatprep.subr.mxu0 0.0
    %2139 = vmatpush1.msra.mxu0 %v2101
    %2140 = vmatprep.subr.mxu0 0.0
    %2141 = vmatpush1.msra.mxu0 %v2102
    %2142 = vmatprep.subr.mxu0 0.0
    %2143 = vmatpush1.msra.mxu0 %v2103
    %2144 = vmatprep.subr.mxu0 0.0
    %2145 = vmatpush1.msra.mxu0 %v2104
    %2146 = vmatprep.subr.mxu0 0.0
    %2147 = vmatpush1.msra.mxu0 0.0
    %2148 = vmatprep.subr.mxu0 0.0
    %2149 = vmatpush1.msra.mxu0 0.0
    %2150 = vmatprep.subr.mxu0 0.0
    %2151 = vmatpush1.msra.mxu0 0.0
    %2152 = vmatprep.subr.mxu0 0.0
    %2153 = vmatpush1.msra.mxu0 0.0
    %2154 = vmatprep.subr.mxu0 0.0
    %2155 = vmatpush1.msra.mxu0 0.0
    %2156 = vmatprep.subr.mxu0 0.0
    %2157 = vmatpush1.msra.mxu0 0.0
    %2158 = vmatprep.subr.mxu0 0.0
    %2159 = vmatpush1.msra.mxu0 0.0
    %2160 = vmatprep.subr.mxu0 0.0
    %2161 = vmatpush1.msra.mxu0 0.0
    %2162 = vmatprep.subr.mxu0 0.0
    %2163 = vmatpush1.msra.mxu0 0.0
    %2164 = vmatprep.subr.mxu0 0.0
    %2165 = vmatpush1.msra.mxu0 0.0
    %2166 = vmatprep.subr.mxu0 0.0
    %2167 = vmatpush1.msra.mxu0 0.0
    %2168 = vmatprep.subr.mxu0 0.0
    %2169 = vmatpush1.msra.mxu0 0.0
    %2170 = vmatprep.subr.mxu0 0.0
    %2171 = vmatpush1.msra.mxu0 0.0
    %2172 = vmatprep.subr.mxu0 0.0
    %2173 = vmatpush1.msra.mxu0 0.0
    %2174 = vmatprep.subr.mxu0 0.0
    %2175 = vmatpush1.msra.mxu0 0.0
    %2176 = vmatprep.subr.mxu0 0.0
    %2177 = vmatpush1.msra.mxu0 0.0
    %2178 = vmatprep.subr.mxu0 0.0
    %2179 = vmatpush1.msra.mxu0 0.0
    %2180 = vmatprep.subr.mxu0 0.0
    %2181 = vmatpush1.msra.mxu0 0.0
    %2182 = vmatprep.subr.mxu0 0.0
    %2183 = vmatpush1.msra.mxu0 0.0
    %2184 = vmatprep.subr.mxu0 0.0
    %2185 = vmatpush1.msra.mxu0 0.0
    %2186 = vmatprep.subr.mxu0 0.0
    %2187 = vmatpush1.msra.mxu0 0.0
    %2188 = vmatprep.subr.mxu0 0.0
    %2189 = vmatpush1.msra.mxu0 0.0
    %2190 = vmatprep.subr.mxu0 0.0
    %2191 = vmatpush1.msra.mxu0 0.0
    %2192 = vmatprep.subr.mxu0 0.0
    %2193 = vmatpush1.msra.mxu0 0.0
    %2194 = vmatprep.subr.mxu0 0.0
    %2195 = vmatpush1.msra.mxu0 0.0
    %2196 = vmatprep.subr.mxu0 0.0
    %2197 = vmatpush1.msra.mxu0 0.0
    %2198 = vmatprep.subr.mxu0 0.0
    %2199 = vmatpush1.msra.mxu0 0.0
    %2200 = vmatprep.subr.mxu0 0.0
    %2201 = vmatpush1.msra.mxu0 0.0
    %2202 = vmatprep.mubr.f32.mxu0 0.0
    %2203 = vmatmul.mubr.f32.gmra.mrb[0].mxu0 %v2115
    %v2204 = vpop.f32.mrb[0].mxu0
    %v2205 = vadd.f32 %v2112, %v2204
    %v2206 = vpop.f32.mrb[0].mxu0
    %2207 = vmatprep.mubr.f32.mxu0 0.0
    %2208 = vmatmul.mubr.f32.gmra.mrb[0].mxu0 %v2118
    %v2209 = vpop.f32.mrb[0].mxu0
    %v2210 = vadd.f32 %v2112, %v2209
    %v2211 = vpop.f32.mrb[0].mxu0
    %2212 = vmatprep.mubr.f32.mxu0 0.0
    %2213 = vmatmul.mubr.f32.gmra.mrb[0].mxu0 %v2121
    %v2214 = vpop.f32.mrb[0].mxu0
    %v2215 = vadd.f32 %v2112, %v2214
    %v2216 = vpop.f32.mrb[0].mxu0
    %2217 = vmatprep.mubr.f32.mxu0 0.0
    %2218 = vmatmul.mubr.f32.gmra.mrb[0].mxu0 %v2124
    %v2219 = vpop.f32.mrb[0].mxu0
    %v2220 = vadd.f32 %v2112, %v2219
    %v2221 = vpop.f32.mrb[0].mxu0
    %2222 = vmatprep.mubr.f32.mxu0 0.0
    %2223 = vmatmul.mubr.f32.gmra.mrb[0].mxu0 %v2127
    %v2224 = vpop.f32.mrb[0].mxu0
    %v2225 = vadd.f32 %v2112, %v2224
    %v2226 = vpop.f32.mrb[0].mxu0
    %2227 = vmatprep.mubr.f32.mxu0 0.0
    %2228 = vmatmul.mubr.f32.gmra.mrb[0].mxu0 %v2130
    %v2229 = vpop.f32.mrb[0].mxu0
    %v2230 = vadd.f32 %v2112, %v2229
    %v2231 = vpop.f32.mrb[0].mxu0
    %2232 = vmatprep.mubr.f32.mxu0 0.0
    %2233 = vmatmul.mubr.f32.gmra.mrb[0].mxu0 %v2133
    %v2234 = vpop.f32.mrb[0].mxu0
    %v2235 = vadd.f32 %v2112, %v2234
    %v2236 = vpop.f32.mrb[0].mxu0
    %2237 = vmatprep.mubr.f32.mxu0 0.0
    %2238 = vmatmul.mubr.f32.gmra.mrb[0].mxu0 %v2136
    %v2239 = vpop.f32.mrb[0].mxu0
    %v2240 = vadd.f32 %v2112, %v2239
    %v2241 = vpop.f32.mrb[0].mxu0
    %2242 = vdwg.mxu0
    %v2243 = vadd.f32 %v2205, %v1927
    %v2244 = vadd.f32 %v2210, %v1928
    %v2245 = vadd.f32 %v2215, %v1929
    %v2246 = vadd.f32 %v2220, %v1930
    %v2247 = vadd.f32 %v2225, %v1931
    %v2248 = vadd.f32 %v2230, %v1932
    %v2249 = vadd.f32 %v2235, %v1933
    %v2250 = vadd.f32 %v2240, %v1934
    %v2251 = vld [vmem:[#allocation2 + $0x80] sm:$0xff]
    %v2252 = vld [vmem:[#allocation2 + $0x88] sm:$0xff]
    %v2253 = vld [vmem:[#allocation2 + $0x90] sm:$0xff]
    %v2254 = vld [vmem:[#allocation2 + $0x98] sm:$0xff]
    %v2255 = vld [vmem:[#allocation2 + $0x118] sm:$0x1]
    %v2256 = vlaneseq
    %v2257 = vshrl.u32 %v2256, 7
    %v2258 = vsub.s32 0, %v2257
    %v2259 = vrot.slane %v2255, %v2258
    %2264 = vrot.lane.b32.xlu0 %v2251, 64
    %v2265 = vpop.permute.xlu0 %2264
    %2266 = vrot.lane.b32.xlu0 %v2252, 64
    %v2267 = vpop.permute.xlu0 %2266
    %2268 = vrot.lane.b32.xlu0 %v2253, 64
    %v2269 = vpop.permute.xlu0 %2268
    %2270 = vrot.lane.b32.xlu0 %v2254, 64
    %v2271 = vpop.permute.xlu0 %2270
    %2277 = vrot.lane.b32.xlu0 %v2259, 64
    %v2278 = vpop.permute.xlu0 %2277
    %v2281 = vsel %vm805, %v2243, 0
    %v2284 = vsel %vm805, %v2244, 0
    %v2287 = vsel %vm805, %v2245, 0
    %v2290 = vsel %vm805, %v2246, 0
    %v2293 = vsel %vm805, %v2247, 0
    %v2296 = vsel %vm805, %v2248, 0
    %v2299 = vsel %vm805, %v2249, 0
    %v2302 = vsel %vm805, %v2250, 0
    %2304 = vmatprep.subr.mxu0 0.0
    %2305 = vmatpush1.msra.mxu0 %v2265
    %2306 = vmatprep.subr.mxu0 0.0
    %2307 = vmatpush1.msra.mxu0 %v2267
    %2308 = vmatprep.subr.mxu0 0.0
    %2309 = vmatpush1.msra.mxu0 %v2269
    %2310 = vmatprep.subr.mxu0 0.0
    %2311 = vmatpush1.msra.mxu0 %v2271
    %2312 = vmatprep.subr.mxu0 0.0
    %2313 = vmatpush1.msra.mxu0 0.0
    %2314 = vmatprep.subr.mxu0 0.0
    %2315 = vmatpush1.msra.mxu0 0.0
    %2316 = vmatprep.subr.mxu0 0.0
    %2317 = vmatpush1.msra.mxu0 0.0
    %2318 = vmatprep.subr.mxu0 0.0
    %2319 = vmatpush1.msra.mxu0 0.0
    %2320 = vmatprep.subr.mxu0 0.0
    %2321 = vmatpush1.msra.mxu0 0.0
    %2322 = vmatprep.subr.mxu0 0.0
    %2323 = vmatpush1.msra.mxu0 0.0
    %2324 = vmatprep.subr.mxu0 0.0
    %2325 = vmatpush1.msra.mxu0 0.0
    %2326 = vmatprep.subr.mxu0 0.0
    %2327 = vmatpush1.msra.mxu0 0.0
    %2328 = vmatprep.subr.mxu0 0.0
    %2329 = vmatpush1.msra.mxu0 0.0
    %2330 = vmatprep.subr.mxu0 0.0
    %2331 = vmatpush1.msra.mxu0 0.0
    %2332 = vmatprep.subr.mxu0 0.0
    %2333 = vmatpush1.msra.mxu0 0.0
    %2334 = vmatprep.subr.mxu0 0.0
    %2335 = vmatpush1.msra.mxu0 0.0
    %2336 = vmatprep.subr.mxu0 0.0
    %2337 = vmatpush1.msra.mxu0 0.0
    %2338 = vmatprep.subr.mxu0 0.0
    %2339 = vmatpush1.msra.mxu0 0.0
    %2340 = vmatprep.subr.mxu0 0.0
    %2341 = vmatpush1.msra.mxu0 0.0
    %2342 = vmatprep.subr.mxu0 0.0
    %2343 = vmatpush1.msra.mxu0 0.0
    %2344 = vmatprep.subr.mxu0 0.0
    %2345 = vmatpush1.msra.mxu0 0.0
    %2346 = vmatprep.subr.mxu0 0.0
    %2347 = vmatpush1.msra.mxu0 0.0
    %2348 = vmatprep.subr.mxu0 0.0
    %2349 = vmatpush1.msra.mxu0 0.0
    %2350 = vmatprep.subr.mxu0 0.0
    %2351 = vmatpush1.msra.mxu0 0.0
    %2352 = vmatprep.subr.mxu0 0.0
    %2353 = vmatpush1.msra.mxu0 0.0
    %2354 = vmatprep.subr.mxu0 0.0
    %2355 = vmatpush1.msra.mxu0 0.0
    %2356 = vmatprep.subr.mxu0 0.0
    %2357 = vmatpush1.msra.mxu0 0.0
    %2358 = vmatprep.subr.mxu0 0.0
    %2359 = vmatpush1.msra.mxu0 0.0
    %2360 = vmatprep.subr.mxu0 0.0
    %2361 = vmatpush1.msra.mxu0 0.0
    %2362 = vmatprep.subr.mxu0 0.0
    %2363 = vmatpush1.msra.mxu0 0.0
    %2364 = vmatprep.subr.mxu0 0.0
    %2365 = vmatpush1.msra.mxu0 0.0
    %2366 = vmatprep.subr.mxu0 0.0
    %2367 = vmatpush1.msra.mxu0 0.0
    %2368 = vmatprep.mubr.f32.mxu0 0.0
    %2369 = vmatmul.mubr.f32.gmra.mrb[0].mxu0 %v2281
    %v2370 = vpop.f32.mrb[0].mxu0
    %v2371 = vadd.f32 %v2278, %v2370
    %v2372 = vpop.f32.mrb[0].mxu0
    %2373 = vmatprep.mubr.f32.mxu0 0.0
    %2374 = vmatmul.mubr.f32.gmra.mrb[0].mxu0 %v2284
    %v2375 = vpop.f32.mrb[0].mxu0
    %v2376 = vadd.f32 %v2278, %v2375
    %v2377 = vpop.f32.mrb[0].mxu0
    %2378 = vmatprep.mubr.f32.mxu0 0.0
    %2379 = vmatmul.mubr.f32.gmra.mrb[0].mxu0 %v2287
    %v2380 = vpop.f32.mrb[0].mxu0
    %v2381 = vadd.f32 %v2278, %v2380
    %v2382 = vpop.f32.mrb[0].mxu0
    %2383 = vmatprep.mubr.f32.mxu0 0.0
    %2384 = vmatmul.mubr.f32.gmra.mrb[0].mxu0 %v2290
    %v2385 = vpop.f32.mrb[0].mxu0
    %v2386 = vadd.f32 %v2278, %v2385
    %v2387 = vpop.f32.mrb[0].mxu0
    %2388 = vmatprep.mubr.f32.mxu0 0.0
    %2389 = vmatmul.mubr.f32.gmra.mrb[0].mxu0 %v2293
    %v2390 = vpop.f32.mrb[0].mxu0
    %v2391 = vadd.f32 %v2278, %v2390
    %v2392 = vpop.f32.mrb[0].mxu0
    %2393 = vmatprep.mubr.f32.mxu0 0.0
    %2394 = vmatmul.mubr.f32.gmra.mrb[0].mxu0 %v2296
    %v2395 = vpop.f32.mrb[0].mxu0
    %v2396 = vadd.f32 %v2278, %v2395
    %v2397 = vpop.f32.mrb[0].mxu0
    %2398 = vmatprep.mubr.f32.mxu0 0.0
    %2399 = vmatmul.mubr.f32.gmra.mrb[0].mxu0 %v2299
    %v2400 = vpop.f32.mrb[0].mxu0
    %v2401 = vadd.f32 %v2278, %v2400
    %v2402 = vpop.f32.mrb[0].mxu0
    %2403 = vmatprep.mubr.f32.mxu0 0.0
    %2404 = vmatmul.mubr.f32.gmra.mrb[0].mxu0 %v2302
    %v2405 = vpop.f32.mrb[0].mxu0
    %v2406 = vadd.f32 %v2278, %v2405
    %v2407 = vpop.f32.mrb[0].mxu0
    %2408 = vdwg.mxu0
    %2409 = vrot.lane.b32.xlu0 %v120, 96
    %v2410 = vpop.permute.xlu0 %2409
    %2411 = vrot.lane.b32.xlu0 %v125, 96
    %v2412 = vpop.permute.xlu0 %2411
    %v2414 = vsel %vm40, %v2371, 0
    %v2417 = vsel %vm40, %v2376, 0
    %v2420 = vsel %vm40, %v2381, 0
    %v2423 = vsel %vm40, %v2386, 0
    %v2425 = vsel %vm40, %v2410, 0
    %v2427 = vsel %vm40, %v2412, 0
    %2429 = vmatprep.subr.mxu0 0.0
    %2430 = vmatpush1.xpose.msra.mxu0 %v2425
    %2431 = vmatprep.subr.mxu0 0.0
    %2432 = vmatpush1.xpose.msra.mxu0 %v2427
    %2433 = vmatprep.subr.mxu0 0.0
    %2434 = vmatpush1.xpose.msra.mxu0 0.0
    %2435 = vmatprep.subr.mxu0 0.0
    %2436 = vmatpush1.xpose.msra.mxu0 0.0
    %2437 = vmatprep.subr.mxu0 0.0
    %2438 = vmatpush1.xpose.msra.mxu0 0.0
    %2439 = vmatprep.subr.mxu0 0.0
    %2440 = vmatpush1.xpose.msra.mxu0 0.0
    %2441 = vmatprep.subr.mxu0 0.0
    %2442 = vmatpush1.xpose.msra.mxu0 0.0
    %2443 = vmatprep.subr.mxu0 0.0
    %2444 = vmatpush1.xpose.msra.mxu0 0.0
    %2445 = vmatprep.subr.mxu0 0.0
    %2446 = vmatpush1.xpose.msra.mxu0 0.0
    %2447 = vmatprep.subr.mxu0 0.0
    %2448 = vmatpush1.xpose.msra.mxu0 0.0
    %2449 = vmatprep.subr.mxu0 0.0
    %2450 = vmatpush1.xpose.msra.mxu0 0.0
    %2451 = vmatprep.subr.mxu0 0.0
    %2452 = vmatpush1.xpose.msra.mxu0 0.0
    %2453 = vmatprep.subr.mxu0 0.0
    %2454 = vmatpush1.xpose.msra.mxu0 0.0
    %2455 = vmatprep.subr.mxu0 0.0
    %2456 = vmatpush1.xpose.msra.mxu0 0.0
    %2457 = vmatprep.subr.mxu0 0.0
    %2458 = vmatpush1.xpose.msra.mxu0 0.0
    %2459 = vmatprep.subr.mxu0 0.0
    %2460 = vmatpush1.xpose.msra.mxu0 0.0
    %2461 = vmatprep.subr.mxu0 0.0
    %2462 = vmatpush1.xpose.msra.mxu0 0.0
    %2463 = vmatprep.subr.mxu0 0.0
    %2464 = vmatpush1.xpose.msra.mxu0 0.0
    %2465 = vmatprep.subr.mxu0 0.0
    %2466 = vmatpush1.xpose.msra.mxu0 0.0
    %2467 = vmatprep.subr.mxu0 0.0
    %2468 = vmatpush1.xpose.msra.mxu0 0.0
    %2469 = vmatprep.subr.mxu0 0.0
    %2470 = vmatpush1.xpose.msra.mxu0 0.0
    %2471 = vmatprep.subr.mxu0 0.0
    %2472 = vmatpush1.xpose.msra.mxu0 0.0
    %2473 = vmatprep.subr.mxu0 0.0
    %2474 = vmatpush1.xpose.msra.mxu0 0.0
    %2475 = vmatprep.subr.mxu0 0.0
    %2476 = vmatpush1.xpose.msra.mxu0 0.0
    %2477 = vmatprep.subr.mxu0 0.0
    %2478 = vmatpush1.xpose.msra.mxu0 0.0
    %2479 = vmatprep.subr.mxu0 0.0
    %2480 = vmatpush1.xpose.msra.mxu0 0.0
    %2481 = vmatprep.subr.mxu0 0.0
    %2482 = vmatpush1.xpose.msra.mxu0 0.0
    %2483 = vmatprep.subr.mxu0 0.0
    %2484 = vmatpush1.xpose.msra.mxu0 0.0
    %2485 = vmatprep.subr.mxu0 0.0
    %2486 = vmatpush1.xpose.msra.mxu0 0.0
    %2487 = vmatprep.subr.mxu0 0.0
    %2488 = vmatpush1.xpose.msra.mxu0 0.0
    %2489 = vmatprep.subr.mxu0 0.0
    %2490 = vmatpush1.xpose.msra.mxu0 0.0
    %2491 = vmatprep.subr.mxu0 0.0
    %2492 = vmatpush1.xpose.msra.mxu0 0.0
    %2493 = vmatprep.mubr.f32.mxu0 0.0
    %2494 = vmatmul.mubr.f32.gmra.mrb[0].mxu0 %v2414
    %v2495 = vpop.f32.mrb[0].mxu0
    %v2496 = vadd.f32 0.0, %v2495
    %v2497 = vpop.f32.mrb[0].mxu0
    %2498 = vmatprep.mubr.f32.mxu0 0.0
    %2499 = vmatmul.mubr.f32.gmra.mrb[0].mxu0 %v2417
    %v2500 = vpop.f32.mrb[0].mxu0
    %v2501 = vadd.f32 0.0, %v2500
    %v2502 = vpop.f32.mrb[0].mxu0
    %2503 = vmatprep.mubr.f32.mxu0 0.0
    %2504 = vmatmul.mubr.f32.gmra.mrb[0].mxu0 %v2420
    %v2505 = vpop.f32.mrb[0].mxu0
    %v2506 = vadd.f32 0.0, %v2505
    %v2507 = vpop.f32.mrb[0].mxu0
    %2508 = vmatprep.mubr.f32.mxu0 0.0
    %2509 = vmatmul.mubr.f32.gmra.mrb[0].mxu0 %v2423
    %v2510 = vpop.f32.mrb[0].mxu0
    %v2511 = vadd.f32 0.0, %v2510
    %v2512 = vpop.f32.mrb[0].mxu0
    %2513 = vdwg.mxu0
    %v2514 = vsel %vm40, %v2496, -inf
    %2515 = vmax.xlane.f32.xlu0 %v2514
    %v2516 = vpop.xlane.xlu0 %2515
    %v2517 = vsel %vm40, %v2501, -inf
    %2518 = vmax.xlane.f32.xlu0 %v2517
    %v2519 = vpop.xlane.xlu0 %2518
    %v2520 = vsel %vm40, %v2506, -inf
    %2521 = vmax.xlane.f32.xlu0 %v2520
    %v2522 = vpop.xlane.xlu0 %2521
    %v2523 = vsel %vm40, %v2511, -inf
    %2524 = vmax.xlane.f32.xlu0 %v2523
    %v2525 = vpop.xlane.xlu0 %2524
    %v2526 = vsub.f32 %v2496, %v2516
    %v2527 = vsub.f32 %v2501, %v2519
    %v2528 = vsub.f32 %v2506, %v2522
    %v2529 = vsub.f32 %v2511, %v2525
    %v2530 = vmul.f32 %v2526, 1.442695
    %v2531 = vpow.pop %v2530
    %v2532 = vmul.f32 %v2527, 1.442695
    %v2533 = vpow.pop %v2532
    %v2534 = vmul.f32 %v2528, 1.442695
    %v2535 = vpow.pop %v2534
    %v2536 = vmul.f32 %v2529, 1.442695
    %v2537 = vpow.pop %v2536
    %v2538 = vsel %vm40, %v2531, 0.0
    %2539 = vadd.xlane.f32.xlu0 %v2538
    %v2540 = vpop.xlane.xlu0 %2539
    %v2541 = vsel %vm40, %v2533, 0.0
    %2542 = vadd.xlane.f32.xlu0 %v2541
    %v2543 = vpop.xlane.xlu0 %2542
    %v2544 = vsel %vm40, %v2535, 0.0
    %2545 = vadd.xlane.f32.xlu0 %v2544
    %v2546 = vpop.xlane.xlu0 %2545
    %v2547 = vsel %vm40, %v2537, 0.0
    %2548 = vadd.xlane.f32.xlu0 %v2547
    %v2549 = vpop.xlane.xlu0 %2548
    %v2550 = vrcp.pop %v2540
    %v2551 = vrcp.pop %v2543
    %v2552 = vrcp.pop %v2546
    %v2553 = vrcp.pop %v2549
    %v2554 = vmul.f32 %v2531, %v2550
    %v2555 = vmul.f32 %v2533, %v2551
    %v2556 = vmul.f32 %v2535, %v2552
    %v2557 = vmul.f32 %v2537, %v2553
    %2558 = vrot.lane.b32.xlu0 %v120, 80
    %v2559 = vpop.permute.xlu0 %2558
    %2560 = vrot.lane.b32.xlu0 %v125, 80
    %v2561 = vpop.permute.xlu0 %2560
    %v2565 = vsel %vm40, %v2554, 0
    %v2568 = vsel %vm40, %v2555, 0
    %v2571 = vsel %vm40, %v2556, 0
    %v2574 = vsel %vm40, %v2557, 0
    %2576 = vmatprep.subr.mxu0 0.0
    %2577 = vmatpush1.msra.mxu0 %v2559
    %2578 = vmatprep.subr.mxu0 0.0
    %2579 = vmatpush1.msra.mxu0 %v2561
    %2580 = vmatprep.subr.mxu0 0.0
    %2581 = vmatpush1.msra.mxu0 0.0
    %2582 = vmatprep.subr.mxu0 0.0
    %2583 = vmatpush1.msra.mxu0 0.0
    %2584 = vmatprep.subr.mxu0 0.0
    %2585 = vmatpush1.msra.mxu0 0.0
    %2586 = vmatprep.subr.mxu0 0.0
    %2587 = vmatpush1.msra.mxu0 0.0
    %2588 = vmatprep.subr.mxu0 0.0
    %2589 = vmatpush1.msra.mxu0 0.0
    %2590 = vmatprep.subr.mxu0 0.0
    %2591 = vmatpush1.msra.mxu0 0.0
    %2592 = vmatprep.subr.mxu0 0.0
    %2593 = vmatpush1.msra.mxu0 0.0
    %2594 = vmatprep.subr.mxu0 0.0
    %2595 = vmatpush1.msra.mxu0 0.0
    %2596 = vmatprep.subr.mxu0 0.0
    %2597 = vmatpush1.msra.mxu0 0.0
    %2598 = vmatprep.subr.mxu0 0.0
    %2599 = vmatpush1.msra.mxu0 0.0
    %2600 = vmatprep.subr.mxu0 0.0
    %2601 = vmatpush1.msra.mxu0 0.0
    %2602 = vmatprep.subr.mxu0 0.0
    %2603 = vmatpush1.msra.mxu0 0.0
    %2604 = vmatprep.subr.mxu0 0.0
    %2605 = vmatpush1.msra.mxu0 0.0
    %2606 = vmatprep.subr.mxu0 0.0
    %2607 = vmatpush1.msra.mxu0 0.0
    %2608 = vmatprep.subr.mxu0 0.0
    %2609 = vmatpush1.msra.mxu0 0.0
    %2610 = vmatprep.subr.mxu0 0.0
    %2611 = vmatpush1.msra.mxu0 0.0
    %2612 = vmatprep.subr.mxu0 0.0
    %2613 = vmatpush1.msra.mxu0 0.0
    %2614 = vmatprep.subr.mxu0 0.0
    %2615 = vmatpush1.msra.mxu0 0.0
    %2616 = vmatprep.subr.mxu0 0.0
    %2617 = vmatpush1.msra.mxu0 0.0
    %2618 = vmatprep.subr.mxu0 0.0
    %2619 = vmatpush1.msra.mxu0 0.0
    %2620 = vmatprep.subr.mxu0 0.0
    %2621 = vmatpush1.msra.mxu0 0.0
    %2622 = vmatprep.subr.mxu0 0.0
    %2623 = vmatpush1.msra.mxu0 0.0
    %2624 = vmatprep.subr.mxu0 0.0
    %2625 = vmatpush1.msra.mxu0 0.0
    %2626 = vmatprep.subr.mxu0 0.0
    %2627 = vmatpush1.msra.mxu0 0.0
    %2628 = vmatprep.subr.mxu0 0.0
    %2629 = vmatpush1.msra.mxu0 0.0
    %2630 = vmatprep.subr.mxu0 0.0
    %2631 = vmatpush1.msra.mxu0 0.0
    %2632 = vmatprep.subr.mxu0 0.0
    %2633 = vmatpush1.msra.mxu0 0.0
    %2634 = vmatprep.subr.mxu0 0.0
    %2635 = vmatpush1.msra.mxu0 0.0
    %2636 = vmatprep.subr.mxu0 0.0
    %2637 = vmatpush1.msra.mxu0 0.0
    %2638 = vmatprep.subr.mxu0 0.0
    %2639 = vmatpush1.msra.mxu0 0.0
    %2640 = vmatprep.mubr.f32.mxu0 0.0
    %2641 = vmatmul.mubr.f32.gmra.mrb[0].mxu0 %v2565
    %v2642 = vpop.f32.mrb[0].mxu0
    %v2643 = vadd.f32 0.0, %v2642
    %v2644 = vpop.f32.mrb[0].mxu0
    %2645 = vmatprep.mubr.f32.mxu0 0.0
    %2646 = vmatmul.mubr.f32.gmra.mrb[0].mxu0 %v2568
    %v2647 = vpop.f32.mrb[0].mxu0
    %v2648 = vadd.f32 0.0, %v2647
    %v2649 = vpop.f32.mrb[0].mxu0
    %2650 = vmatprep.mubr.f32.mxu0 0.0
    %2651 = vmatmul.mubr.f32.gmra.mrb[0].mxu0 %v2571
    %v2652 = vpop.f32.mrb[0].mxu0
    %v2653 = vadd.f32 0.0, %v2652
    %v2654 = vpop.f32.mrb[0].mxu0
    %2655 = vmatprep.mubr.f32.mxu0 0.0
    %2656 = vmatmul.mubr.f32.gmra.mrb[0].mxu0 %v2574
    %v2657 = vpop.f32.mrb[0].mxu0
    %v2658 = vadd.f32 0.0, %v2657
    %v2659 = vpop.f32.mrb[0].mxu0
    %2660 = vdwg.mxu0
    %2661 = vrot.lane.b32.xlu0 %v130, 96
    %v2662 = vpop.permute.xlu0 %2661
    %2663 = vrot.lane.b32.xlu0 %v135, 96
    %v2664 = vpop.permute.xlu0 %2663
    %v2666 = vsel %vm40, %v2391, 0
    %v2669 = vsel %vm40, %v2396, 0
    %v2672 = vsel %vm40, %v2401, 0
    %v2675 = vsel %vm40, %v2406, 0
    %v2677 = vsel %vm40, %v2662, 0
    %v2679 = vsel %vm40, %v2664, 0
    %2681 = vmatprep.subr.mxu0 0.0
    %2682 = vmatpush1.xpose.msra.mxu0 %v2677
    %2683 = vmatprep.subr.mxu0 0.0
    %2684 = vmatpush1.xpose.msra.mxu0 %v2679
    %2685 = vmatprep.subr.mxu0 0.0
    %2686 = vmatpush1.xpose.msra.mxu0 0.0
    %2687 = vmatprep.subr.mxu0 0.0
    %2688 = vmatpush1.xpose.msra.mxu0 0.0
    %2689 = vmatprep.subr.mxu0 0.0
    %2690 = vmatpush1.xpose.msra.mxu0 0.0
    %2691 = vmatprep.subr.mxu0 0.0
    %2692 = vmatpush1.xpose.msra.mxu0 0.0
    %2693 = vmatprep.subr.mxu0 0.0
    %2694 = vmatpush1.xpose.msra.mxu0 0.0
    %2695 = vmatprep.subr.mxu0 0.0
    %2696 = vmatpush1.xpose.msra.mxu0 0.0
    %2697 = vmatprep.subr.mxu0 0.0
    %2698 = vmatpush1.xpose.msra.mxu0 0.0
    %2699 = vmatprep.subr.mxu0 0.0
    %2700 = vmatpush1.xpose.msra.mxu0 0.0
    %2701 = vmatprep.subr.mxu0 0.0
    %2702 = vmatpush1.xpose.msra.mxu0 0.0
    %2703 = vmatprep.subr.mxu0 0.0
    %2704 = vmatpush1.xpose.msra.mxu0 0.0
    %2705 = vmatprep.subr.mxu0 0.0
    %2706 = vmatpush1.xpose.msra.mxu0 0.0
    %2707 = vmatprep.subr.mxu0 0.0
    %2708 = vmatpush1.xpose.msra.mxu0 0.0
    %2709 = vmatprep.subr.mxu0 0.0
    %2710 = vmatpush1.xpose.msra.mxu0 0.0
    %2711 = vmatprep.subr.mxu0 0.0
    %2712 = vmatpush1.xpose.msra.mxu0 0.0
    %2713 = vmatprep.subr.mxu0 0.0
    %2714 = vmatpush1.xpose.msra.mxu0 0.0
    %2715 = vmatprep.subr.mxu0 0.0
    %2716 = vmatpush1.xpose.msra.mxu0 0.0
    %2717 = vmatprep.subr.mxu0 0.0
    %2718 = vmatpush1.xpose.msra.mxu0 0.0
    %2719 = vmatprep.subr.mxu0 0.0
    %2720 = vmatpush1.xpose.msra.mxu0 0.0
    %2721 = vmatprep.subr.mxu0 0.0
    %2722 = vmatpush1.xpose.msra.mxu0 0.0
    %2723 = vmatprep.subr.mxu0 0.0
    %2724 = vmatpush1.xpose.msra.mxu0 0.0
    %2725 = vmatprep.subr.mxu0 0.0
    %2726 = vmatpush1.xpose.msra.mxu0 0.0
    %2727 = vmatprep.subr.mxu0 0.0
    %2728 = vmatpush1.xpose.msra.mxu0 0.0
    %2729 = vmatprep.subr.mxu0 0.0
    %2730 = vmatpush1.xpose.msra.mxu0 0.0
    %2731 = vmatprep.subr.mxu0 0.0
    %2732 = vmatpush1.xpose.msra.mxu0 0.0
    %2733 = vmatprep.subr.mxu0 0.0
    %2734 = vmatpush1.xpose.msra.mxu0 0.0
    %2735 = vmatprep.subr.mxu0 0.0
    %2736 = vmatpush1.xpose.msra.mxu0 0.0
    %2737 = vmatprep.subr.mxu0 0.0
    %2738 = vmatpush1.xpose.msra.mxu0 0.0
    %2739 = vmatprep.subr.mxu0 0.0
    %2740 = vmatpush1.xpose.msra.mxu0 0.0
    %2741 = vmatprep.subr.mxu0 0.0
    %2742 = vmatpush1.xpose.msra.mxu0 0.0
    %2743 = vmatprep.subr.mxu0 0.0
    %2744 = vmatpush1.xpose.msra.mxu0 0.0
    %2745 = vmatprep.mubr.f32.mxu0 0.0
    %2746 = vmatmul.mubr.f32.gmra.mrb[0].mxu0 %v2666
    %v2747 = vpop.f32.mrb[0].mxu0
    %v2748 = vadd.f32 0.0, %v2747
    %v2749 = vpop.f32.mrb[0].mxu0
    %2750 = vmatprep.mubr.f32.mxu0 0.0
    %2751 = vmatmul.mubr.f32.gmra.mrb[0].mxu0 %v2669
    %v2752 = vpop.f32.mrb[0].mxu0
    %v2753 = vadd.f32 0.0, %v2752
    %v2754 = vpop.f32.mrb[0].mxu0
    %2755 = vmatprep.mubr.f32.mxu0 0.0
    %2756 = vmatmul.mubr.f32.gmra.mrb[0].mxu0 %v2672
    %v2757 = vpop.f32.mrb[0].mxu0
    %v2758 = vadd.f32 0.0, %v2757
    %v2759 = vpop.f32.mrb[0].mxu0
    %2760 = vmatprep.mubr.f32.mxu0 0.0
    %2761 = vmatmul.mubr.f32.gmra.mrb[0].mxu0 %v2675
    %v2762 = vpop.f32.mrb[0].mxu0
    %v2763 = vadd.f32 0.0, %v2762
    %v2764 = vpop.f32.mrb[0].mxu0
    %2765 = vdwg.mxu0
    %v2766 = vsel %vm40, %v2748, -inf
    %2767 = vmax.xlane.f32.xlu0 %v2766
    %v2768 = vpop.xlane.xlu0 %2767
    %v2769 = vsel %vm40, %v2753, -inf
    %2770 = vmax.xlane.f32.xlu0 %v2769
    %v2771 = vpop.xlane.xlu0 %2770
    %v2772 = vsel %vm40, %v2758, -inf
    %2773 = vmax.xlane.f32.xlu0 %v2772
    %v2774 = vpop.xlane.xlu0 %2773
    %v2775 = vsel %vm40, %v2763, -inf
    %2776 = vmax.xlane.f32.xlu0 %v2775
    %v2777 = vpop.xlane.xlu0 %2776
    %v2778 = vsub.f32 %v2748, %v2768
    %v2779 = vsub.f32 %v2753, %v2771
    %v2780 = vsub.f32 %v2758, %v2774
    %v2781 = vsub.f32 %v2763, %v2777
    %v2782 = vmul.f32 %v2778, 1.442695
    %v2783 = vpow.pop %v2782
    %v2784 = vmul.f32 %v2779, 1.442695
    %v2785 = vpow.pop %v2784
    %v2786 = vmul.f32 %v2780, 1.442695
    %v2787 = vpow.pop %v2786
    %v2788 = vmul.f32 %v2781, 1.442695
    %v2789 = vpow.pop %v2788
    %v2790 = vsel %vm40, %v2783, 0.0
    %2791 = vadd.xlane.f32.xlu0 %v2790
    %v2792 = vpop.xlane.xlu0 %2791
    %v2793 = vsel %vm40, %v2785, 0.0
    %2794 = vadd.xlane.f32.xlu0 %v2793
    %v2795 = vpop.xlane.xlu0 %2794
    %v2796 = vsel %vm40, %v2787, 0.0
    %2797 = vadd.xlane.f32.xlu0 %v2796
    %v2798 = vpop.xlane.xlu0 %2797
    %v2799 = vsel %vm40, %v2789, 0.0
    %2800 = vadd.xlane.f32.xlu0 %v2799
    %v2801 = vpop.xlane.xlu0 %2800
    %v2802 = vrcp.pop %v2792
    %v2803 = vrcp.pop %v2795
    %v2804 = vrcp.pop %v2798
    %v2805 = vrcp.pop %v2801
    %v2806 = vmul.f32 %v2783, %v2802
    %v2807 = vmul.f32 %v2785, %v2803
    %v2808 = vmul.f32 %v2787, %v2804
    %v2809 = vmul.f32 %v2789, %v2805
    %2810 = vrot.lane.b32.xlu0 %v130, 80
    %v2811 = vpop.permute.xlu0 %2810
    %2812 = vrot.lane.b32.xlu0 %v135, 80
    %v2813 = vpop.permute.xlu0 %2812
    %v2817 = vsel %vm40, %v2806, 0
    %v2820 = vsel %vm40, %v2807, 0
    %v2823 = vsel %vm40, %v2808, 0
    %v2826 = vsel %vm40, %v2809, 0
    %2828 = vmatprep.subr.mxu0 0.0
    %2829 = vmatpush1.msra.mxu0 %v2811
    %2830 = vmatprep.subr.mxu0 0.0
    %2831 = vmatpush1.msra.mxu0 %v2813
    %2832 = vmatprep.subr.mxu0 0.0
    %2833 = vmatpush1.msra.mxu0 0.0
    %2834 = vmatprep.subr.mxu0 0.0
    %2835 = vmatpush1.msra.mxu0 0.0
    %2836 = vmatprep.subr.mxu0 0.0
    %2837 = vmatpush1.msra.mxu0 0.0
    %2838 = vmatprep.subr.mxu0 0.0
    %2839 = vmatpush1.msra.mxu0 0.0
    %2840 = vmatprep.subr.mxu0 0.0
    %2841 = vmatpush1.msra.mxu0 0.0
    %2842 = vmatprep.subr.mxu0 0.0
    %2843 = vmatpush1.msra.mxu0 0.0
    %2844 = vmatprep.subr.mxu0 0.0
    %2845 = vmatpush1.msra.mxu0 0.0
    %2846 = vmatprep.subr.mxu0 0.0
    %2847 = vmatpush1.msra.mxu0 0.0
    %2848 = vmatprep.subr.mxu0 0.0
    %2849 = vmatpush1.msra.mxu0 0.0
    %2850 = vmatprep.subr.mxu0 0.0
    %2851 = vmatpush1.msra.mxu0 0.0
    %2852 = vmatprep.subr.mxu0 0.0
    %2853 = vmatpush1.msra.mxu0 0.0
    %2854 = vmatprep.subr.mxu0 0.0
    %2855 = vmatpush1.msra.mxu0 0.0
    %2856 = vmatprep.subr.mxu0 0.0
    %2857 = vmatpush1.msra.mxu0 0.0
    %2858 = vmatprep.subr.mxu0 0.0
    %2859 = vmatpush1.msra.mxu0 0.0
    %2860 = vmatprep.subr.mxu0 0.0
    %2861 = vmatpush1.msra.mxu0 0.0
    %2862 = vmatprep.subr.mxu0 0.0
    %2863 = vmatpush1.msra.mxu0 0.0
    %2864 = vmatprep.subr.mxu0 0.0
    %2865 = vmatpush1.msra.mxu0 0.0
    %2866 = vmatprep.subr.mxu0 0.0
    %2867 = vmatpush1.msra.mxu0 0.0
    %2868 = vmatprep.subr.mxu0 0.0
    %2869 = vmatpush1.msra.mxu0 0.0
    %2870 = vmatprep.subr.mxu0 0.0
    %2871 = vmatpush1.msra.mxu0 0.0
    %2872 = vmatprep.subr.mxu0 0.0
    %2873 = vmatpush1.msra.mxu0 0.0
    %2874 = vmatprep.subr.mxu0 0.0
    %2875 = vmatpush1.msra.mxu0 0.0
    %2876 = vmatprep.subr.mxu0 0.0
    %2877 = vmatpush1.msra.mxu0 0.0
    %2878 = vmatprep.subr.mxu0 0.0
    %2879 = vmatpush1.msra.mxu0 0.0
    %2880 = vmatprep.subr.mxu0 0.0
    %2881 = vmatpush1.msra.mxu0 0.0
    %2882 = vmatprep.subr.mxu0 0.0
    %2883 = vmatpush1.msra.mxu0 0.0
    %2884 = vmatprep.subr.mxu0 0.0
    %2885 = vmatpush1.msra.mxu0 0.0
    %2886 = vmatprep.subr.mxu0 0.0
    %2887 = vmatpush1.msra.mxu0 0.0
    %2888 = vmatprep.subr.mxu0 0.0
    %2889 = vmatpush1.msra.mxu0 0.0
    %2890 = vmatprep.subr.mxu0 0.0
    %2891 = vmatpush1.msra.mxu0 0.0
    %2892 = vmatprep.mubr.f32.mxu0 0.0
    %2893 = vmatmul.mubr.f32.gmra.mrb[0].mxu0 %v2817
    %v2894 = vpop.f32.mrb[0].mxu0
    %v2895 = vadd.f32 0.0, %v2894
    %v2896 = vpop.f32.mrb[0].mxu0
    %2897 = vmatprep.mubr.f32.mxu0 0.0
    %2898 = vmatmul.mubr.f32.gmra.mrb[0].mxu0 %v2820
    %v2899 = vpop.f32.mrb[0].mxu0
    %v2900 = vadd.f32 0.0, %v2899
    %v2901 = vpop.f32.mrb[0].mxu0
    %2902 = vmatprep.mubr.f32.mxu0 0.0
    %2903 = vmatmul.mubr.f32.gmra.mrb[0].mxu0 %v2823
    %v2904 = vpop.f32.mrb[0].mxu0
    %v2905 = vadd.f32 0.0, %v2904
    %v2906 = vpop.f32.mrb[0].mxu0
    %2907 = vmatprep.mubr.f32.mxu0 0.0
    %2908 = vmatmul.mubr.f32.gmra.mrb[0].mxu0 %v2826
    %v2909 = vpop.f32.mrb[0].mxu0
    %v2910 = vadd.f32 0.0, %v2909
    %v2911 = vpop.f32.mrb[0].mxu0
    %2912 = vdwg.mxu0
    %v2913 = vld [vmem:[#allocation2 + $0x119] sm:$0x1]
    %v2914 = vlaneseq
    %v2915 = vshrl.u32 %v2914, 7
    %v2916 = vsub.s32 0, %v2915
    %v2917 = vrot.slane %v2913, %v2916
    %2919 = vrot.lane.b32.xlu0 %v2917, 64
    %v2920 = vpop.permute.xlu0 %2919
    %v2923 = vsel %vm40, %v2643, 0
    %v2926 = vsel %vm40, %v2648, 0
    %v2929 = vsel %vm40, %v2653, 0
    %v2932 = vsel %vm40, %v2658, 0
    %v2935 = vsel %vm40, %v2895, 0
    %v2938 = vsel %vm40, %v2900, 0
    %v2941 = vsel %vm40, %v2905, 0
    %v2944 = vsel %vm40, %v2910, 0
    %2946 = vmatprep.subr.mxu0 0.0
    %2947 = vmatpush1.msra.mxu0 %v2253
    %2948 = vmatprep.subr.mxu0 0.0
    %2949 = vmatpush1.msra.mxu0 %v2254
    %2950 = vmatprep.subr.mxu0 0.0
    %2951 = vmatpush1.msra.mxu0 0.0
    %2952 = vmatprep.subr.mxu0 0.0
    %2953 = vmatpush1.msra.mxu0 0.0
    %2954 = vmatprep.subr.mxu0 0.0
    %2955 = vmatpush1.msra.mxu0 0.0
    %2956 = vmatprep.subr.mxu0 0.0
    %2957 = vmatpush1.msra.mxu0 0.0
    %2958 = vmatprep.subr.mxu0 0.0
    %2959 = vmatpush1.msra.mxu0 0.0
    %2960 = vmatprep.subr.mxu0 0.0
    %2961 = vmatpush1.msra.mxu0 0.0
    %2962 = vmatprep.subr.mxu0 0.0
    %2963 = vmatpush1.msra.mxu0 0.0
    %2964 = vmatprep.subr.mxu0 0.0
    %2965 = vmatpush1.msra.mxu0 0.0
    %2966 = vmatprep.subr.mxu0 0.0
    %2967 = vmatpush1.msra.mxu0 0.0
    %2968 = vmatprep.subr.mxu0 0.0
    %2969 = vmatpush1.msra.mxu0 0.0
    %2970 = vmatprep.subr.mxu0 0.0
    %2971 = vmatpush1.msra.mxu0 0.0
    %2972 = vmatprep.subr.mxu0 0.0
    %2973 = vmatpush1.msra.mxu0 0.0
    %2974 = vmatprep.subr.mxu0 0.0
    %2975 = vmatpush1.msra.mxu0 0.0
    %2976 = vmatprep.subr.mxu0 0.0
    %2977 = vmatpush1.msra.mxu0 0.0
    %2978 = vmatprep.subr.mxu0 0.0
    %2979 = vmatpush1.msra.mxu0 0.0
    %2980 = vmatprep.subr.mxu0 0.0
    %2981 = vmatpush1.msra.mxu0 0.0
    %2982 = vmatprep.subr.mxu0 0.0
    %2983 = vmatpush1.msra.mxu0 0.0
    %2984 = vmatprep.subr.mxu0 0.0
    %2985 = vmatpush1.msra.mxu0 0.0
    %2986 = vmatprep.subr.mxu0 0.0
    %2987 = vmatpush1.msra.mxu0 0.0
    %2988 = vmatprep.subr.mxu0 0.0
    %2989 = vmatpush1.msra.mxu0 0.0
    %2990 = vmatprep.subr.mxu0 0.0
    %2991 = vmatpush1.msra.mxu0 0.0
    %2992 = vmatprep.subr.mxu0 0.0
    %2993 = vmatpush1.msra.mxu0 0.0
    %2994 = vmatprep.subr.mxu0 0.0
    %2995 = vmatpush1.msra.mxu0 0.0
    %2996 = vmatprep.subr.mxu0 0.0
    %2997 = vmatpush1.msra.mxu0 0.0
    %2998 = vmatprep.subr.mxu0 0.0
    %2999 = vmatpush1.msra.mxu0 0.0
    %3000 = vmatprep.subr.mxu0 0.0
    %3001 = vmatpush1.msra.mxu0 0.0
    %3002 = vmatprep.subr.mxu0 0.0
    %3003 = vmatpush1.msra.mxu0 0.0
    %3004 = vmatprep.subr.mxu0 0.0
    %3005 = vmatpush1.msra.mxu0 0.0
    %3006 = vmatprep.subr.mxu0 0.0
    %3007 = vmatpush1.msra.mxu0 0.0
    %3008 = vmatprep.subr.mxu0 0.0
    %3009 = vmatpush1.msra.mxu0 0.0
    %3010 = vmatprep.mubr.f32.mxu0 0.0
    %3011 = vmatmul.mubr.f32.gmra.mrb[0].mxu0 %v2923
    %v3012 = vpop.f32.mrb[0].mxu0
    %v3013 = vadd.f32 %v2920, %v3012
    %v3014 = vpop.f32.mrb[0].mxu0
    %3015 = vmatprep.mubr.f32.mxu0 0.0
    %3016 = vmatmul.mubr.f32.gmra.mrb[0].mxu0 %v2926
    %v3017 = vpop.f32.mrb[0].mxu0
    %v3018 = vadd.f32 %v2920, %v3017
    %v3019 = vpop.f32.mrb[0].mxu0
    %3020 = vmatprep.mubr.f32.mxu0 0.0
    %3021 = vmatmul.mubr.f32.gmra.mrb[0].mxu0 %v2929
    %v3022 = vpop.f32.mrb[0].mxu0
    %v3023 = vadd.f32 %v2920, %v3022
    %v3024 = vpop.f32.mrb[0].mxu0
    %3025 = vmatprep.mubr.f32.mxu0 0.0
    %3026 = vmatmul.mubr.f32.gmra.mrb[0].mxu0 %v2932
    %v3027 = vpop.f32.mrb[0].mxu0
    %v3028 = vadd.f32 %v2920, %v3027
    %v3029 = vpop.f32.mrb[0].mxu0
    %3030 = vmatprep.mubr.f32.mxu0 0.0
    %3031 = vmatmul.mubr.f32.gmra.mrb[0].mxu0 %v2935
    %v3032 = vpop.f32.mrb[0].mxu0
    %v3033 = vadd.f32 %v2920, %v3032
    %v3034 = vpop.f32.mrb[0].mxu0
    %3035 = vmatprep.mubr.f32.mxu0 0.0
    %3036 = vmatmul.mubr.f32.gmra.mrb[0].mxu0 %v2938
    %v3037 = vpop.f32.mrb[0].mxu0
    %v3038 = vadd.f32 %v2920, %v3037
    %v3039 = vpop.f32.mrb[0].mxu0
    %3040 = vmatprep.mubr.f32.mxu0 0.0
    %3041 = vmatmul.mubr.f32.gmra.mrb[0].mxu0 %v2941
    %v3042 = vpop.f32.mrb[0].mxu0
    %v3043 = vadd.f32 %v2920, %v3042
    %v3044 = vpop.f32.mrb[0].mxu0
    %3045 = vmatprep.mubr.f32.mxu0 0.0
    %3046 = vmatmul.mubr.f32.gmra.mrb[0].mxu0 %v2944
    %v3047 = vpop.f32.mrb[0].mxu0
    %v3048 = vadd.f32 %v2920, %v3047
    %v3049 = vpop.f32.mrb[0].mxu0
    %3050 = vdwg.mxu0
    %v3051 = vadd.f32 %v3013, %v2243
    %v3052 = vadd.f32 %v3018, %v2244
    %v3053 = vadd.f32 %v3023, %v2245
    %v3054 = vadd.f32 %v3028, %v2246
    %v3055 = vadd.f32 %v3033, %v2247
    %v3056 = vadd.f32 %v3038, %v2248
    %v3057 = vadd.f32 %v3043, %v2249
    %v3058 = vadd.f32 %v3048, %v2250
    %v3059 = vld [vmem:[#allocation2 + $0xa0] sm:$0xff]
    %v3060 = vld [vmem:[#allocation2 + $0xa8] sm:$0xff]
    %v3061 = vld [vmem:[#allocation2 + $0xb0] sm:$0xff]
    %v3062 = vld [vmem:[#allocation2 + $0xb8] sm:$0xff]
    %v3063 = vld [vmem:[#allocation2 + $0x11a] sm:$0x1]
    %v3064 = vlaneseq
    %v3065 = vshrl.u32 %v3064, 7
    %v3066 = vsub.s32 0, %v3065
    %v3067 = vrot.slane %v3063, %v3066
    %3069 = vrot.lane.b32.xlu0 %v3067, 64
    %v3070 = vpop.permute.xlu0 %3069
    %v3073 = vsel %vm805, %v3051, 0
    %v3076 = vsel %vm805, %v3052, 0
    %v3079 = vsel %vm805, %v3053, 0
    %v3082 = vsel %vm805, %v3054, 0
    %v3085 = vsel %vm805, %v3055, 0
    %v3088 = vsel %vm805, %v3056, 0
    %v3091 = vsel %vm805, %v3057, 0
    %v3094 = vsel %vm805, %v3058, 0
    %3096 = vmatprep.subr.mxu0 0.0
    %3097 = vmatpush1.msra.mxu0 %v3059
    %3098 = vmatprep.subr.mxu0 0.0
    %3099 = vmatpush1.msra.mxu0 %v3060
    %3100 = vmatprep.subr.mxu0 0.0
    %3101 = vmatpush1.msra.mxu0 %v3061
    %3102 = vmatprep.subr.mxu0 0.0
    %3103 = vmatpush1.msra.mxu0 %v3062
    %3104 = vmatprep.subr.mxu0 0.0
    %3105 = vmatpush1.msra.mxu0 0.0
    %3106 = vmatprep.subr.mxu0 0.0
    %3107 = vmatpush1.msra.mxu0 0.0
    %3108 = vmatprep.subr.mxu0 0.0
    %3109 = vmatpush1.msra.mxu0 0.0
    %3110 = vmatprep.subr.mxu0 0.0
    %3111 = vmatpush1.msra.mxu0 0.0
    %3112 = vmatprep.subr.mxu0 0.0
    %3113 = vmatpush1.msra.mxu0 0.0
    %3114 = vmatprep.subr.mxu0 0.0
    %3115 = vmatpush1.msra.mxu0 0.0
    %3116 = vmatprep.subr.mxu0 0.0
    %3117 = vmatpush1.msra.mxu0 0.0
    %3118 = vmatprep.subr.mxu0 0.0
    %3119 = vmatpush1.msra.mxu0 0.0
    %3120 = vmatprep.subr.mxu0 0.0
    %3121 = vmatpush1.msra.mxu0 0.0
    %3122 = vmatprep.subr.mxu0 0.0
    %3123 = vmatpush1.msra.mxu0 0.0
    %3124 = vmatprep.subr.mxu0 0.0
    %3125 = vmatpush1.msra.mxu0 0.0
    %3126 = vmatprep.subr.mxu0 0.0
    %3127 = vmatpush1.msra.mxu0 0.0
    %3128 = vmatprep.subr.mxu0 0.0
    %3129 = vmatpush1.msra.mxu0 0.0
    %3130 = vmatprep.subr.mxu0 0.0
    %3131 = vmatpush1.msra.mxu0 0.0
    %3132 = vmatprep.subr.mxu0 0.0
    %3133 = vmatpush1.msra.mxu0 0.0
    %3134 = vmatprep.subr.mxu0 0.0
    %3135 = vmatpush1.msra.mxu0 0.0
    %3136 = vmatprep.subr.mxu0 0.0
    %3137 = vmatpush1.msra.mxu0 0.0
    %3138 = vmatprep.subr.mxu0 0.0
    %3139 = vmatpush1.msra.mxu0 0.0
    %3140 = vmatprep.subr.mxu0 0.0
    %3141 = vmatpush1.msra.mxu0 0.0
    %3142 = vmatprep.subr.mxu0 0.0
    %3143 = vmatpush1.msra.mxu0 0.0
    %3144 = vmatprep.subr.mxu0 0.0
    %3145 = vmatpush1.msra.mxu0 0.0
    %3146 = vmatprep.subr.mxu0 0.0
    %3147 = vmatpush1.msra.mxu0 0.0
    %3148 = vmatprep.subr.mxu0 0.0
    %3149 = vmatpush1.msra.mxu0 0.0
    %3150 = vmatprep.subr.mxu0 0.0
    %3151 = vmatpush1.msra.mxu0 0.0
    %3152 = vmatprep.subr.mxu0 0.0
    %3153 = vmatpush1.msra.mxu0 0.0
    %3154 = vmatprep.subr.mxu0 0.0
    %3155 = vmatpush1.msra.mxu0 0.0
    %3156 = vmatprep.subr.mxu0 0.0
    %3157 = vmatpush1.msra.mxu0 0.0
    %3158 = vmatprep.subr.mxu0 0.0
    %3159 = vmatpush1.msra.mxu0 0.0
    %3160 = vmatprep.mubr.f32.mxu0 0.0
    %3161 = vmatmul.mubr.f32.gmra.mrb[0].mxu0 %v3073
    %v3162 = vpop.f32.mrb[0].mxu0
    %v3163 = vadd.f32 %v3070, %v3162
    %v3164 = vpop.f32.mrb[0].mxu0
    %3165 = vmatprep.mubr.f32.mxu0 0.0
    %3166 = vmatmul.mubr.f32.gmra.mrb[0].mxu0 %v3076
    %v3167 = vpop.f32.mrb[0].mxu0
    %v3168 = vadd.f32 %v3070, %v3167
    %v3169 = vpop.f32.mrb[0].mxu0
    %3170 = vmatprep.mubr.f32.mxu0 0.0
    %3171 = vmatmul.mubr.f32.gmra.mrb[0].mxu0 %v3079
    %v3172 = vpop.f32.mrb[0].mxu0
    %v3173 = vadd.f32 %v3070, %v3172
    %v3174 = vpop.f32.mrb[0].mxu0
    %3175 = vmatprep.mubr.f32.mxu0 0.0
    %3176 = vmatmul.mubr.f32.gmra.mrb[0].mxu0 %v3082
    %v3177 = vpop.f32.mrb[0].mxu0
    %v3178 = vadd.f32 %v3070, %v3177
    %v3179 = vpop.f32.mrb[0].mxu0
    %3180 = vmatprep.mubr.f32.mxu0 0.0
    %3181 = vmatmul.mubr.f32.gmra.mrb[0].mxu0 %v3085
    %v3182 = vpop.f32.mrb[0].mxu0
    %v3183 = vadd.f32 %v3070, %v3182
    %v3184 = vpop.f32.mrb[0].mxu0
    %3185 = vmatprep.mubr.f32.mxu0 0.0
    %3186 = vmatmul.mubr.f32.gmra.mrb[0].mxu0 %v3088
    %v3187 = vpop.f32.mrb[0].mxu0
    %v3188 = vadd.f32 %v3070, %v3187
    %v3189 = vpop.f32.mrb[0].mxu0
    %3190 = vmatprep.mubr.f32.mxu0 0.0
    %3191 = vmatmul.mubr.f32.gmra.mrb[0].mxu0 %v3091
    %v3192 = vpop.f32.mrb[0].mxu0
    %v3193 = vadd.f32 %v3070, %v3192
    %v3194 = vpop.f32.mrb[0].mxu0
    %3195 = vmatprep.mubr.f32.mxu0 0.0
    %3196 = vmatmul.mubr.f32.gmra.mrb[0].mxu0 %v3094
    %v3197 = vpop.f32.mrb[0].mxu0
    %v3198 = vadd.f32 %v3070, %v3197
    %v3199 = vpop.f32.mrb[0].mxu0
    %3200 = vdwg.mxu0
    %v3201 = vmax.f32 %v3163, 0.0
    %v3202 = vmax.f32 %v3168, 0.0
    %v3203 = vmax.f32 %v3173, 0.0
    %v3204 = vmax.f32 %v3178, 0.0
    %v3205 = vmax.f32 %v3183, 0.0
    %v3206 = vmax.f32 %v3188, 0.0
    %v3207 = vmax.f32 %v3193, 0.0
    %v3208 = vmax.f32 %v3198, 0.0
    %v3209 = vld [vmem:[#allocation2 + $0x11b] sm:$0x1]
    %v3210 = vlaneseq
    %v3211 = vshrl.u32 %v3210, 7
    %v3212 = vsub.s32 0, %v3211
    %v3213 = vrot.slane %v3209, %v3212
    %3218 = vrot.lane.b32.xlu0 %v3059, 64
    %v3219 = vpop.permute.xlu0 %3218
    %3220 = vrot.lane.b32.xlu0 %v3060, 64
    %v3221 = vpop.permute.xlu0 %3220
    %3222 = vrot.lane.b32.xlu0 %v3061, 64
    %v3223 = vpop.permute.xlu0 %3222
    %3224 = vrot.lane.b32.xlu0 %v3062, 64
    %v3225 = vpop.permute.xlu0 %3224
    %3231 = vrot.lane.b32.xlu0 %v3213, 64
    %v3232 = vpop.permute.xlu0 %3231
    %v3235 = vsel %vm805, %v3201, 0
    %v3238 = vsel %vm805, %v3202, 0
    %v3241 = vsel %vm805, %v3203, 0
    %v3244 = vsel %vm805, %v3204, 0
    %v3247 = vsel %vm805, %v3205, 0
    %v3250 = vsel %vm805, %v3206, 0
    %v3253 = vsel %vm805, %v3207, 0
    %v3256 = vsel %vm805, %v3208, 0
    %3258 = vmatprep.subr.mxu0 0.0
    %3259 = vmatpush1.msra.mxu0 %v3219
    %3260 = vmatprep.subr.mxu0 0.0
    %3261 = vmatpush1.msra.mxu0 %v3221
    %3262 = vmatprep.subr.mxu0 0.0
    %3263 = vmatpush1.msra.mxu0 %v3223
    %3264 = vmatprep.subr.mxu0 0.0
    %3265 = vmatpush1.msra.mxu0 %v3225
    %3266 = vmatprep.subr.mxu0 0.0
    %3267 = vmatpush1.msra.mxu0 0.0
    %3268 = vmatprep.subr.mxu0 0.0
    %3269 = vmatpush1.msra.mxu0 0.0
    %3270 = vmatprep.subr.mxu0 0.0
    %3271 = vmatpush1.msra.mxu0 0.0
    %3272 = vmatprep.subr.mxu0 0.0
    %3273 = vmatpush1.msra.mxu0 0.0
    %3274 = vmatprep.subr.mxu0 0.0
    %3275 = vmatpush1.msra.mxu0 0.0
    %3276 = vmatprep.subr.mxu0 0.0
    %3277 = vmatpush1.msra.mxu0 0.0
    %3278 = vmatprep.subr.mxu0 0.0
    %3279 = vmatpush1.msra.mxu0 0.0
    %3280 = vmatprep.subr.mxu0 0.0
    %3281 = vmatpush1.msra.mxu0 0.0
    %3282 = vmatprep.subr.mxu0 0.0
    %3283 = vmatpush1.msra.mxu0 0.0
    %3284 = vmatprep.subr.mxu0 0.0
    %3285 = vmatpush1.msra.mxu0 0.0
    %3286 = vmatprep.subr.mxu0 0.0
    %3287 = vmatpush1.msra.mxu0 0.0
    %3288 = vmatprep.subr.mxu0 0.0
    %3289 = vmatpush1.msra.mxu0 0.0
    %3290 = vmatprep.subr.mxu0 0.0
    %3291 = vmatpush1.msra.mxu0 0.0
    %3292 = vmatprep.subr.mxu0 0.0
    %3293 = vmatpush1.msra.mxu0 0.0
    %3294 = vmatprep.subr.mxu0 0.0
    %3295 = vmatpush1.msra.mxu0 0.0
    %3296 = vmatprep.subr.mxu0 0.0
    %3297 = vmatpush1.msra.mxu0 0.0
    %3298 = vmatprep.subr.mxu0 0.0
    %3299 = vmatpush1.msra.mxu0 0.0
    %3300 = vmatprep.subr.mxu0 0.0
    %3301 = vmatpush1.msra.mxu0 0.0
    %3302 = vmatprep.subr.mxu0 0.0
    %3303 = vmatpush1.msra.mxu0 0.0
    %3304 = vmatprep.subr.mxu0 0.0
    %3305 = vmatpush1.msra.mxu0 0.0
    %3306 = vmatprep.subr.mxu0 0.0
    %3307 = vmatpush1.msra.mxu0 0.0
    %3308 = vmatprep.subr.mxu0 0.0
    %3309 = vmatpush1.msra.mxu0 0.0
    %3310 = vmatprep.subr.mxu0 0.0
    %3311 = vmatpush1.msra.mxu0 0.0
    %3312 = vmatprep.subr.mxu0 0.0
    %3313 = vmatpush1.msra.mxu0 0.0
    %3314 = vmatprep.subr.mxu0 0.0
    %3315 = vmatpush1.msra.mxu0 0.0
    %3316 = vmatprep.subr.mxu0 0.0
    %3317 = vmatpush1.msra.mxu0 0.0
    %3318 = vmatprep.subr.mxu0 0.0
    %3319 = vmatpush1.msra.mxu0 0.0
    %3320 = vmatprep.subr.mxu0 0.0
    %3321 = vmatpush1.msra.mxu0 0.0
    %3322 = vmatprep.mubr.f32.mxu0 0.0
    %3323 = vmatmul.mubr.f32.gmra.mrb[0].mxu0 %v3235
    %v3324 = vpop.f32.mrb[0].mxu0
    %v3325 = vadd.f32 %v3232, %v3324
    %v3326 = vpop.f32.mrb[0].mxu0
    %3327 = vmatprep.mubr.f32.mxu0 0.0
    %3328 = vmatmul.mubr.f32.gmra.mrb[0].mxu0 %v3238
    %v3329 = vpop.f32.mrb[0].mxu0
    %v3330 = vadd.f32 %v3232, %v3329
    %v3331 = vpop.f32.mrb[0].mxu0
    %3332 = vmatprep.mubr.f32.mxu0 0.0
    %3333 = vmatmul.mubr.f32.gmra.mrb[0].mxu0 %v3241
    %v3334 = vpop.f32.mrb[0].mxu0
    %v3335 = vadd.f32 %v3232, %v3334
    %v3336 = vpop.f32.mrb[0].mxu0
    %3337 = vmatprep.mubr.f32.mxu0 0.0
    %3338 = vmatmul.mubr.f32.gmra.mrb[0].mxu0 %v3244
    %v3339 = vpop.f32.mrb[0].mxu0
    %v3340 = vadd.f32 %v3232, %v3339
    %v3341 = vpop.f32.mrb[0].mxu0
    %3342 = vmatprep.mubr.f32.mxu0 0.0
    %3343 = vmatmul.mubr.f32.gmra.mrb[0].mxu0 %v3247
    %v3344 = vpop.f32.mrb[0].mxu0
    %v3345 = vadd.f32 %v3232, %v3344
    %v3346 = vpop.f32.mrb[0].mxu0
    %3347 = vmatprep.mubr.f32.mxu0 0.0
    %3348 = vmatmul.mubr.f32.gmra.mrb[0].mxu0 %v3250
    %v3349 = vpop.f32.mrb[0].mxu0
    %v3350 = vadd.f32 %v3232, %v3349
    %v3351 = vpop.f32.mrb[0].mxu0
    %3352 = vmatprep.mubr.f32.mxu0 0.0
    %3353 = vmatmul.mubr.f32.gmra.mrb[0].mxu0 %v3253
    %v3354 = vpop.f32.mrb[0].mxu0
    %v3355 = vadd.f32 %v3232, %v3354
    %v3356 = vpop.f32.mrb[0].mxu0
    %3357 = vmatprep.mubr.f32.mxu0 0.0
    %3358 = vmatmul.mubr.f32.gmra.mrb[0].mxu0 %v3256
    %v3359 = vpop.f32.mrb[0].mxu0
    %v3360 = vadd.f32 %v3232, %v3359
    %v3361 = vpop.f32.mrb[0].mxu0
    %3362 = vdwg.mxu0
    %v3363 = vadd.f32 %v3325, %v3051
    %v3364 = vadd.f32 %v3330, %v3052
    %v3365 = vadd.f32 %v3335, %v3053
    %v3366 = vadd.f32 %v3340, %v3054
    %v3367 = vadd.f32 %v3345, %v3055
    %v3368 = vadd.f32 %v3350, %v3056
    %v3369 = vadd.f32 %v3355, %v3057
    %v3370 = vadd.f32 %v3360, %v3058
    %v3371 = vld [vmem:[#allocation2 + $0xc0] sm:$0xff]
    %v3372 = vld [vmem:[#allocation2 + $0xc8] sm:$0xff]
    %v3373 = vld [vmem:[#allocation2 + $0xd0] sm:$0xff]
    %v3374 = vld [vmem:[#allocation2 + $0xd8] sm:$0xff]
    %v3375 = vld [vmem:[#allocation2 + $0x11c] sm:$0x1]
    %v3376 = vlaneseq
    %v3377 = vshrl.u32 %v3376, 7
    %v3378 = vsub.s32 0, %v3377
    %v3379 = vrot.slane %v3375, %v3378
    %3381 = vrot.lane.b32.xlu0 %v3379, 64
    %v3382 = vpop.permute.xlu0 %3381
    %v3385 = vsel %vm805, %v3363, 0
    %v3388 = vsel %vm805, %v3364, 0
    %v3391 = vsel %vm805, %v3365, 0
    %v3394 = vsel %vm805, %v3366, 0
    %v3397 = vsel %vm805, %v3367, 0
    %v3400 = vsel %vm805, %v3368, 0
    %v3403 = vsel %vm805, %v3369, 0
    %v3406 = vsel %vm805, %v3370, 0
    %3408 = vmatprep.subr.mxu0 0.0
    %3409 = vmatpush1.msra.mxu0 %v3371
    %3410 = vmatprep.subr.mxu0 0.0
    %3411 = vmatpush1.msra.mxu0 %v3372
    %3412 = vmatprep.subr.mxu0 0.0
    %3413 = vmatpush1.msra.mxu0 %v3373
    %3414 = vmatprep.subr.mxu0 0.0
    %3415 = vmatpush1.msra.mxu0 %v3374
    %3416 = vmatprep.subr.mxu0 0.0
    %3417 = vmatpush1.msra.mxu0 0.0
    %3418 = vmatprep.subr.mxu0 0.0
    %3419 = vmatpush1.msra.mxu0 0.0
    %3420 = vmatprep.subr.mxu0 0.0
    %3421 = vmatpush1.msra.mxu0 0.0
    %3422 = vmatprep.subr.mxu0 0.0
    %3423 = vmatpush1.msra.mxu0 0.0
    %3424 = vmatprep.subr.mxu0 0.0
    %3425 = vmatpush1.msra.mxu0 0.0
    %3426 = vmatprep.subr.mxu0 0.0
    %3427 = vmatpush1.msra.mxu0 0.0
    %3428 = vmatprep.subr.mxu0 0.0
    %3429 = vmatpush1.msra.mxu0 0.0
    %3430 = vmatprep.subr.mxu0 0.0
    %3431 = vmatpush1.msra.mxu0 0.0
    %3432 = vmatprep.subr.mxu0 0.0
    %3433 = vmatpush1.msra.mxu0 0.0
    %3434 = vmatprep.subr.mxu0 0.0
    %3435 = vmatpush1.msra.mxu0 0.0
    %3436 = vmatprep.subr.mxu0 0.0
    %3437 = vmatpush1.msra.mxu0 0.0
    %3438 = vmatprep.subr.mxu0 0.0
    %3439 = vmatpush1.msra.mxu0 0.0
    %3440 = vmatprep.subr.mxu0 0.0
    %3441 = vmatpush1.msra.mxu0 0.0
    %3442 = vmatprep.subr.mxu0 0.0
    %3443 = vmatpush1.msra.mxu0 0.0
    %3444 = vmatprep.subr.mxu0 0.0
    %3445 = vmatpush1.msra.mxu0 0.0
    %3446 = vmatprep.subr.mxu0 0.0
    %3447 = vmatpush1.msra.mxu0 0.0
    %3448 = vmatprep.subr.mxu0 0.0
    %3449 = vmatpush1.msra.mxu0 0.0
    %3450 = vmatprep.subr.mxu0 0.0
    %3451 = vmatpush1.msra.mxu0 0.0
    %3452 = vmatprep.subr.mxu0 0.0
    %3453 = vmatpush1.msra.mxu0 0.0
    %3454 = vmatprep.subr.mxu0 0.0
    %3455 = vmatpush1.msra.mxu0 0.0
    %3456 = vmatprep.subr.mxu0 0.0
    %3457 = vmatpush1.msra.mxu0 0.0
    %3458 = vmatprep.subr.mxu0 0.0
    %3459 = vmatpush1.msra.mxu0 0.0
    %3460 = vmatprep.subr.mxu0 0.0
    %3461 = vmatpush1.msra.mxu0 0.0
    %3462 = vmatprep.subr.mxu0 0.0
    %3463 = vmatpush1.msra.mxu0 0.0
    %3464 = vmatprep.subr.mxu0 0.0
    %3465 = vmatpush1.msra.mxu0 0.0
    %3466 = vmatprep.subr.mxu0 0.0
    %3467 = vmatpush1.msra.mxu0 0.0
    %3468 = vmatprep.subr.mxu0 0.0
    %3469 = vmatpush1.msra.mxu0 0.0
    %3470 = vmatprep.subr.mxu0 0.0
    %3471 = vmatpush1.msra.mxu0 0.0
    %3472 = vmatprep.mubr.f32.mxu0 0.0
    %3473 = vmatmul.mubr.f32.gmra.mrb[0].mxu0 %v3385
    %v3474 = vpop.f32.mrb[0].mxu0
    %v3475 = vadd.f32 %v3382, %v3474
    %v3476 = vpop.f32.mrb[0].mxu0
    %3477 = vmatprep.mubr.f32.mxu0 0.0
    %3478 = vmatmul.mubr.f32.gmra.mrb[0].mxu0 %v3388
    %v3479 = vpop.f32.mrb[0].mxu0
    %v3480 = vadd.f32 %v3382, %v3479
    %v3481 = vpop.f32.mrb[0].mxu0
    %3482 = vmatprep.mubr.f32.mxu0 0.0
    %3483 = vmatmul.mubr.f32.gmra.mrb[0].mxu0 %v3391
    %v3484 = vpop.f32.mrb[0].mxu0
    %v3485 = vadd.f32 %v3382, %v3484
    %v3486 = vpop.f32.mrb[0].mxu0
    %3487 = vmatprep.mubr.f32.mxu0 0.0
    %3488 = vmatmul.mubr.f32.gmra.mrb[0].mxu0 %v3394
    %v3489 = vpop.f32.mrb[0].mxu0
    %v3490 = vadd.f32 %v3382, %v3489
    %v3491 = vpop.f32.mrb[0].mxu0
    %3492 = vmatprep.mubr.f32.mxu0 0.0
    %3493 = vmatmul.mubr.f32.gmra.mrb[0].mxu0 %v3397
    %v3494 = vpop.f32.mrb[0].mxu0
    %v3495 = vadd.f32 %v3382, %v3494
    %v3496 = vpop.f32.mrb[0].mxu0
    %3497 = vmatprep.mubr.f32.mxu0 0.0
    %3498 = vmatmul.mubr.f32.gmra.mrb[0].mxu0 %v3400
    %v3499 = vpop.f32.mrb[0].mxu0
    %v3500 = vadd.f32 %v3382, %v3499
    %v3501 = vpop.f32.mrb[0].mxu0
    %3502 = vmatprep.mubr.f32.mxu0 0.0
    %3503 = vmatmul.mubr.f32.gmra.mrb[0].mxu0 %v3403
    %v3504 = vpop.f32.mrb[0].mxu0
    %v3505 = vadd.f32 %v3382, %v3504
    %v3506 = vpop.f32.mrb[0].mxu0
    %3507 = vmatprep.mubr.f32.mxu0 0.0
    %3508 = vmatmul.mubr.f32.gmra.mrb[0].mxu0 %v3406
    %v3509 = vpop.f32.mrb[0].mxu0
    %v3510 = vadd.f32 %v3382, %v3509
    %v3511 = vpop.f32.mrb[0].mxu0
    %3512 = vdwg.mxu0
    %3517 = vrot.lane.b32.xlu0 %v3475, 112
    %v3518 = vpop.permute.xlu0 %3517
    %3519 = vrot.lane.b32.xlu0 %v3480, 112
    %v3520 = vpop.permute.xlu0 %3519
    %3521 = vrot.lane.b32.xlu0 %v3485, 112
    %v3522 = vpop.permute.xlu0 %3521
    %3523 = vrot.lane.b32.xlu0 %v3490, 112
    %v3524 = vpop.permute.xlu0 %3523
    %v3525 = vsel %vm40, %v3475, 0
    %v3527 = vsel %vm40, %v3480, 0
    %v3529 = vsel %vm40, %v3485, 0
    %v3531 = vsel %vm40, %v3490, 0
    %v3533 = vsel %vm40, %v3518, 0
    %v3535 = vsel %vm40, %v3520, 0
    %v3537 = vsel %vm40, %v3522, 0
    %v3539 = vsel %vm40, %v3524, 0
    %3541 = vmatprep.subr.mxu0 0.0
    %3542 = vmatpush1.xpose.msra.mxu0 %v3533
    %3543 = vmatprep.subr.mxu0 0.0
    %3544 = vmatpush1.xpose.msra.mxu0 %v3535
    %3545 = vmatprep.subr.mxu0 0.0
    %3546 = vmatpush1.xpose.msra.mxu0 %v3537
    %3547 = vmatprep.subr.mxu0 0.0
    %3548 = vmatpush1.xpose.msra.mxu0 %v3539
    %3549 = vmatprep.subr.mxu0 0.0
    %3550 = vmatpush1.xpose.msra.mxu0 0.0
    %3551 = vmatprep.subr.mxu0 0.0
    %3552 = vmatpush1.xpose.msra.mxu0 0.0
    %3553 = vmatprep.subr.mxu0 0.0
    %3554 = vmatpush1.xpose.msra.mxu0 0.0
    %3555 = vmatprep.subr.mxu0 0.0
    %3556 = vmatpush1.xpose.msra.mxu0 0.0
    %3557 = vmatprep.subr.mxu0 0.0
    %3558 = vmatpush1.xpose.msra.mxu0 0.0
    %3559 = vmatprep.subr.mxu0 0.0
    %3560 = vmatpush1.xpose.msra.mxu0 0.0
    %3561 = vmatprep.subr.mxu0 0.0
    %3562 = vmatpush1.xpose.msra.mxu0 0.0
    %3563 = vmatprep.subr.mxu0 0.0
    %3564 = vmatpush1.xpose.msra.mxu0 0.0
    %3565 = vmatprep.subr.mxu0 0.0
    %3566 = vmatpush1.xpose.msra.mxu0 0.0
    %3567 = vmatprep.subr.mxu0 0.0
    %3568 = vmatpush1.xpose.msra.mxu0 0.0
    %3569 = vmatprep.subr.mxu0 0.0
    %3570 = vmatpush1.xpose.msra.mxu0 0.0
    %3571 = vmatprep.subr.mxu0 0.0
    %3572 = vmatpush1.xpose.msra.mxu0 0.0
    %3573 = vmatprep.subr.mxu0 0.0
    %3574 = vmatpush1.xpose.msra.mxu0 0.0
    %3575 = vmatprep.subr.mxu0 0.0
    %3576 = vmatpush1.xpose.msra.mxu0 0.0
    %3577 = vmatprep.subr.mxu0 0.0
    %3578 = vmatpush1.xpose.msra.mxu0 0.0
    %3579 = vmatprep.subr.mxu0 0.0
    %3580 = vmatpush1.xpose.msra.mxu0 0.0
    %3581 = vmatprep.subr.mxu0 0.0
    %3582 = vmatpush1.xpose.msra.mxu0 0.0
    %3583 = vmatprep.subr.mxu0 0.0
    %3584 = vmatpush1.xpose.msra.mxu0 0.0
    %3585 = vmatprep.subr.mxu0 0.0
    %3586 = vmatpush1.xpose.msra.mxu0 0.0
    %3587 = vmatprep.subr.mxu0 0.0
    %3588 = vmatpush1.xpose.msra.mxu0 0.0
    %3589 = vmatprep.subr.mxu0 0.0
    %3590 = vmatpush1.xpose.msra.mxu0 0.0
    %3591 = vmatprep.subr.mxu0 0.0
    %3592 = vmatpush1.xpose.msra.mxu0 0.0
    %3593 = vmatprep.subr.mxu0 0.0
    %3594 = vmatpush1.xpose.msra.mxu0 0.0
    %3595 = vmatprep.subr.mxu0 0.0
    %3596 = vmatpush1.xpose.msra.mxu0 0.0
    %3597 = vmatprep.subr.mxu0 0.0
    %3598 = vmatpush1.xpose.msra.mxu0 0.0
    %3599 = vmatprep.subr.mxu0 0.0
    %3600 = vmatpush1.xpose.msra.mxu0 0.0
    %3601 = vmatprep.subr.mxu0 0.0
    %3602 = vmatpush1.xpose.msra.mxu0 0.0
    %3603 = vmatprep.subr.mxu0 0.0
    %3604 = vmatpush1.xpose.msra.mxu0 0.0
    %3605 = vmatprep.mubr.f32.mxu0 0.0
    %3606 = vmatmul.mubr.f32.gmra.mrb[0].mxu0 %v3525
    %v3607 = vpop.f32.mrb[0].mxu0
    %v3608 = vadd.f32 0.0, %v3607
    %v3609 = vpop.f32.mrb[0].mxu0
    %3610 = vmatprep.mubr.f32.mxu0 0.0
    %3611 = vmatmul.mubr.f32.gmra.mrb[0].mxu0 %v3527
    %v3612 = vpop.f32.mrb[0].mxu0
    %v3613 = vadd.f32 0.0, %v3612
    %v3614 = vpop.f32.mrb[0].mxu0
    %3615 = vmatprep.mubr.f32.mxu0 0.0
    %3616 = vmatmul.mubr.f32.gmra.mrb[0].mxu0 %v3529
    %v3617 = vpop.f32.mrb[0].mxu0
    %v3618 = vadd.f32 0.0, %v3617
    %v3619 = vpop.f32.mrb[0].mxu0
    %3620 = vmatprep.mubr.f32.mxu0 0.0
    %3621 = vmatmul.mubr.f32.gmra.mrb[0].mxu0 %v3531
    %v3622 = vpop.f32.mrb[0].mxu0
    %v3623 = vadd.f32 0.0, %v3622
    %v3624 = vpop.f32.mrb[0].mxu0
    %3625 = vdwg.mxu0
    %v3626 = vsel %vm805, %v3608, -inf
    %3627 = vmax.xlane.f32.xlu0 %v3626
    %v3628 = vpop.xlane.xlu0 %3627
    %v3629 = vsel %vm805, %v3613, -inf
    %3630 = vmax.xlane.f32.xlu0 %v3629
    %v3631 = vpop.xlane.xlu0 %3630
    %v3632 = vsel %vm805, %v3618, -inf
    %3633 = vmax.xlane.f32.xlu0 %v3632
    %v3634 = vpop.xlane.xlu0 %3633
    %v3635 = vsel %vm805, %v3623, -inf
    %3636 = vmax.xlane.f32.xlu0 %v3635
    %v3637 = vpop.xlane.xlu0 %3636
    %v3638 = vsub.f32 %v3608, %v3628
    %v3639 = vsub.f32 %v3613, %v3631
    %v3640 = vsub.f32 %v3618, %v3634
    %v3641 = vsub.f32 %v3623, %v3637
    %v3642 = vmul.f32 %v3638, 1.442695
    %v3643 = vpow.pop %v3642
    %v3644 = vmul.f32 %v3639, 1.442695
    %v3645 = vpow.pop %v3644
    %v3646 = vmul.f32 %v3640, 1.442695
    %v3647 = vpow.pop %v3646
    %v3648 = vmul.f32 %v3641, 1.442695
    %v3649 = vpow.pop %v3648
    %v3650 = vsel %vm805, %v3643, 0.0
    %3651 = vadd.xlane.f32.xlu0 %v3650
    %v3652 = vpop.xlane.xlu0 %3651
    %v3653 = vsel %vm805, %v3645, 0.0
    %3654 = vadd.xlane.f32.xlu0 %v3653
    %v3655 = vpop.xlane.xlu0 %3654
    %v3656 = vsel %vm805, %v3647, 0.0
    %3657 = vadd.xlane.f32.xlu0 %v3656
    %v3658 = vpop.xlane.xlu0 %3657
    %v3659 = vsel %vm805, %v3649, 0.0
    %3660 = vadd.xlane.f32.xlu0 %v3659
    %v3661 = vpop.xlane.xlu0 %3660
    %v3662 = vrcp.pop %v3652
    %v3663 = vrcp.pop %v3655
    %v3664 = vrcp.pop %v3658
    %v3665 = vrcp.pop %v3661
    %v3666 = vmul.f32 %v3643, %v3662
    %v3667 = vmul.f32 %v3645, %v3663
    %v3668 = vmul.f32 %v3647, %v3664
    %v3669 = vmul.f32 %v3649, %v3665
    %3670 = vrot.lane.b32.xlu0 %v3475, 96
    %v3671 = vpop.permute.xlu0 %3670
    %3672 = vrot.lane.b32.xlu0 %v3480, 96
    %v3673 = vpop.permute.xlu0 %3672
    %3674 = vrot.lane.b32.xlu0 %v3485, 96
    %v3675 = vpop.permute.xlu0 %3674
    %3676 = vrot.lane.b32.xlu0 %v3490, 96
    %v3677 = vpop.permute.xlu0 %3676
    %v3683 = vsel %vm805, %v3666, 0
    %v3686 = vsel %vm805, %v3667, 0
    %v3689 = vsel %vm805, %v3668, 0
    %v3692 = vsel %vm805, %v3669, 0
    %3694 = vmatprep.subr.mxu0 0.0
    %3695 = vmatpush1.msra.mxu0 %v3671
    %3696 = vmatprep.subr.mxu0 0.0
    %3697 = vmatpush1.msra.mxu0 %v3673
    %3698 = vmatprep.subr.mxu0 0.0
    %3699 = vmatpush1.msra.mxu0 %v3675
    %3700 = vmatprep.subr.mxu0 0.0
    %3701 = vmatpush1.msra.mxu0 %v3677
    %3702 = vmatprep.subr.mxu0 0.0
    %3703 = vmatpush1.msra.mxu0 0.0
    %3704 = vmatprep.subr.mxu0 0.0
    %3705 = vmatpush1.msra.mxu0 0.0
    %3706 = vmatprep.subr.mxu0 0.0
    %3707 = vmatpush1.msra.mxu0 0.0
    %3708 = vmatprep.subr.mxu0 0.0
    %3709 = vmatpush1.msra.mxu0 0.0
    %3710 = vmatprep.subr.mxu0 0.0
    %3711 = vmatpush1.msra.mxu0 0.0
    %3712 = vmatprep.subr.mxu0 0.0
    %3713 = vmatpush1.msra.mxu0 0.0
    %3714 = vmatprep.subr.mxu0 0.0
    %3715 = vmatpush1.msra.mxu0 0.0
    %3716 = vmatprep.subr.mxu0 0.0
    %3717 = vmatpush1.msra.mxu0 0.0
    %3718 = vmatprep.subr.mxu0 0.0
    %3719 = vmatpush1.msra.mxu0 0.0
    %3720 = vmatprep.subr.mxu0 0.0
    %3721 = vmatpush1.msra.mxu0 0.0
    %3722 = vmatprep.subr.mxu0 0.0
    %3723 = vmatpush1.msra.mxu0 0.0
    %3724 = vmatprep.subr.mxu0 0.0
    %3725 = vmatpush1.msra.mxu0 0.0
    %3726 = vmatprep.subr.mxu0 0.0
    %3727 = vmatpush1.msra.mxu0 0.0
    %3728 = vmatprep.subr.mxu0 0.0
    %3729 = vmatpush1.msra.mxu0 0.0
    %3730 = vmatprep.subr.mxu0 0.0
    %3731 = vmatpush1.msra.mxu0 0.0
    %3732 = vmatprep.subr.mxu0 0.0
    %3733 = vmatpush1.msra.mxu0 0.0
    %3734 = vmatprep.subr.mxu0 0.0
    %3735 = vmatpush1.msra.mxu0 0.0
    %3736 = vmatprep.subr.mxu0 0.0
    %3737 = vmatpush1.msra.mxu0 0.0
    %3738 = vmatprep.subr.mxu0 0.0
    %3739 = vmatpush1.msra.mxu0 0.0
    %3740 = vmatprep.subr.mxu0 0.0
    %3741 = vmatpush1.msra.mxu0 0.0
    %3742 = vmatprep.subr.mxu0 0.0
    %3743 = vmatpush1.msra.mxu0 0.0
    %3744 = vmatprep.subr.mxu0 0.0
    %3745 = vmatpush1.msra.mxu0 0.0
    %3746 = vmatprep.subr.mxu0 0.0
    %3747 = vmatpush1.msra.mxu0 0.0
    %3748 = vmatprep.subr.mxu0 0.0
    %3749 = vmatpush1.msra.mxu0 0.0
    %3750 = vmatprep.subr.mxu0 0.0
    %3751 = vmatpush1.msra.mxu0 0.0
    %3752 = vmatprep.subr.mxu0 0.0
    %3753 = vmatpush1.msra.mxu0 0.0
    %3754 = vmatprep.subr.mxu0 0.0
    %3755 = vmatpush1.msra.mxu0 0.0
    %3756 = vmatprep.subr.mxu0 0.0
    %3757 = vmatpush1.msra.mxu0 0.0
    %3758 = vmatprep.mubr.f32.mxu0 0.0
    %3759 = vmatmul.mubr.f32.gmra.mrb[0].mxu0 %v3683
    %v3760 = vpop.f32.mrb[0].mxu0
    %v3761 = vadd.f32 0.0, %v3760
    %v3762 = vpop.f32.mrb[0].mxu0
    %3763 = vmatprep.mubr.f32.mxu0 0.0
    %3764 = vmatmul.mubr.f32.gmra.mrb[0].mxu0 %v3686
    %v3765 = vpop.f32.mrb[0].mxu0
    %v3766 = vadd.f32 0.0, %v3765
    %v3767 = vpop.f32.mrb[0].mxu0
    %3768 = vmatprep.mubr.f32.mxu0 0.0
    %3769 = vmatmul.mubr.f32.gmra.mrb[0].mxu0 %v3689
    %v3770 = vpop.f32.mrb[0].mxu0
    %v3771 = vadd.f32 0.0, %v3770
    %v3772 = vpop.f32.mrb[0].mxu0
    %3773 = vmatprep.mubr.f32.mxu0 0.0
    %3774 = vmatmul.mubr.f32.gmra.mrb[0].mxu0 %v3692
    %v3775 = vpop.f32.mrb[0].mxu0
    %v3776 = vadd.f32 0.0, %v3775
    %v3777 = vpop.f32.mrb[0].mxu0
    %3778 = vdwg.mxu0
    %3783 = vrot.lane.b32.xlu0 %v3495, 112
    %v3784 = vpop.permute.xlu0 %3783
    %3785 = vrot.lane.b32.xlu0 %v3500, 112
    %v3786 = vpop.permute.xlu0 %3785
    %3787 = vrot.lane.b32.xlu0 %v3505, 112
    %v3788 = vpop.permute.xlu0 %3787
    %3789 = vrot.lane.b32.xlu0 %v3510, 112
    %v3790 = vpop.permute.xlu0 %3789
    %v3791 = vsel %vm40, %v3495, 0
    %v3793 = vsel %vm40, %v3500, 0
    %v3795 = vsel %vm40, %v3505, 0
    %v3797 = vsel %vm40, %v3510, 0
    %v3799 = vsel %vm40, %v3784, 0
    %v3801 = vsel %vm40, %v3786, 0
    %v3803 = vsel %vm40, %v3788, 0
    %v3805 = vsel %vm40, %v3790, 0
    %3807 = vmatprep.subr.mxu0 0.0
    %3808 = vmatpush1.xpose.msra.mxu0 %v3799
    %3809 = vmatprep.subr.mxu0 0.0
    %3810 = vmatpush1.xpose.msra.mxu0 %v3801
    %3811 = vmatprep.subr.mxu0 0.0
    %3812 = vmatpush1.xpose.msra.mxu0 %v3803
    %3813 = vmatprep.subr.mxu0 0.0
    %3814 = vmatpush1.xpose.msra.mxu0 %v3805
    %3815 = vmatprep.subr.mxu0 0.0
    %3816 = vmatpush1.xpose.msra.mxu0 0.0
    %3817 = vmatprep.subr.mxu0 0.0
    %3818 = vmatpush1.xpose.msra.mxu0 0.0
    %3819 = vmatprep.subr.mxu0 0.0
    %3820 = vmatpush1.xpose.msra.mxu0 0.0
    %3821 = vmatprep.subr.mxu0 0.0
    %3822 = vmatpush1.xpose.msra.mxu0 0.0
    %3823 = vmatprep.subr.mxu0 0.0
    %3824 = vmatpush1.xpose.msra.mxu0 0.0
    %3825 = vmatprep.subr.mxu0 0.0
    %3826 = vmatpush1.xpose.msra.mxu0 0.0
    %3827 = vmatprep.subr.mxu0 0.0
    %3828 = vmatpush1.xpose.msra.mxu0 0.0
    %3829 = vmatprep.subr.mxu0 0.0
    %3830 = vmatpush1.xpose.msra.mxu0 0.0
    %3831 = vmatprep.subr.mxu0 0.0
    %3832 = vmatpush1.xpose.msra.mxu0 0.0
    %3833 = vmatprep.subr.mxu0 0.0
    %3834 = vmatpush1.xpose.msra.mxu0 0.0
    %3835 = vmatprep.subr.mxu0 0.0
    %3836 = vmatpush1.xpose.msra.mxu0 0.0
    %3837 = vmatprep.subr.mxu0 0.0
    %3838 = vmatpush1.xpose.msra.mxu0 0.0
    %3839 = vmatprep.subr.mxu0 0.0
    %3840 = vmatpush1.xpose.msra.mxu0 0.0
    %3841 = vmatprep.subr.mxu0 0.0
    %3842 = vmatpush1.xpose.msra.mxu0 0.0
    %3843 = vmatprep.subr.mxu0 0.0
    %3844 = vmatpush1.xpose.msra.mxu0 0.0
    %3845 = vmatprep.subr.mxu0 0.0
    %3846 = vmatpush1.xpose.msra.mxu0 0.0
    %3847 = vmatprep.subr.mxu0 0.0
    %3848 = vmatpush1.xpose.msra.mxu0 0.0
    %3849 = vmatprep.subr.mxu0 0.0
    %3850 = vmatpush1.xpose.msra.mxu0 0.0
    %3851 = vmatprep.subr.mxu0 0.0
    %3852 = vmatpush1.xpose.msra.mxu0 0.0
    %3853 = vmatprep.subr.mxu0 0.0
    %3854 = vmatpush1.xpose.msra.mxu0 0.0
    %3855 = vmatprep.subr.mxu0 0.0
    %3856 = vmatpush1.xpose.msra.mxu0 0.0
    %3857 = vmatprep.subr.mxu0 0.0
    %3858 = vmatpush1.xpose.msra.mxu0 0.0
    %3859 = vmatprep.subr.mxu0 0.0
    %3860 = vmatpush1.xpose.msra.mxu0 0.0
    %3861 = vmatprep.subr.mxu0 0.0
    %3862 = vmatpush1.xpose.msra.mxu0 0.0
    %3863 = vmatprep.subr.mxu0 0.0
    %3864 = vmatpush1.xpose.msra.mxu0 0.0
    %3865 = vmatprep.subr.mxu0 0.0
    %3866 = vmatpush1.xpose.msra.mxu0 0.0
    %3867 = vmatprep.subr.mxu0 0.0
    %3868 = vmatpush1.xpose.msra.mxu0 0.0
    %3869 = vmatprep.subr.mxu0 0.0
    %3870 = vmatpush1.xpose.msra.mxu0 0.0
    %3871 = vmatprep.mubr.f32.mxu0 0.0
    %3872 = vmatmul.mubr.f32.gmra.mrb[0].mxu0 %v3791
    %v3873 = vpop.f32.mrb[0].mxu0
    %v3874 = vadd.f32 0.0, %v3873
    %v3875 = vpop.f32.mrb[0].mxu0
    %3876 = vmatprep.mubr.f32.mxu0 0.0
    %3877 = vmatmul.mubr.f32.gmra.mrb[0].mxu0 %v3793
    %v3878 = vpop.f32.mrb[0].mxu0
    %v3879 = vadd.f32 0.0, %v3878
    %v3880 = vpop.f32.mrb[0].mxu0
    %3881 = vmatprep.mubr.f32.mxu0 0.0
    %3882 = vmatmul.mubr.f32.gmra.mrb[0].mxu0 %v3795
    %v3883 = vpop.f32.mrb[0].mxu0
    %v3884 = vadd.f32 0.0, %v3883
    %v3885 = vpop.f32.mrb[0].mxu0
    %3886 = vmatprep.mubr.f32.mxu0 0.0
    %3887 = vmatmul.mubr.f32.gmra.mrb[0].mxu0 %v3797
    %v3888 = vpop.f32.mrb[0].mxu0
    %v3889 = vadd.f32 0.0, %v3888
    %v3890 = vpop.f32.mrb[0].mxu0
    %3891 = vdwg.mxu0
    %v3892 = vsel %vm805, %v3874, -inf
    %3893 = vmax.xlane.f32.xlu0 %v3892
    %v3894 = vpop.xlane.xlu0 %3893
    %v3895 = vsel %vm805, %v3879, -inf
    %3896 = vmax.xlane.f32.xlu0 %v3895
    %v3897 = vpop.xlane.xlu0 %3896
    %v3898 = vsel %vm805, %v3884, -inf
    %3899 = vmax.xlane.f32.xlu0 %v3898
    %v3900 = vpop.xlane.xlu0 %3899
    %v3901 = vsel %vm805, %v3889, -inf
    %3902 = vmax.xlane.f32.xlu0 %v3901
    %v3903 = vpop.xlane.xlu0 %3902
    %v3904 = vsub.f32 %v3874, %v3894
    %v3905 = vsub.f32 %v3879, %v3897
    %v3906 = vsub.f32 %v3884, %v3900
    %v3907 = vsub.f32 %v3889, %v3903
    %v3908 = vmul.f32 %v3904, 1.442695
    %v3909 = vpow.pop %v3908
    %v3910 = vmul.f32 %v3905, 1.442695
    %v3911 = vpow.pop %v3910
    %v3912 = vmul.f32 %v3906, 1.442695
    %v3913 = vpow.pop %v3912
    %v3914 = vmul.f32 %v3907, 1.442695
    %v3915 = vpow.pop %v3914
    %v3916 = vsel %vm805, %v3909, 0.0
    %3917 = vadd.xlane.f32.xlu0 %v3916
    %v3918 = vpop.xlane.xlu0 %3917
    %v3919 = vsel %vm805, %v3911, 0.0
    %3920 = vadd.xlane.f32.xlu0 %v3919
    %v3921 = vpop.xlane.xlu0 %3920
    %v3922 = vsel %vm805, %v3913, 0.0
    %3923 = vadd.xlane.f32.xlu0 %v3922
    %v3924 = vpop.xlane.xlu0 %3923
    %v3925 = vsel %vm805, %v3915, 0.0
    %3926 = vadd.xlane.f32.xlu0 %v3925
    %v3927 = vpop.xlane.xlu0 %3926
    %v3928 = vrcp.pop %v3918
    %v3929 = vrcp.pop %v3921
    %v3930 = vrcp.pop %v3924
    %v3931 = vrcp.pop %v3927
    %v3932 = vmul.f32 %v3909, %v3928
    %v3933 = vmul.f32 %v3911, %v3929
    %v3934 = vmul.f32 %v3913, %v3930
    %v3935 = vmul.f32 %v3915, %v3931
    %3936 = vrot.lane.b32.xlu0 %v3495, 96
    %v3937 = vpop.permute.xlu0 %3936
    %3938 = vrot.lane.b32.xlu0 %v3500, 96
    %v3939 = vpop.permute.xlu0 %3938
    %3940 = vrot.lane.b32.xlu0 %v3505, 96
    %v3941 = vpop.permute.xlu0 %3940
    %3942 = vrot.lane.b32.xlu0 %v3510, 96
    %v3943 = vpop.permute.xlu0 %3942
    %v3949 = vsel %vm805, %v3932, 0
    %v3952 = vsel %vm805, %v3933, 0
    %v3955 = vsel %vm805, %v3934, 0
    %v3958 = vsel %vm805, %v3935, 0
    %3960 = vmatprep.subr.mxu0 0.0
    %3961 = vmatpush1.msra.mxu0 %v3937
    %3962 = vmatprep.subr.mxu0 0.0
    %3963 = vmatpush1.msra.mxu0 %v3939
    %3964 = vmatprep.subr.mxu0 0.0
    %3965 = vmatpush1.msra.mxu0 %v3941
    %3966 = vmatprep.subr.mxu0 0.0
    %3967 = vmatpush1.msra.mxu0 %v3943
    %3968 = vmatprep.subr.mxu0 0.0
    %3969 = vmatpush1.msra.mxu0 0.0
    %3970 = vmatprep.subr.mxu0 0.0
    %3971 = vmatpush1.msra.mxu0 0.0
    %3972 = vmatprep.subr.mxu0 0.0
    %3973 = vmatpush1.msra.mxu0 0.0
    %3974 = vmatprep.subr.mxu0 0.0
    %3975 = vmatpush1.msra.mxu0 0.0
    %3976 = vmatprep.subr.mxu0 0.0
    %3977 = vmatpush1.msra.mxu0 0.0
    %3978 = vmatprep.subr.mxu0 0.0
    %3979 = vmatpush1.msra.mxu0 0.0
    %3980 = vmatprep.subr.mxu0 0.0
    %3981 = vmatpush1.msra.mxu0 0.0
    %3982 = vmatprep.subr.mxu0 0.0
    %3983 = vmatpush1.msra.mxu0 0.0
    %3984 = vmatprep.subr.mxu0 0.0
    %3985 = vmatpush1.msra.mxu0 0.0
    %3986 = vmatprep.subr.mxu0 0.0
    %3987 = vmatpush1.msra.mxu0 0.0
    %3988 = vmatprep.subr.mxu0 0.0
    %3989 = vmatpush1.msra.mxu0 0.0
    %3990 = vmatprep.subr.mxu0 0.0
    %3991 = vmatpush1.msra.mxu0 0.0
    %3992 = vmatprep.subr.mxu0 0.0
    %3993 = vmatpush1.msra.mxu0 0.0
    %3994 = vmatprep.subr.mxu0 0.0
    %3995 = vmatpush1.msra.mxu0 0.0
    %3996 = vmatprep.subr.mxu0 0.0
    %3997 = vmatpush1.msra.mxu0 0.0
    %3998 = vmatprep.subr.mxu0 0.0
    %3999 = vmatpush1.msra.mxu0 0.0
    %4000 = vmatprep.subr.mxu0 0.0
    %4001 = vmatpush1.msra.mxu0 0.0
    %4002 = vmatprep.subr.mxu0 0.0
    %4003 = vmatpush1.msra.mxu0 0.0
    %4004 = vmatprep.subr.mxu0 0.0
    %4005 = vmatpush1.msra.mxu0 0.0
    %4006 = vmatprep.subr.mxu0 0.0
    %4007 = vmatpush1.msra.mxu0 0.0
    %4008 = vmatprep.subr.mxu0 0.0
    %4009 = vmatpush1.msra.mxu0 0.0
    %4010 = vmatprep.subr.mxu0 0.0
    %4011 = vmatpush1.msra.mxu0 0.0
    %4012 = vmatprep.subr.mxu0 0.0
    %4013 = vmatpush1.msra.mxu0 0.0
    %4014 = vmatprep.subr.mxu0 0.0
    %4015 = vmatpush1.msra.mxu0 0.0
    %4016 = vmatprep.subr.mxu0 0.0
    %4017 = vmatpush1.msra.mxu0 0.0
    %4018 = vmatprep.subr.mxu0 0.0
    %4019 = vmatpush1.msra.mxu0 0.0
    %4020 = vmatprep.subr.mxu0 0.0
    %4021 = vmatpush1.msra.mxu0 0.0
    %4022 = vmatprep.subr.mxu0 0.0
    %4023 = vmatpush1.msra.mxu0 0.0
    %4024 = vmatprep.mubr.f32.mxu0 0.0
    %4025 = vmatmul.mubr.f32.gmra.mrb[0].mxu0 %v3949
    %v4026 = vpop.f32.mrb[0].mxu0
    %v4027 = vadd.f32 0.0, %v4026
    %v4028 = vpop.f32.mrb[0].mxu0
    %4029 = vmatprep.mubr.f32.mxu0 0.0
    %4030 = vmatmul.mubr.f32.gmra.mrb[0].mxu0 %v3952
    %v4031 = vpop.f32.mrb[0].mxu0
    %v4032 = vadd.f32 0.0, %v4031
    %v4033 = vpop.f32.mrb[0].mxu0
    %4034 = vmatprep.mubr.f32.mxu0 0.0
    %4035 = vmatmul.mubr.f32.gmra.mrb[0].mxu0 %v3955
    %v4036 = vpop.f32.mrb[0].mxu0
    %v4037 = vadd.f32 0.0, %v4036
    %v4038 = vpop.f32.mrb[0].mxu0
    %4039 = vmatprep.mubr.f32.mxu0 0.0
    %4040 = vmatmul.mubr.f32.gmra.mrb[0].mxu0 %v3958
    %v4041 = vpop.f32.mrb[0].mxu0
    %v4042 = vadd.f32 0.0, %v4041
    %v4043 = vpop.f32.mrb[0].mxu0
    %4044 = vdwg.mxu0
    %v4045 = vld [vmem:[#allocation2 + $0xc0] sm:$0xff]
    %v4046 = vld [vmem:[#allocation2 + $0xc8] sm:$0xff]
    %v4047 = vld [vmem:[#allocation2 + $0x11d] sm:$0x1]
    %v4048 = vlaneseq
    %v4049 = vshrl.u32 %v4048, 7
    %v4050 = vsub.s32 0, %v4049
    %v4051 = vrot.slane %v4047, %v4050
    %4054 = vrot.lane.b32.xlu0 %v4045, 64
    %v4055 = vpop.permute.xlu0 %4054
    %4056 = vrot.lane.b32.xlu0 %v4046, 64
    %v4057 = vpop.permute.xlu0 %4056
    %4061 = vrot.lane.b32.xlu0 %v4051, 64
    %v4062 = vpop.permute.xlu0 %4061
    %v4065 = vsel %vm40, %v3761, 0
    %v4068 = vsel %vm40, %v3766, 0
    %v4071 = vsel %vm40, %v3771, 0
    %v4074 = vsel %vm40, %v3776, 0
    %v4077 = vsel %vm40, %v4027, 0
    %v4080 = vsel %vm40, %v4032, 0
    %v4083 = vsel %vm40, %v4037, 0
    %v4086 = vsel %vm40, %v4042, 0
    %4088 = vmatprep.subr.mxu0 0.0
    %4089 = vmatpush1.msra.mxu0 %v4055
    %4090 = vmatprep.subr.mxu0 0.0
    %4091 = vmatpush1.msra.mxu0 %v4057
    %4092 = vmatprep.subr.mxu0 0.0
    %4093 = vmatpush1.msra.mxu0 0.0
    %4094 = vmatprep.subr.mxu0 0.0
    %4095 = vmatpush1.msra.mxu0 0.0
    %4096 = vmatprep.subr.mxu0 0.0
    %4097 = vmatpush1.msra.mxu0 0.0
    %4098 = vmatprep.subr.mxu0 0.0
    %4099 = vmatpush1.msra.mxu0 0.0
    %4100 = vmatprep.subr.mxu0 0.0
    %4101 = vmatpush1.msra.mxu0 0.0
    %4102 = vmatprep.subr.mxu0 0.0
    %4103 = vmatpush1.msra.mxu0 0.0
    %4104 = vmatprep.subr.mxu0 0.0
    %4105 = vmatpush1.msra.mxu0 0.0
    %4106 = vmatprep.subr.mxu0 0.0
    %4107 = vmatpush1.msra.mxu0 0.0
    %4108 = vmatprep.subr.mxu0 0.0
    %4109 = vmatpush1.msra.mxu0 0.0
    %4110 = vmatprep.subr.mxu0 0.0
    %4111 = vmatpush1.msra.mxu0 0.0
    %4112 = vmatprep.subr.mxu0 0.0
    %4113 = vmatpush1.msra.mxu0 0.0
    %4114 = vmatprep.subr.mxu0 0.0
    %4115 = vmatpush1.msra.mxu0 0.0
    %4116 = vmatprep.subr.mxu0 0.0
    %4117 = vmatpush1.msra.mxu0 0.0
    %4118 = vmatprep.subr.mxu0 0.0
    %4119 = vmatpush1.msra.mxu0 0.0
    %4120 = vmatprep.subr.mxu0 0.0
    %4121 = vmatpush1.msra.mxu0 0.0
    %4122 = vmatprep.subr.mxu0 0.0
    %4123 = vmatpush1.msra.mxu0 0.0
    %4124 = vmatprep.subr.mxu0 0.0
    %4125 = vmatpush1.msra.mxu0 0.0
    %4126 = vmatprep.subr.mxu0 0.0
    %4127 = vmatpush1.msra.mxu0 0.0
    %4128 = vmatprep.subr.mxu0 0.0
    %4129 = vmatpush1.msra.mxu0 0.0
    %4130 = vmatprep.subr.mxu0 0.0
    %4131 = vmatpush1.msra.mxu0 0.0
    %4132 = vmatprep.subr.mxu0 0.0
    %4133 = vmatpush1.msra.mxu0 0.0
    %4134 = vmatprep.subr.mxu0 0.0
    %4135 = vmatpush1.msra.mxu0 0.0
    %4136 = vmatprep.subr.mxu0 0.0
    %4137 = vmatpush1.msra.mxu0 0.0
    %4138 = vmatprep.subr.mxu0 0.0
    %4139 = vmatpush1.msra.mxu0 0.0
    %4140 = vmatprep.subr.mxu0 0.0
    %4141 = vmatpush1.msra.mxu0 0.0
    %4142 = vmatprep.subr.mxu0 0.0
    %4143 = vmatpush1.msra.mxu0 0.0
    %4144 = vmatprep.subr.mxu0 0.0
    %4145 = vmatpush1.msra.mxu0 0.0
    %4146 = vmatprep.subr.mxu0 0.0
    %4147 = vmatpush1.msra.mxu0 0.0
    %4148 = vmatprep.subr.mxu0 0.0
    %4149 = vmatpush1.msra.mxu0 0.0
    %4150 = vmatprep.subr.mxu0 0.0
    %4151 = vmatpush1.msra.mxu0 0.0
    %4152 = vmatprep.mubr.f32.mxu0 0.0
    %4153 = vmatmul.mubr.f32.gmra.mrb[0].mxu0 %v4065
    %v4154 = vpop.f32.mrb[0].mxu0
    %v4155 = vadd.f32 %v4062, %v4154
    %v4156 = vpop.f32.mrb[0].mxu0
    %4157 = vmatprep.mubr.f32.mxu0 0.0
    %4158 = vmatmul.mubr.f32.gmra.mrb[0].mxu0 %v4068
    %v4159 = vpop.f32.mrb[0].mxu0
    %v4160 = vadd.f32 %v4062, %v4159
    %v4161 = vpop.f32.mrb[0].mxu0
    %4162 = vmatprep.mubr.f32.mxu0 0.0
    %4163 = vmatmul.mubr.f32.gmra.mrb[0].mxu0 %v4071
    %v4164 = vpop.f32.mrb[0].mxu0
    %v4165 = vadd.f32 %v4062, %v4164
    %v4166 = vpop.f32.mrb[0].mxu0
    %4167 = vmatprep.mubr.f32.mxu0 0.0
    %4168 = vmatmul.mubr.f32.gmra.mrb[0].mxu0 %v4074
    %v4169 = vpop.f32.mrb[0].mxu0
    %v4170 = vadd.f32 %v4062, %v4169
    %v4171 = vpop.f32.mrb[0].mxu0
    %4172 = vmatprep.mubr.f32.mxu0 0.0
    %4173 = vmatmul.mubr.f32.gmra.mrb[0].mxu0 %v4077
    %v4174 = vpop.f32.mrb[0].mxu0
    %v4175 = vadd.f32 %v4062, %v4174
    %v4176 = vpop.f32.mrb[0].mxu0
    %4177 = vmatprep.mubr.f32.mxu0 0.0
    %4178 = vmatmul.mubr.f32.gmra.mrb[0].mxu0 %v4080
    %v4179 = vpop.f32.mrb[0].mxu0
    %v4180 = vadd.f32 %v4062, %v4179
    %v4181 = vpop.f32.mrb[0].mxu0
    %4182 = vmatprep.mubr.f32.mxu0 0.0
    %4183 = vmatmul.mubr.f32.gmra.mrb[0].mxu0 %v4083
    %v4184 = vpop.f32.mrb[0].mxu0
    %v4185 = vadd.f32 %v4062, %v4184
    %v4186 = vpop.f32.mrb[0].mxu0
    %4187 = vmatprep.mubr.f32.mxu0 0.0
    %4188 = vmatmul.mubr.f32.gmra.mrb[0].mxu0 %v4086
    %v4189 = vpop.f32.mrb[0].mxu0
    %v4190 = vadd.f32 %v4062, %v4189
    %v4191 = vpop.f32.mrb[0].mxu0
    %4192 = vdwg.mxu0
    %v4193 = vadd.f32 %v4155, %v3363
    %v4194 = vadd.f32 %v4160, %v3364
    %v4195 = vadd.f32 %v4165, %v3365
    %v4196 = vadd.f32 %v4170, %v3366
    %v4197 = vadd.f32 %v4175, %v3367
    %v4198 = vadd.f32 %v4180, %v3368
    %v4199 = vadd.f32 %v4185, %v3369
    %v4200 = vadd.f32 %v4190, %v3370
    %v4201 = vld [vmem:[#allocation2 + $0xd0] sm:$0xff]
    %v4202 = vld [vmem:[#allocation2 + $0xd8] sm:$0xff]
    %v4203 = vld [vmem:[#allocation2 + $0xe0] sm:$0xff]
    %v4204 = vld [vmem:[#allocation2 + $0xe8] sm:$0xff]
    %v4205 = vld [vmem:[#allocation2 + $0x11e] sm:$0x1]
    %v4206 = vlaneseq
    %v4207 = vshrl.u32 %v4206, 7
    %v4208 = vsub.s32 0, %v4207
    %v4209 = vrot.slane %v4205, %v4208
    %4214 = vrot.lane.b32.xlu0 %v4201, 64
    %v4215 = vpop.permute.xlu0 %4214
    %4216 = vrot.lane.b32.xlu0 %v4202, 64
    %v4217 = vpop.permute.xlu0 %4216
    %4218 = vrot.lane.b32.xlu0 %v4203, 64
    %v4219 = vpop.permute.xlu0 %4218
    %4220 = vrot.lane.b32.xlu0 %v4204, 64
    %v4221 = vpop.permute.xlu0 %4220
    %4227 = vrot.lane.b32.xlu0 %v4209, 64
    %v4228 = vpop.permute.xlu0 %4227
    %v4231 = vsel %vm805, %v4193, 0
    %v4234 = vsel %vm805, %v4194, 0
    %v4237 = vsel %vm805, %v4195, 0
    %v4240 = vsel %vm805, %v4196, 0
    %v4243 = vsel %vm805, %v4197, 0
    %v4246 = vsel %vm805, %v4198, 0
    %v4249 = vsel %vm805, %v4199, 0
    %v4252 = vsel %vm805, %v4200, 0
    %4254 = vmatprep.subr.mxu0 0.0
    %4255 = vmatpush1.msra.mxu0 %v4215
    %4256 = vmatprep.subr.mxu0 0.0
    %4257 = vmatpush1.msra.mxu0 %v4217
    %4258 = vmatprep.subr.mxu0 0.0
    %4259 = vmatpush1.msra.mxu0 %v4219
    %4260 = vmatprep.subr.mxu0 0.0
    %4261 = vmatpush1.msra.mxu0 %v4221
    %4262 = vmatprep.subr.mxu0 0.0
    %4263 = vmatpush1.msra.mxu0 0.0
    %4264 = vmatprep.subr.mxu0 0.0
    %4265 = vmatpush1.msra.mxu0 0.0
    %4266 = vmatprep.subr.mxu0 0.0
    %4267 = vmatpush1.msra.mxu0 0.0
    %4268 = vmatprep.subr.mxu0 0.0
    %4269 = vmatpush1.msra.mxu0 0.0
    %4270 = vmatprep.subr.mxu0 0.0
    %4271 = vmatpush1.msra.mxu0 0.0
    %4272 = vmatprep.subr.mxu0 0.0
    %4273 = vmatpush1.msra.mxu0 0.0
    %4274 = vmatprep.subr.mxu0 0.0
    %4275 = vmatpush1.msra.mxu0 0.0
    %4276 = vmatprep.subr.mxu0 0.0
    %4277 = vmatpush1.msra.mxu0 0.0
    %4278 = vmatprep.subr.mxu0 0.0
    %4279 = vmatpush1.msra.mxu0 0.0
    %4280 = vmatprep.subr.mxu0 0.0
    %4281 = vmatpush1.msra.mxu0 0.0
    %4282 = vmatprep.subr.mxu0 0.0
    %4283 = vmatpush1.msra.mxu0 0.0
    %4284 = vmatprep.subr.mxu0 0.0
    %4285 = vmatpush1.msra.mxu0 0.0
    %4286 = vmatprep.subr.mxu0 0.0
    %4287 = vmatpush1.msra.mxu0 0.0
    %4288 = vmatprep.subr.mxu0 0.0
    %4289 = vmatpush1.msra.mxu0 0.0
    %4290 = vmatprep.subr.mxu0 0.0
    %4291 = vmatpush1.msra.mxu0 0.0
    %4292 = vmatprep.subr.mxu0 0.0
    %4293 = vmatpush1.msra.mxu0 0.0
    %4294 = vmatprep.subr.mxu0 0.0
    %4295 = vmatpush1.msra.mxu0 0.0
    %4296 = vmatprep.subr.mxu0 0.0
    %4297 = vmatpush1.msra.mxu0 0.0
    %4298 = vmatprep.subr.mxu0 0.0
    %4299 = vmatpush1.msra.mxu0 0.0
    %4300 = vmatprep.subr.mxu0 0.0
    %4301 = vmatpush1.msra.mxu0 0.0
    %4302 = vmatprep.subr.mxu0 0.0
    %4303 = vmatpush1.msra.mxu0 0.0
    %4304 = vmatprep.subr.mxu0 0.0
    %4305 = vmatpush1.msra.mxu0 0.0
    %4306 = vmatprep.subr.mxu0 0.0
    %4307 = vmatpush1.msra.mxu0 0.0
    %4308 = vmatprep.subr.mxu0 0.0
    %4309 = vmatpush1.msra.mxu0 0.0
    %4310 = vmatprep.subr.mxu0 0.0
    %4311 = vmatpush1.msra.mxu0 0.0
    %4312 = vmatprep.subr.mxu0 0.0
    %4313 = vmatpush1.msra.mxu0 0.0
    %4314 = vmatprep.subr.mxu0 0.0
    %4315 = vmatpush1.msra.mxu0 0.0
    %4316 = vmatprep.subr.mxu0 0.0
    %4317 = vmatpush1.msra.mxu0 0.0
    %4318 = vmatprep.mubr.f32.mxu0 0.0
    %4319 = vmatmul.mubr.f32.gmra.mrb[0].mxu0 %v4231
    %v4320 = vpop.f32.mrb[0].mxu0
    %v4321 = vadd.f32 %v4228, %v4320
    %v4322 = vpop.f32.mrb[0].mxu0
    %4323 = vmatprep.mubr.f32.mxu0 0.0
    %4324 = vmatmul.mubr.f32.gmra.mrb[0].mxu0 %v4234
    %v4325 = vpop.f32.mrb[0].mxu0
    %v4326 = vadd.f32 %v4228, %v4325
    %v4327 = vpop.f32.mrb[0].mxu0
    %4328 = vmatprep.mubr.f32.mxu0 0.0
    %4329 = vmatmul.mubr.f32.gmra.mrb[0].mxu0 %v4237
    %v4330 = vpop.f32.mrb[0].mxu0
    %v4331 = vadd.f32 %v4228, %v4330
    %v4332 = vpop.f32.mrb[0].mxu0
    %4333 = vmatprep.mubr.f32.mxu0 0.0
    %4334 = vmatmul.mubr.f32.gmra.mrb[0].mxu0 %v4240
    %v4335 = vpop.f32.mrb[0].mxu0
    %v4336 = vadd.f32 %v4228, %v4335
    %v4337 = vpop.f32.mrb[0].mxu0
    %4338 = vmatprep.mubr.f32.mxu0 0.0
    %4339 = vmatmul.mubr.f32.gmra.mrb[0].mxu0 %v4243
    %v4340 = vpop.f32.mrb[0].mxu0
    %v4341 = vadd.f32 %v4228, %v4340
    %v4342 = vpop.f32.mrb[0].mxu0
    %4343 = vmatprep.mubr.f32.mxu0 0.0
    %4344 = vmatmul.mubr.f32.gmra.mrb[0].mxu0 %v4246
    %v4345 = vpop.f32.mrb[0].mxu0
    %v4346 = vadd.f32 %v4228, %v4345
    %v4347 = vpop.f32.mrb[0].mxu0
    %4348 = vmatprep.mubr.f32.mxu0 0.0
    %4349 = vmatmul.mubr.f32.gmra.mrb[0].mxu0 %v4249
    %v4350 = vpop.f32.mrb[0].mxu0
    %v4351 = vadd.f32 %v4228, %v4350
    %v4352 = vpop.f32.mrb[0].mxu0
    %4353 = vmatprep.mubr.f32.mxu0 0.0
    %4354 = vmatmul.mubr.f32.gmra.mrb[0].mxu0 %v4252
    %v4355 = vpop.f32.mrb[0].mxu0
    %v4356 = vadd.f32 %v4228, %v4355
    %v4357 = vpop.f32.mrb[0].mxu0
    %4358 = vdwg.mxu0
    %v4359 = vmax.f32 %v4321, 0.0
    %v4360 = vmax.f32 %v4326, 0.0
    %v4361 = vmax.f32 %v4331, 0.0
    %v4362 = vmax.f32 %v4336, 0.0
    %v4363 = vmax.f32 %v4341, 0.0
    %v4364 = vmax.f32 %v4346, 0.0
    %v4365 = vmax.f32 %v4351, 0.0
    %v4366 = vmax.f32 %v4356, 0.0
    %v4367 = vld [vmem:[#allocation2 + $0xe0] sm:$0xff]
    %v4368 = vld [vmem:[#allocation2 + $0xe8] sm:$0xff]
    %v4369 = vld [vmem:[#allocation2 + $0xf0] sm:$0xff]
    %v4370 = vld [vmem:[#allocation2 + $0xf8] sm:$0xff]
    %v4371 = vld [vmem:[#allocation2 + $0x11f] sm:$0x1]
    %v4372 = vlaneseq
    %v4373 = vshrl.u32 %v4372, 7
    %v4374 = vsub.s32 0, %v4373
    %v4375 = vrot.slane %v4371, %v4374
    %4377 = vrot.lane.b32.xlu0 %v4375, 64
    %v4378 = vpop.permute.xlu0 %4377
    %v4381 = vsel %vm805, %v4359, 0
    %v4384 = vsel %vm805, %v4360, 0
    %v4387 = vsel %vm805, %v4361, 0
    %v4390 = vsel %vm805, %v4362, 0
    %v4393 = vsel %vm805, %v4363, 0
    %v4396 = vsel %vm805, %v4364, 0
    %v4399 = vsel %vm805, %v4365, 0
    %v4402 = vsel %vm805, %v4366, 0
    %4404 = vmatprep.subr.mxu0 0.0
    %4405 = vmatpush1.msra.mxu0 %v4367
    %4406 = vmatprep.subr.mxu0 0.0
    %4407 = vmatpush1.msra.mxu0 %v4368
    %4408 = vmatprep.subr.mxu0 0.0
    %4409 = vmatpush1.msra.mxu0 %v4369
    %4410 = vmatprep.subr.mxu0 0.0
    %4411 = vmatpush1.msra.mxu0 %v4370
    %4412 = vmatprep.subr.mxu0 0.0
    %4413 = vmatpush1.msra.mxu0 0.0
    %4414 = vmatprep.subr.mxu0 0.0
    %4415 = vmatpush1.msra.mxu0 0.0
    %4416 = vmatprep.subr.mxu0 0.0
    %4417 = vmatpush1.msra.mxu0 0.0
    %4418 = vmatprep.subr.mxu0 0.0
    %4419 = vmatpush1.msra.mxu0 0.0
    %4420 = vmatprep.subr.mxu0 0.0
    %4421 = vmatpush1.msra.mxu0 0.0
    %4422 = vmatprep.subr.mxu0 0.0
    %4423 = vmatpush1.msra.mxu0 0.0
    %4424 = vmatprep.subr.mxu0 0.0
    %4425 = vmatpush1.msra.mxu0 0.0
    %4426 = vmatprep.subr.mxu0 0.0
    %4427 = vmatpush1.msra.mxu0 0.0
    %4428 = vmatprep.subr.mxu0 0.0
    %4429 = vmatpush1.msra.mxu0 0.0
    %4430 = vmatprep.subr.mxu0 0.0
    %4431 = vmatpush1.msra.mxu0 0.0
    %4432 = vmatprep.subr.mxu0 0.0
    %4433 = vmatpush1.msra.mxu0 0.0
    %4434 = vmatprep.subr.mxu0 0.0
    %4435 = vmatpush1.msra.mxu0 0.0
    %4436 = vmatprep.subr.mxu0 0.0
    %4437 = vmatpush1.msra.mxu0 0.0
    %4438 = vmatprep.subr.mxu0 0.0
    %4439 = vmatpush1.msra.mxu0 0.0
    %4440 = vmatprep.subr.mxu0 0.0
    %4441 = vmatpush1.msra.mxu0 0.0
    %4442 = vmatprep.subr.mxu0 0.0
    %4443 = vmatpush1.msra.mxu0 0.0
    %4444 = vmatprep.subr.mxu0 0.0
    %4445 = vmatpush1.msra.mxu0 0.0
    %4446 = vmatprep.subr.mxu0 0.0
    %4447 = vmatpush1.msra.mxu0 0.0
    %4448 = vmatprep.subr.mxu0 0.0
    %4449 = vmatpush1.msra.mxu0 0.0
    %4450 = vmatprep.subr.mxu0 0.0
    %4451 = vmatpush1.msra.mxu0 0.0
    %4452 = vmatprep.subr.mxu0 0.0
    %4453 = vmatpush1.msra.mxu0 0.0
    %4454 = vmatprep.subr.mxu0 0.0
    %4455 = vmatpush1.msra.mxu0 0.0
    %4456 = vmatprep.subr.mxu0 0.0
    %4457 = vmatpush1.msra.mxu0 0.0
    %4458 = vmatprep.subr.mxu0 0.0
    %4459 = vmatpush1.msra.mxu0 0.0
    %4460 = vmatprep.subr.mxu0 0.0
    %4461 = vmatpush1.msra.mxu0 0.0
    %4462 = vmatprep.subr.mxu0 0.0
    %4463 = vmatpush1.msra.mxu0 0.0
    %4464 = vmatprep.subr.mxu0 0.0
    %4465 = vmatpush1.msra.mxu0 0.0
    %4466 = vmatprep.subr.mxu0 0.0
    %4467 = vmatpush1.msra.mxu0 0.0
    %4468 = vmatprep.mubr.f32.mxu0 0.0
    %4469 = vmatmul.mubr.f32.gmra.mrb[0].mxu0 %v4381
    %v4470 = vpop.f32.mrb[0].mxu0
    %v4471 = vadd.f32 %v4378, %v4470
    %v4472 = vpop.f32.mrb[0].mxu0
    %4473 = vmatprep.mubr.f32.mxu0 0.0
    %4474 = vmatmul.mubr.f32.gmra.mrb[0].mxu0 %v4384
    %v4475 = vpop.f32.mrb[0].mxu0
    %v4476 = vadd.f32 %v4378, %v4475
    %v4477 = vpop.f32.mrb[0].mxu0
    %4478 = vmatprep.mubr.f32.mxu0 0.0
    %4479 = vmatmul.mubr.f32.gmra.mrb[0].mxu0 %v4387
    %v4480 = vpop.f32.mrb[0].mxu0
    %v4481 = vadd.f32 %v4378, %v4480
    %v4482 = vpop.f32.mrb[0].mxu0
    %4483 = vmatprep.mubr.f32.mxu0 0.0
    %4484 = vmatmul.mubr.f32.gmra.mrb[0].mxu0 %v4390
    %v4485 = vpop.f32.mrb[0].mxu0
    %v4486 = vadd.f32 %v4378, %v4485
    %v4487 = vpop.f32.mrb[0].mxu0
    %4488 = vmatprep.mubr.f32.mxu0 0.0
    %4489 = vmatmul.mubr.f32.gmra.mrb[0].mxu0 %v4393
    %v4490 = vpop.f32.mrb[0].mxu0
    %v4491 = vadd.f32 %v4378, %v4490
    %v4492 = vpop.f32.mrb[0].mxu0
    %4493 = vmatprep.mubr.f32.mxu0 0.0
    %4494 = vmatmul.mubr.f32.gmra.mrb[0].mxu0 %v4396
    %v4495 = vpop.f32.mrb[0].mxu0
    %v4496 = vadd.f32 %v4378, %v4495
    %v4497 = vpop.f32.mrb[0].mxu0
    %4498 = vmatprep.mubr.f32.mxu0 0.0
    %4499 = vmatmul.mubr.f32.gmra.mrb[0].mxu0 %v4399
    %v4500 = vpop.f32.mrb[0].mxu0
    %v4501 = vadd.f32 %v4378, %v4500
    %v4502 = vpop.f32.mrb[0].mxu0
    %4503 = vmatprep.mubr.f32.mxu0 0.0
    %4504 = vmatmul.mubr.f32.gmra.mrb[0].mxu0 %v4402
    %v4505 = vpop.f32.mrb[0].mxu0
    %v4506 = vadd.f32 %v4378, %v4505
    %v4507 = vpop.f32.mrb[0].mxu0
    %4508 = vdwg.mxu0
    %v4509 = vadd.f32 %v4471, %v4193
    %v4510 = vadd.f32 %v4476, %v4194
    %v4511 = vadd.f32 %v4481, %v4195
    %v4512 = vadd.f32 %v4486, %v4196
    %v4513 = vadd.f32 %v4491, %v4197
    %v4514 = vadd.f32 %v4496, %v4198
    %v4515 = vadd.f32 %v4501, %v4199
    %v4516 = vadd.f32 %v4506, %v4200
    %v4517 = vld [vmem:[#allocation2 + $0x120] sm:$0x1]
    %v4518 = vlaneseq
    %v4519 = vshrl.u32 %v4518, 7
    %v4520 = vsub.s32 0, %v4519
    %v4521 = vrot.slane %v4517, %v4520
    %4524 = vrot.lane.b32.xlu0 %v4369, 64
    %v4525 = vpop.permute.xlu0 %4524
    %4526 = vrot.lane.b32.xlu0 %v4370, 64
    %v4527 = vpop.permute.xlu0 %4526
    %4530 = vmatprep.subr.mxu0 0.0
    %4531 = vmatpush1.msra.mxu0 %v4525
    %4532 = vmatprep.subr.mxu0 0.0
    %4533 = vmatpush1.msra.mxu0 %v4527
    %4534 = vmatprep.subr.mxu0 0.0
    %4535 = vmatpush1.msra.mxu0 0.0
    %4536 = vmatprep.subr.mxu0 0.0
    %4537 = vmatpush1.msra.mxu0 0.0
    %4538 = vmatprep.subr.mxu0 0.0
    %4539 = vmatpush1.msra.mxu0 0.0
    %4540 = vmatprep.subr.mxu0 0.0
    %4541 = vmatpush1.msra.mxu0 0.0
    %4542 = vmatprep.subr.mxu0 0.0
    %4543 = vmatpush1.msra.mxu0 0.0
    %4544 = vmatprep.subr.mxu0 0.0
    %4545 = vmatpush1.msra.mxu0 0.0
    %4546 = vmatprep.subr.mxu0 0.0
    %4547 = vmatpush1.msra.mxu0 0.0
    %4548 = vmatprep.subr.mxu0 0.0
    %4549 = vmatpush1.msra.mxu0 0.0
    %4550 = vmatprep.subr.mxu0 0.0
    %4551 = vmatpush1.msra.mxu0 0.0
    %4552 = vmatprep.subr.mxu0 0.0
    %4553 = vmatpush1.msra.mxu0 0.0
    %4554 = vmatprep.subr.mxu0 0.0
    %4555 = vmatpush1.msra.mxu0 0.0
    %4556 = vmatprep.subr.mxu0 0.0
    %4557 = vmatpush1.msra.mxu0 0.0
    %4558 = vmatprep.subr.mxu0 0.0
    %4559 = vmatpush1.msra.mxu0 0.0
    %4560 = vmatprep.subr.mxu0 0.0
    %4561 = vmatpush1.msra.mxu0 0.0
    %4562 = vmatprep.subr.mxu0 0.0
    %4563 = vmatpush1.msra.mxu0 0.0
    %4564 = vmatprep.subr.mxu0 0.0
    %4565 = vmatpush1.msra.mxu0 0.0
    %4566 = vmatprep.subr.mxu0 0.0
    %4567 = vmatpush1.msra.mxu0 0.0
    %4568 = vmatprep.subr.mxu0 0.0
    %4569 = vmatpush1.msra.mxu0 0.0
    %4570 = vmatprep.subr.mxu0 0.0
    %4571 = vmatpush1.msra.mxu0 0.0
    %4572 = vmatprep.subr.mxu0 0.0
    %4573 = vmatpush1.msra.mxu0 0.0
    %4574 = vmatprep.subr.mxu0 0.0
    %4575 = vmatpush1.msra.mxu0 0.0
    %4576 = vmatprep.subr.mxu0 0.0
    %4577 = vmatpush1.msra.mxu0 0.0
    %4578 = vmatprep.subr.mxu0 0.0
    %4579 = vmatpush1.msra.mxu0 0.0
    %4580 = vmatprep.subr.mxu0 0.0
    %4581 = vmatpush1.msra.mxu0 0.0
    %4582 = vmatprep.subr.mxu0 0.0
    %4583 = vmatpush1.msra.mxu0 0.0
    %4584 = vmatprep.subr.mxu0 0.0
    %4585 = vmatpush1.msra.mxu0 0.0
    %4586 = vmatprep.subr.mxu0 0.0
    %4587 = vmatpush1.msra.mxu0 0.0
    %4588 = vmatprep.subr.mxu0 0.0
    %4589 = vmatpush1.msra.mxu0 0.0
    %4590 = vmatprep.subr.mxu0 0.0
    %4591 = vmatpush1.msra.mxu0 0.0
    %4592 = vmatprep.subr.mxu0 0.0
    %4593 = vmatpush1.msra.mxu0 0.0
    %4594 = vmatprep.mubr.f32.mxu0 0.0
    %4595 = vmatmul.mubr.f32.gmra.mrb[0].mxu0 %v42
    %v4596 = vpop.f32.mrb[0].mxu0
    %v4597 = vadd.f32 %v4521, %v4596
    %v4598 = vpop.f32.mrb[0].mxu0
    %4599 = vmatprep.mubr.f32.mxu0 0.0
    %4600 = vmatmul.mubr.f32.gmra.mrb[0].mxu0 %v45
    %v4601 = vpop.f32.mrb[0].mxu0
    %v4602 = vadd.f32 %v4521, %v4601
    %v4603 = vpop.f32.mrb[0].mxu0
    %4604 = vmatprep.mubr.f32.mxu0 0.0
    %4605 = vmatmul.mubr.f32.gmra.mrb[0].mxu0 %v48
    %v4606 = vpop.f32.mrb[0].mxu0
    %v4607 = vadd.f32 %v4521, %v4606
    %v4608 = vpop.f32.mrb[0].mxu0
    %4609 = vmatprep.mubr.f32.mxu0 0.0
    %4610 = vmatmul.mubr.f32.gmra.mrb[0].mxu0 %v51
    %v4611 = vpop.f32.mrb[0].mxu0
    %v4612 = vadd.f32 %v4521, %v4611
    %v4613 = vpop.f32.mrb[0].mxu0
    %4614 = vdwg.mxu0
    %v4615 = vld [vmem:[#allocation2 + $0x100] sm:$0xff]
    %v4616 = vld [vmem:[#allocation2 + $0x108] sm:$0xff]
    %v4617 = vld [vmem:[#allocation2 + $0x110] sm:$0xff]
    %v4618 = vld [vmem:[#allocation2 + $0x118] sm:$0xff]
    %4620 = vrot.lane.b32.xlu0 %v4521, 64
    %v4621 = vpop.permute.xlu0 %4620
    %v4624 = vsel %vm805, %v4509, 0
    %v4627 = vsel %vm805, %v4510, 0
    %v4630 = vsel %vm805, %v4511, 0
    %v4633 = vsel %vm805, %v4512, 0
    %v4636 = vsel %vm805, %v4513, 0
    %v4639 = vsel %vm805, %v4514, 0
    %v4642 = vsel %vm805, %v4515, 0
    %v4645 = vsel %vm805, %v4516, 0
    %4647 = vmatprep.subr.mxu0 0.0
    %4648 = vmatpush1.msra.mxu0 %v4615
    %4649 = vmatprep.subr.mxu0 0.0
    %4650 = vmatpush1.msra.mxu0 %v4616
    %4651 = vmatprep.subr.mxu0 0.0
    %4652 = vmatpush1.msra.mxu0 %v4617
    %4653 = vmatprep.subr.mxu0 0.0
    %4654 = vmatpush1.msra.mxu0 %v4618
    %4655 = vmatprep.subr.mxu0 0.0
    %4656 = vmatpush1.msra.mxu0 0.0
    %4657 = vmatprep.subr.mxu0 0.0
    %4658 = vmatpush1.msra.mxu0 0.0
    %4659 = vmatprep.subr.mxu0 0.0
    %4660 = vmatpush1.msra.mxu0 0.0
    %4661 = vmatprep.subr.mxu0 0.0
    %4662 = vmatpush1.msra.mxu0 0.0
    %4663 = vmatprep.subr.mxu0 0.0
    %4664 = vmatpush1.msra.mxu0 0.0
    %4665 = vmatprep.subr.mxu0 0.0
    %4666 = vmatpush1.msra.mxu0 0.0
    %4667 = vmatprep.subr.mxu0 0.0
    %4668 = vmatpush1.msra.mxu0 0.0
    %4669 = vmatprep.subr.mxu0 0.0
    %4670 = vmatpush1.msra.mxu0 0.0
    %4671 = vmatprep.subr.mxu0 0.0
    %4672 = vmatpush1.msra.mxu0 0.0
    %4673 = vmatprep.subr.mxu0 0.0
    %4674 = vmatpush1.msra.mxu0 0.0
    %4675 = vmatprep.subr.mxu0 0.0
    %4676 = vmatpush1.msra.mxu0 0.0
    %4677 = vmatprep.subr.mxu0 0.0
    %4678 = vmatpush1.msra.mxu0 0.0
    %4679 = vmatprep.subr.mxu0 0.0
    %4680 = vmatpush1.msra.mxu0 0.0
    %4681 = vmatprep.subr.mxu0 0.0
    %4682 = vmatpush1.msra.mxu0 0.0
    %4683 = vmatprep.subr.mxu0 0.0
    %4684 = vmatpush1.msra.mxu0 0.0
    %4685 = vmatprep.subr.mxu0 0.0
    %4686 = vmatpush1.msra.mxu0 0.0
    %4687 = vmatprep.subr.mxu0 0.0
    %4688 = vmatpush1.msra.mxu0 0.0
    %4689 = vmatprep.subr.mxu0 0.0
    %4690 = vmatpush1.msra.mxu0 0.0
    %4691 = vmatprep.subr.mxu0 0.0
    %4692 = vmatpush1.msra.mxu0 0.0
    %4693 = vmatprep.subr.mxu0 0.0
    %4694 = vmatpush1.msra.mxu0 0.0
    %4695 = vmatprep.subr.mxu0 0.0
    %4696 = vmatpush1.msra.mxu0 0.0
    %4697 = vmatprep.subr.mxu0 0.0
    %4698 = vmatpush1.msra.mxu0 0.0
    %4699 = vmatprep.subr.mxu0 0.0
    %4700 = vmatpush1.msra.mxu0 0.0
    %4701 = vmatprep.subr.mxu0 0.0
    %4702 = vmatpush1.msra.mxu0 0.0
    %4703 = vmatprep.subr.mxu0 0.0
    %4704 = vmatpush1.msra.mxu0 0.0
    %4705 = vmatprep.subr.mxu0 0.0
    %4706 = vmatpush1.msra.mxu0 0.0
    %4707 = vmatprep.subr.mxu0 0.0
    %4708 = vmatpush1.msra.mxu0 0.0
    %4709 = vmatprep.subr.mxu0 0.0
    %4710 = vmatpush1.msra.mxu0 0.0
    %4711 = vmatprep.mubr.f32.mxu0 0.0
    %4712 = vmatmul.mubr.f32.gmra.mrb[0].mxu0 %v4624
    %v4713 = vpop.f32.mrb[0].mxu0
    %v4714 = vadd.f32 %v4621, %v4713
    %v4715 = vpop.f32.mrb[0].mxu0
    %4716 = vmatprep.mubr.f32.mxu0 0.0
    %4717 = vmatmul.mubr.f32.gmra.mrb[0].mxu0 %v4627
    %v4718 = vpop.f32.mrb[0].mxu0
    %v4719 = vadd.f32 %v4621, %v4718
    %v4720 = vpop.f32.mrb[0].mxu0
    %4721 = vmatprep.mubr.f32.mxu0 0.0
    %4722 = vmatmul.mubr.f32.gmra.mrb[0].mxu0 %v4630
    %v4723 = vpop.f32.mrb[0].mxu0
    %v4724 = vadd.f32 %v4621, %v4723
    %v4725 = vpop.f32.mrb[0].mxu0
    %4726 = vmatprep.mubr.f32.mxu0 0.0
    %4727 = vmatmul.mubr.f32.gmra.mrb[0].mxu0 %v4633
    %v4728 = vpop.f32.mrb[0].mxu0
    %v4729 = vadd.f32 %v4621, %v4728
    %v4730 = vpop.f32.mrb[0].mxu0
    %4731 = vmatprep.mubr.f32.mxu0 0.0
    %4732 = vmatmul.mubr.f32.gmra.mrb[0].mxu0 %v4636
    %v4733 = vpop.f32.mrb[0].mxu0
    %v4734 = vadd.f32 %v4621, %v4733
    %v4735 = vpop.f32.mrb[0].mxu0
    %4736 = vmatprep.mubr.f32.mxu0 0.0
    %4737 = vmatmul.mubr.f32.gmra.mrb[0].mxu0 %v4639
    %v4738 = vpop.f32.mrb[0].mxu0
    %v4739 = vadd.f32 %v4621, %v4738
    %v4740 = vpop.f32.mrb[0].mxu0
    %4741 = vmatprep.mubr.f32.mxu0 0.0
    %4742 = vmatmul.mubr.f32.gmra.mrb[0].mxu0 %v4642
    %v4743 = vpop.f32.mrb[0].mxu0
    %v4744 = vadd.f32 %v4621, %v4743
    %v4745 = vpop.f32.mrb[0].mxu0
    %4746 = vmatprep.mubr.f32.mxu0 0.0
    %4747 = vmatmul.mubr.f32.gmra.mrb[0].mxu0 %v4645
    %v4748 = vpop.f32.mrb[0].mxu0
    %v4749 = vadd.f32 %v4621, %v4748
    %v4750 = vpop.f32.mrb[0].mxu0
    %4751 = vdwg.mxu0
    %v4753 = vsel %vm40, %v4597, 0
    %v4756 = vsel %vm40, %v4602, 0
    %v4759 = vsel %vm40, %v4714, 0
    %v4762 = vsel %vm40, %v4719, 0
    %v4765 = vsel %vm40, %v4724, 0
    %v4768 = vsel %vm40, %v4729, 0
    %4770 = vmatprep.subr.mxu0 0.0
    %4771 = vmatpush1.xpose.msra.mxu0 %v4759
    %4772 = vmatprep.subr.mxu0 0.0
    %4773 = vmatpush1.xpose.msra.mxu0 %v4762
    %4774 = vmatprep.subr.mxu0 0.0
    %4775 = vmatpush1.xpose.msra.mxu0 %v4765
    %4776 = vmatprep.subr.mxu0 0.0
    %4777 = vmatpush1.xpose.msra.mxu0 %v4768
    %4778 = vmatprep.subr.mxu0 0.0
    %4779 = vmatpush1.xpose.msra.mxu0 0.0
    %4780 = vmatprep.subr.mxu0 0.0
    %4781 = vmatpush1.xpose.msra.mxu0 0.0
    %4782 = vmatprep.subr.mxu0 0.0
    %4783 = vmatpush1.xpose.msra.mxu0 0.0
    %4784 = vmatprep.subr.mxu0 0.0
    %4785 = vmatpush1.xpose.msra.mxu0 0.0
    %4786 = vmatprep.subr.mxu0 0.0
    %4787 = vmatpush1.xpose.msra.mxu0 0.0
    %4788 = vmatprep.subr.mxu0 0.0
    %4789 = vmatpush1.xpose.msra.mxu0 0.0
    %4790 = vmatprep.subr.mxu0 0.0
    %4791 = vmatpush1.xpose.msra.mxu0 0.0
    %4792 = vmatprep.subr.mxu0 0.0
    %4793 = vmatpush1.xpose.msra.mxu0 0.0
    %4794 = vmatprep.subr.mxu0 0.0
    %4795 = vmatpush1.xpose.msra.mxu0 0.0
    %4796 = vmatprep.subr.mxu0 0.0
    %4797 = vmatpush1.xpose.msra.mxu0 0.0
    %4798 = vmatprep.subr.mxu0 0.0
    %4799 = vmatpush1.xpose.msra.mxu0 0.0
    %4800 = vmatprep.subr.mxu0 0.0
    %4801 = vmatpush1.xpose.msra.mxu0 0.0
    %4802 = vmatprep.subr.mxu0 0.0
    %4803 = vmatpush1.xpose.msra.mxu0 0.0
    %4804 = vmatprep.subr.mxu0 0.0
    %4805 = vmatpush1.xpose.msra.mxu0 0.0
    %4806 = vmatprep.subr.mxu0 0.0
    %4807 = vmatpush1.xpose.msra.mxu0 0.0
    %4808 = vmatprep.subr.mxu0 0.0
    %4809 = vmatpush1.xpose.msra.mxu0 0.0
    %4810 = vmatprep.subr.mxu0 0.0
    %4811 = vmatpush1.xpose.msra.mxu0 0.0
    %4812 = vmatprep.subr.mxu0 0.0
    %4813 = vmatpush1.xpose.msra.mxu0 0.0
    %4814 = vmatprep.subr.mxu0 0.0
    %4815 = vmatpush1.xpose.msra.mxu0 0.0
    %4816 = vmatprep.subr.mxu0 0.0
    %4817 = vmatpush1.xpose.msra.mxu0 0.0
    %4818 = vmatprep.subr.mxu0 0.0
    %4819 = vmatpush1.xpose.msra.mxu0 0.0
    %4820 = vmatprep.subr.mxu0 0.0
    %4821 = vmatpush1.xpose.msra.mxu0 0.0
    %4822 = vmatprep.subr.mxu0 0.0
    %4823 = vmatpush1.xpose.msra.mxu0 0.0
    %4824 = vmatprep.subr.mxu0 0.0
    %4825 = vmatpush1.xpose.msra.mxu0 0.0
    %4826 = vmatprep.subr.mxu0 0.0
    %4827 = vmatpush1.xpose.msra.mxu0 0.0
    %4828 = vmatprep.subr.mxu0 0.0
    %4829 = vmatpush1.xpose.msra.mxu0 0.0
    %4830 = vmatprep.subr.mxu0 0.0
    %4831 = vmatpush1.xpose.msra.mxu0 0.0
    %4832 = vmatprep.subr.mxu0 0.0
    %4833 = vmatpush1.xpose.msra.mxu0 0.0
    %4834 = vmatprep.mubr.f32.mxu0 0.0
    %4835 = vmatmul.mubr.f32.gmra.mrb[0].mxu0 %v4753
    %v4836 = vpop.f32.mrb[0].mxu0
    %v4837 = vadd.f32 0.0, %v4836
    %v4838 = vpop.f32.mrb[0].mxu0
    %4839 = vmatprep.mubr.f32.mxu0 0.0
    %4840 = vmatmul.mubr.f32.gmra.mrb[0].mxu0 %v4756
    %v4841 = vpop.f32.mrb[0].mxu0
    %v4842 = vadd.f32 0.0, %v4841
    %v4843 = vpop.f32.mrb[0].mxu0
    %4844 = vdwg.mxu0
    %v4845 = vsel %vm805, %v4837, -inf
    %4846 = vmax.xlane.f32.xlu0 %v4845
    %v4847 = vpop.xlane.xlu0 %4846
    %v4848 = vsel %vm805, %v4842, -inf
    %4849 = vmax.xlane.f32.xlu0 %v4848
    %v4850 = vpop.xlane.xlu0 %4849
    %v4851 = vsub.f32 %v4837, %v4847
    %v4852 = vsub.f32 %v4842, %v4850
    %v4853 = vmul.f32 %v4851, 1.442695
    %v4854 = vpow.pop %v4853
    %v4855 = vmul.f32 %v4852, 1.442695
    %v4856 = vpow.pop %v4855
    %v4857 = vsel %vm805, %v4854, 0.0
    %4858 = vadd.xlane.f32.xlu0 %v4857
    %v4859 = vpop.xlane.xlu0 %4858
    %v4860 = vsel %vm805, %v4856, 0.0
    %4861 = vadd.xlane.f32.xlu0 %v4860
    %v4862 = vpop.xlane.xlu0 %4861
    %v4863 = vrcp.pop %v4859
    %v4864 = vrcp.pop %v4862
    %v4865 = vmul.f32 %v4854, %v4863
    %v4866 = vmul.f32 %v4856, %v4864
    %4867 = vrot.lane.b32.xlu0 %v4714, 112
    %v4868 = vpop.permute.xlu0 %4867
    %4869 = vrot.lane.b32.xlu0 %v4719, 112
    %v4870 = vpop.permute.xlu0 %4869
    %4871 = vrot.lane.b32.xlu0 %v4724, 112
    %v4872 = vpop.permute.xlu0 %4871
    %4873 = vrot.lane.b32.xlu0 %v4729, 112
    %v4874 = vpop.permute.xlu0 %4873
    %v4880 = vsel %vm805, %v4865, 0
    %v4883 = vsel %vm805, %v4866, 0
    %4885 = vmatprep.subr.mxu0 0.0
    %4886 = vmatpush1.msra.mxu0 %v4868
    %4887 = vmatprep.subr.mxu0 0.0
    %4888 = vmatpush1.msra.mxu0 %v4870
    %4889 = vmatprep.subr.mxu0 0.0
    %4890 = vmatpush1.msra.mxu0 %v4872
    %4891 = vmatprep.subr.mxu0 0.0
    %4892 = vmatpush1.msra.mxu0 %v4874
    %4893 = vmatprep.subr.mxu0 0.0
    %4894 = vmatpush1.msra.mxu0 0.0
    %4895 = vmatprep.subr.mxu0 0.0
    %4896 = vmatpush1.msra.mxu0 0.0
    %4897 = vmatprep.subr.mxu0 0.0
    %4898 = vmatpush1.msra.mxu0 0.0
    %4899 = vmatprep.subr.mxu0 0.0
    %4900 = vmatpush1.msra.mxu0 0.0
    %4901 = vmatprep.subr.mxu0 0.0
    %4902 = vmatpush1.msra.mxu0 0.0
    %4903 = vmatprep.subr.mxu0 0.0
    %4904 = vmatpush1.msra.mxu0 0.0
    %4905 = vmatprep.subr.mxu0 0.0
    %4906 = vmatpush1.msra.mxu0 0.0
    %4907 = vmatprep.subr.mxu0 0.0
    %4908 = vmatpush1.msra.mxu0 0.0
    %4909 = vmatprep.subr.mxu0 0.0
    %4910 = vmatpush1.msra.mxu0 0.0
    %4911 = vmatprep.subr.mxu0 0.0
    %4912 = vmatpush1.msra.mxu0 0.0
    %4913 = vmatprep.subr.mxu0 0.0
    %4914 = vmatpush1.msra.mxu0 0.0
    %4915 = vmatprep.subr.mxu0 0.0
    %4916 = vmatpush1.msra.mxu0 0.0
    %4917 = vmatprep.subr.mxu0 0.0
    %4918 = vmatpush1.msra.mxu0 0.0
    %4919 = vmatprep.subr.mxu0 0.0
    %4920 = vmatpush1.msra.mxu0 0.0
    %4921 = vmatprep.subr.mxu0 0.0
    %4922 = vmatpush1.msra.mxu0 0.0
    %4923 = vmatprep.subr.mxu0 0.0
    %4924 = vmatpush1.msra.mxu0 0.0
    %4925 = vmatprep.subr.mxu0 0.0
    %4926 = vmatpush1.msra.mxu0 0.0
    %4927 = vmatprep.subr.mxu0 0.0
    %4928 = vmatpush1.msra.mxu0 0.0
    %4929 = vmatprep.subr.mxu0 0.0
    %4930 = vmatpush1.msra.mxu0 0.0
    %4931 = vmatprep.subr.mxu0 0.0
    %4932 = vmatpush1.msra.mxu0 0.0
    %4933 = vmatprep.subr.mxu0 0.0
    %4934 = vmatpush1.msra.mxu0 0.0
    %4935 = vmatprep.subr.mxu0 0.0
    %4936 = vmatpush1.msra.mxu0 0.0
    %4937 = vmatprep.subr.mxu0 0.0
    %4938 = vmatpush1.msra.mxu0 0.0
    %4939 = vmatprep.subr.mxu0 0.0
    %4940 = vmatpush1.msra.mxu0 0.0
    %4941 = vmatprep.subr.mxu0 0.0
    %4942 = vmatpush1.msra.mxu0 0.0
    %4943 = vmatprep.subr.mxu0 0.0
    %4944 = vmatpush1.msra.mxu0 0.0
    %4945 = vmatprep.subr.mxu0 0.0
    %4946 = vmatpush1.msra.mxu0 0.0
    %4947 = vmatprep.subr.mxu0 0.0
    %4948 = vmatpush1.msra.mxu0 0.0
    %4949 = vmatprep.mubr.f32.mxu0 0.0
    %4950 = vmatmul.mubr.f32.gmra.mrb[0].mxu0 %v4880
    %v4951 = vpop.f32.mrb[0].mxu0
    %v4952 = vadd.f32 0.0, %v4951
    %v4953 = vpop.f32.mrb[0].mxu0
    %4954 = vmatprep.mubr.f32.mxu0 0.0
    %4955 = vmatmul.mubr.f32.gmra.mrb[0].mxu0 %v4883
    %v4956 = vpop.f32.mrb[0].mxu0
    %v4957 = vadd.f32 0.0, %v4956
    %v4958 = vpop.f32.mrb[0].mxu0
    %4959 = vdwg.mxu0
    %v4961 = vsel %vm40, %v4607, 0
    %v4964 = vsel %vm40, %v4612, 0
    %v4967 = vsel %vm40, %v4734, 0
    %v4970 = vsel %vm40, %v4739, 0
    %v4973 = vsel %vm40, %v4744, 0
    %v4976 = vsel %vm40, %v4749, 0
    %4978 = vmatprep.subr.mxu0 0.0
    %4979 = vmatpush1.xpose.msra.mxu0 %v4967
    %4980 = vmatprep.subr.mxu0 0.0
    %4981 = vmatpush1.xpose.msra.mxu0 %v4970
    %4982 = vmatprep.subr.mxu0 0.0
    %4983 = vmatpush1.xpose.msra.mxu0 %v4973
    %4984 = vmatprep.subr.mxu0 0.0
    %4985 = vmatpush1.xpose.msra.mxu0 %v4976
    %4986 = vmatprep.subr.mxu0 0.0
    %4987 = vmatpush1.xpose.msra.mxu0 0.0
    %4988 = vmatprep.subr.mxu0 0.0
    %4989 = vmatpush1.xpose.msra.mxu0 0.0
    %4990 = vmatprep.subr.mxu0 0.0
    %4991 = vmatpush1.xpose.msra.mxu0 0.0
    %4992 = vmatprep.subr.mxu0 0.0
    %4993 = vmatpush1.xpose.msra.mxu0 0.0
    %4994 = vmatprep.subr.mxu0 0.0
    %4995 = vmatpush1.xpose.msra.mxu0 0.0
    %4996 = vmatprep.subr.mxu0 0.0
    %4997 = vmatpush1.xpose.msra.mxu0 0.0
    %4998 = vmatprep.subr.mxu0 0.0
    %4999 = vmatpush1.xpose.msra.mxu0 0.0
    %5000 = vmatprep.subr.mxu0 0.0
    %5001 = vmatpush1.xpose.msra.mxu0 0.0
    %5002 = vmatprep.subr.mxu0 0.0
    %5003 = vmatpush1.xpose.msra.mxu0 0.0
    %5004 = vmatprep.subr.mxu0 0.0
    %5005 = vmatpush1.xpose.msra.mxu0 0.0
    %5006 = vmatprep.subr.mxu0 0.0
    %5007 = vmatpush1.xpose.msra.mxu0 0.0
    %5008 = vmatprep.subr.mxu0 0.0
    %5009 = vmatpush1.xpose.msra.mxu0 0.0
    %5010 = vmatprep.subr.mxu0 0.0
    %5011 = vmatpush1.xpose.msra.mxu0 0.0
    %5012 = vmatprep.subr.mxu0 0.0
    %5013 = vmatpush1.xpose.msra.mxu0 0.0
    %5014 = vmatprep.subr.mxu0 0.0
    %5015 = vmatpush1.xpose.msra.mxu0 0.0
    %5016 = vmatprep.subr.mxu0 0.0
    %5017 = vmatpush1.xpose.msra.mxu0 0.0
    %5018 = vmatprep.subr.mxu0 0.0
    %5019 = vmatpush1.xpose.msra.mxu0 0.0
    %5020 = vmatprep.subr.mxu0 0.0
    %5021 = vmatpush1.xpose.msra.mxu0 0.0
    %5022 = vmatprep.subr.mxu0 0.0
    %5023 = vmatpush1.xpose.msra.mxu0 0.0
    %5024 = vmatprep.subr.mxu0 0.0
    %5025 = vmatpush1.xpose.msra.mxu0 0.0
    %5026 = vmatprep.subr.mxu0 0.0
    %5027 = vmatpush1.xpose.msra.mxu0 0.0
    %5028 = vmatprep.subr.mxu0 0.0
    %5029 = vmatpush1.xpose.msra.mxu0 0.0
    %5030 = vmatprep.subr.mxu0 0.0
    %5031 = vmatpush1.xpose.msra.mxu0 0.0
    %5032 = vmatprep.subr.mxu0 0.0
    %5033 = vmatpush1.xpose.msra.mxu0 0.0
    %5034 = vmatprep.subr.mxu0 0.0
    %5035 = vmatpush1.xpose.msra.mxu0 0.0
    %5036 = vmatprep.subr.mxu0 0.0
    %5037 = vmatpush1.xpose.msra.mxu0 0.0
    %5038 = vmatprep.subr.mxu0 0.0
    %5039 = vmatpush1.xpose.msra.mxu0 0.0
    %5040 = vmatprep.subr.mxu0 0.0
    %5041 = vmatpush1.xpose.msra.mxu0 0.0
    %5042 = vmatprep.mubr.f32.mxu0 0.0
    %5043 = vmatmul.mubr.f32.gmra.mrb[0].mxu0 %v4961
    %v5044 = vpop.f32.mrb[0].mxu0
    %v5045 = vadd.f32 0.0, %v5044
    %v5046 = vpop.f32.mrb[0].mxu0
    %5047 = vmatprep.mubr.f32.mxu0 0.0
    %5048 = vmatmul.mubr.f32.gmra.mrb[0].mxu0 %v4964
    %v5049 = vpop.f32.mrb[0].mxu0
    %v5050 = vadd.f32 0.0, %v5049
    %v5051 = vpop.f32.mrb[0].mxu0
    %5052 = vdwg.mxu0
    %v5053 = vsel %vm805, %v5045, -inf
    %5054 = vmax.xlane.f32.xlu0 %v5053
    %v5055 = vpop.xlane.xlu0 %5054
    %v5056 = vsel %vm805, %v5050, -inf
    %5057 = vmax.xlane.f32.xlu0 %v5056
    %v5058 = vpop.xlane.xlu0 %5057
    %v5059 = vsub.f32 %v5045, %v5055
    %v5060 = vsub.f32 %v5050, %v5058
    %v5061 = vmul.f32 %v5059, 1.442695
    %v5062 = vpow.pop %v5061
    %v5063 = vmul.f32 %v5060, 1.442695
    %v5064 = vpow.pop %v5063
    %v5065 = vsel %vm805, %v5062, 0.0
    %5066 = vadd.xlane.f32.xlu0 %v5065
    %v5067 = vpop.xlane.xlu0 %5066
    %v5068 = vsel %vm805, %v5064, 0.0
    %5069 = vadd.xlane.f32.xlu0 %v5068
    %v5070 = vpop.xlane.xlu0 %5069
    %v5071 = vrcp.pop %v5067
    %v5072 = vrcp.pop %v5070
    %v5073 = vmul.f32 %v5062, %v5071
    %v5074 = vmul.f32 %v5064, %v5072
    %5075 = vrot.lane.b32.xlu0 %v4734, 112
    %v5076 = vpop.permute.xlu0 %5075
    %5077 = vrot.lane.b32.xlu0 %v4739, 112
    %v5078 = vpop.permute.xlu0 %5077
    %5079 = vrot.lane.b32.xlu0 %v4744, 112
    %v5080 = vpop.permute.xlu0 %5079
    %5081 = vrot.lane.b32.xlu0 %v4749, 112
    %v5082 = vpop.permute.xlu0 %5081
    %v5088 = vsel %vm805, %v5073, 0
    %v5091 = vsel %vm805, %v5074, 0
    %5093 = vmatprep.subr.mxu0 0.0
    %5094 = vmatpush1.msra.mxu0 %v5076
    %5095 = vmatprep.subr.mxu0 0.0
    %5096 = vmatpush1.msra.mxu0 %v5078
    %5097 = vmatprep.subr.mxu0 0.0
    %5098 = vmatpush1.msra.mxu0 %v5080
    %5099 = vmatprep.subr.mxu0 0.0
    %5100 = vmatpush1.msra.mxu0 %v5082
    %5101 = vmatprep.subr.mxu0 0.0
    %5102 = vmatpush1.msra.mxu0 0.0
    %5103 = vmatprep.subr.mxu0 0.0
    %5104 = vmatpush1.msra.mxu0 0.0
    %5105 = vmatprep.subr.mxu0 0.0
    %5106 = vmatpush1.msra.mxu0 0.0
    %5107 = vmatprep.subr.mxu0 0.0
    %5108 = vmatpush1.msra.mxu0 0.0
    %5109 = vmatprep.subr.mxu0 0.0
    %5110 = vmatpush1.msra.mxu0 0.0
    %5111 = vmatprep.subr.mxu0 0.0
    %5112 = vmatpush1.msra.mxu0 0.0
    %5113 = vmatprep.subr.mxu0 0.0
    %5114 = vmatpush1.msra.mxu0 0.0
    %5115 = vmatprep.subr.mxu0 0.0
    %5116 = vmatpush1.msra.mxu0 0.0
    %5117 = vmatprep.subr.mxu0 0.0
    %5118 = vmatpush1.msra.mxu0 0.0
    %5119 = vmatprep.subr.mxu0 0.0
    %5120 = vmatpush1.msra.mxu0 0.0
    %5121 = vmatprep.subr.mxu0 0.0
    %5122 = vmatpush1.msra.mxu0 0.0
    %5123 = vmatprep.subr.mxu0 0.0
    %5124 = vmatpush1.msra.mxu0 0.0
    %5125 = vmatprep.subr.mxu0 0.0
    %5126 = vmatpush1.msra.mxu0 0.0
    %5127 = vmatprep.subr.mxu0 0.0
    %5128 = vmatpush1.msra.mxu0 0.0
    %5129 = vmatprep.subr.mxu0 0.0
    %5130 = vmatpush1.msra.mxu0 0.0
    %5131 = vmatprep.subr.mxu0 0.0
    %5132 = vmatpush1.msra.mxu0 0.0
    %5133 = vmatprep.subr.mxu0 0.0
    %5134 = vmatpush1.msra.mxu0 0.0
    %5135 = vmatprep.subr.mxu0 0.0
    %5136 = vmatpush1.msra.mxu0 0.0
    %5137 = vmatprep.subr.mxu0 0.0
    %5138 = vmatpush1.msra.mxu0 0.0
    %5139 = vmatprep.subr.mxu0 0.0
    %5140 = vmatpush1.msra.mxu0 0.0
    %5141 = vmatprep.subr.mxu0 0.0
    %5142 = vmatpush1.msra.mxu0 0.0
    %5143 = vmatprep.subr.mxu0 0.0
    %5144 = vmatpush1.msra.mxu0 0.0
    %5145 = vmatprep.subr.mxu0 0.0
    %5146 = vmatpush1.msra.mxu0 0.0
    %5147 = vmatprep.subr.mxu0 0.0
    %5148 = vmatpush1.msra.mxu0 0.0
    %5149 = vmatprep.subr.mxu0 0.0
    %5150 = vmatpush1.msra.mxu0 0.0
    %5151 = vmatprep.subr.mxu0 0.0
    %5152 = vmatpush1.msra.mxu0 0.0
    %5153 = vmatprep.subr.mxu0 0.0
    %5154 = vmatpush1.msra.mxu0 0.0
    %5155 = vmatprep.subr.mxu0 0.0
    %5156 = vmatpush1.msra.mxu0 0.0
    %5157 = vmatprep.mubr.f32.mxu0 0.0
    %5158 = vmatmul.mubr.f32.gmra.mrb[0].mxu0 %v5088
    %v5159 = vpop.f32.mrb[0].mxu0
    %v5160 = vadd.f32 0.0, %v5159
    %v5161 = vpop.f32.mrb[0].mxu0
    %5162 = vmatprep.mubr.f32.mxu0 0.0
    %5163 = vmatmul.mubr.f32.gmra.mrb[0].mxu0 %v5091
    %v5164 = vpop.f32.mrb[0].mxu0
    %v5165 = vadd.f32 0.0, %v5164
    %v5166 = vpop.f32.mrb[0].mxu0
    %5167 = vdwg.mxu0
    %v5168 = vld [vmem:[#allocation2 + $0x100] sm:$0xff]
    %v5169 = vld [vmem:[#allocation2 + $0x108] sm:$0xff]
    %v5170 = vld [vmem:[#allocation2 + $0x121] sm:$0x1]
    %v5171 = vlaneseq
    %v5172 = vshrl.u32 %v5171, 7
    %v5173 = vsub.s32 0, %v5172
    %v5174 = vrot.slane %v5170, %v5173
    %5177 = vrot.lane.b32.xlu0 %v5168, 64
    %v5178 = vpop.permute.xlu0 %5177
    %5179 = vrot.lane.b32.xlu0 %v5169, 64
    %v5180 = vpop.permute.xlu0 %5179
    %v5184 = vsel %vm40, %v4952, 0
    %v5187 = vsel %vm40, %v4957, 0
    %v5190 = vsel %vm40, %v5160, 0
    %v5193 = vsel %vm40, %v5165, 0
    %5195 = vmatprep.subr.mxu0 0.0
    %5196 = vmatpush1.msra.mxu0 %v5178
    %5197 = vmatprep.subr.mxu0 0.0
    %5198 = vmatpush1.msra.mxu0 %v5180
    %5199 = vmatprep.subr.mxu0 0.0
    %5200 = vmatpush1.msra.mxu0 0.0
    %5201 = vmatprep.subr.mxu0 0.0
    %5202 = vmatpush1.msra.mxu0 0.0
    %5203 = vmatprep.subr.mxu0 0.0
    %5204 = vmatpush1.msra.mxu0 0.0
    %5205 = vmatprep.subr.mxu0 0.0
    %5206 = vmatpush1.msra.mxu0 0.0
    %5207 = vmatprep.subr.mxu0 0.0
    %5208 = vmatpush1.msra.mxu0 0.0
    %5209 = vmatprep.subr.mxu0 0.0
    %5210 = vmatpush1.msra.mxu0 0.0
    %5211 = vmatprep.subr.mxu0 0.0
    %5212 = vmatpush1.msra.mxu0 0.0
    %5213 = vmatprep.subr.mxu0 0.0
    %5214 = vmatpush1.msra.mxu0 0.0
    %5215 = vmatprep.subr.mxu0 0.0
    %5216 = vmatpush1.msra.mxu0 0.0
    %5217 = vmatprep.subr.mxu0 0.0
    %5218 = vmatpush1.msra.mxu0 0.0
    %5219 = vmatprep.subr.mxu0 0.0
    %5220 = vmatpush1.msra.mxu0 0.0
    %5221 = vmatprep.subr.mxu0 0.0
    %5222 = vmatpush1.msra.mxu0 0.0
    %5223 = vmatprep.subr.mxu0 0.0
    %5224 = vmatpush1.msra.mxu0 0.0
    %5225 = vmatprep.subr.mxu0 0.0
    %5226 = vmatpush1.msra.mxu0 0.0
    %5227 = vmatprep.subr.mxu0 0.0
    %5228 = vmatpush1.msra.mxu0 0.0
    %5229 = vmatprep.subr.mxu0 0.0
    %5230 = vmatpush1.msra.mxu0 0.0
    %5231 = vmatprep.subr.mxu0 0.0
    %5232 = vmatpush1.msra.mxu0 0.0
    %5233 = vmatprep.subr.mxu0 0.0
    %5234 = vmatpush1.msra.mxu0 0.0
    %5235 = vmatprep.subr.mxu0 0.0
    %5236 = vmatpush1.msra.mxu0 0.0
    %5237 = vmatprep.subr.mxu0 0.0
    %5238 = vmatpush1.msra.mxu0 0.0
    %5239 = vmatprep.subr.mxu0 0.0
    %5240 = vmatpush1.msra.mxu0 0.0
    %5241 = vmatprep.subr.mxu0 0.0
    %5242 = vmatpush1.msra.mxu0 0.0
    %5243 = vmatprep.subr.mxu0 0.0
    %5244 = vmatpush1.msra.mxu0 0.0
    %5245 = vmatprep.subr.mxu0 0.0
    %5246 = vmatpush1.msra.mxu0 0.0
    %5247 = vmatprep.subr.mxu0 0.0
    %5248 = vmatpush1.msra.mxu0 0.0
    %5249 = vmatprep.subr.mxu0 0.0
    %5250 = vmatpush1.msra.mxu0 0.0
    %5251 = vmatprep.subr.mxu0 0.0
    %5252 = vmatpush1.msra.mxu0 0.0
    %5253 = vmatprep.subr.mxu0 0.0
    %5254 = vmatpush1.msra.mxu0 0.0
    %5255 = vmatprep.subr.mxu0 0.0
    %5256 = vmatpush1.msra.mxu0 0.0
    %5257 = vmatprep.subr.mxu0 0.0
    %5258 = vmatpush1.msra.mxu0 0.0
    %5259 = vmatprep.mubr.f32.mxu0 0.0
    %5260 = vmatmul.mubr.f32.gmra.mrb[0].mxu0 %v5184
    %v5261 = vpop.f32.mrb[0].mxu0
    %v5262 = vadd.f32 %v5174, %v5261
    %v5263 = vpop.f32.mrb[0].mxu0
    %5264 = vmatprep.mubr.f32.mxu0 0.0
    %5265 = vmatmul.mubr.f32.gmra.mrb[0].mxu0 %v5187
    %v5266 = vpop.f32.mrb[0].mxu0
    %v5267 = vadd.f32 %v5174, %v5266
    %v5268 = vpop.f32.mrb[0].mxu0
    %5269 = vmatprep.mubr.f32.mxu0 0.0
    %5270 = vmatmul.mubr.f32.gmra.mrb[0].mxu0 %v5190
    %v5271 = vpop.f32.mrb[0].mxu0
    %v5272 = vadd.f32 %v5174, %v5271
    %v5273 = vpop.f32.mrb[0].mxu0
    %5274 = vmatprep.mubr.f32.mxu0 0.0
    %5275 = vmatmul.mubr.f32.gmra.mrb[0].mxu0 %v5193
    %v5276 = vpop.f32.mrb[0].mxu0
    %v5277 = vadd.f32 %v5174, %v5276
    %v5278 = vpop.f32.mrb[0].mxu0
    %5279 = vdwg.mxu0
    %v5280 = vadd.f32 %v5262, %v25
    %v5281 = vadd.f32 %v5267, %v26
    %v5282 = vadd.f32 %v5272, %v27
    %v5283 = vadd.f32 %v5277, %v28
    %5284 = vst.msk [vmem:[%s2] sm:$0xff] %vm40, %v5280
    %5285 = vst.msk [vmem:[%s2 + $0x8] sm:$0xff] %vm40, %v5281
    %5286 = vst.msk [vmem:[%s2 + $0x10] sm:$0xff] %vm40, %v5282
    %5287 = vst.msk [vmem:[%s2 + $0x18] sm:$0xff] %vm40, %v5283
    // Predicated region
    $region14: #{tpu_custom_call.1} parent=1 // pred_check
      _
    $region15: #{tpu_custom_call.1} parent=1 // pred_check_branch
      %5289 = sbr.rel (0) target = $region17
    $region16: #{tpu_custom_call.1} parent=1 // pred_region
      _
    $region17: #{tpu_custom_call.1} parent=1 // pred_fallthru
      _
    // Predicated region
    $region18: #{tpu_custom_call.1} parent=1 // pred_check
      _
    $region19: #{tpu_custom_call.1} parent=1 // pred_check_branch
      %5291 = sbr.rel (0) target = $region21
    $region20: #{tpu_custom_call.1} parent=1 // pred_region
      _
    $region21: #{tpu_custom_call.1} parent=1 // pred_fallthru
      _
    %5292 = vsyncpa [#allocation3], 1

</llo_original>
